<compile_context>
chip_gen: v5e
topology: v5e:2x2
jax: 0.10.0
libtpu: 0.0.40
codegen_flags: <defaults>
</compile_context>

<pallas_src>
import functools

import jax
import jax.numpy as jnp
from jax import lax
from jax.experimental import pallas as pl
from jax.experimental.pallas import tpu as pltpu

BN_EPS = 1e-5
_LANE = 128
_VMEM_LIMIT = 32 * 1024 * 1024  # explicit scoped-VMEM budget, safe on v5e/v6e/v7x


def _round_up(x, m):
    return (x + m - 1) // m * m


def _largest_divisor(n, cap, multiple=1):
    """Largest d <= cap with n % d == 0 and d % multiple == 0 (0 if none)."""
    best = 0
    for d in range(1, min(n, cap) + 1):
        if n % d == 0 and d % multiple == 0:
            best = d
    return best


def conv_block(x_nchw, weight, bias, gamma, beta, filter_size=3, stride=1):
    """Fused Conv2d(pad=same, stride=1) + BatchNorm2d(training) + Mish.

    x_nchw: (N, Cin, H, W). Returns (N, Cout, H, W) in float32.
    `bias` is accepted for interface parity but is mathematically cancelled by the
    training-mode BN mean subtraction, so it is folded away (per perf review).
    """
    assert stride == 1, "stride != 1 not implemented"  # TODO(synk): strided conv path
    del bias  # exactly cancelled by BN batch-mean subtraction

    N, Cin, H, W = x_nchw.shape
    Cout = weight.shape[0]
    fs = filter_size
    pad = (fs - 1) // 2
    Ho = H + 2 * pad - fs + 1
    Wo = W + 2 * pad - fs + 1
    Hp, Wp = H + 2 * pad, W + 2 * pad
    Cpad = _round_up(Cout, _LANE)          # lane-dense output channels

    # ---- layout glue (wrapper): NCHW -> padded NHWC, bf16 operands for the MXU ----
    x = jnp.transpose(x_nchw, (0, 2, 3, 1))
    x_pad = jnp.pad(x, ((0, 0), (pad, pad), (pad, pad), (0, 0))).astype(jnp.bfloat16)

    # PyTorch weight (Cout, Cin, kh, kw) -> (kh*kw, Cin, Cpad), zero-padded channels, bf16.
    w = jnp.transpose(weight, (2, 3, 1, 0)).reshape(fs * fs, Cin, Cout)
    w = jnp.pad(w, ((0, 0), (0, 0), (0, Cpad - Cout))).astype(jnp.bfloat16)

    # ---- tile sizes ----
    # Output row-tile: keep the f32 (TH, Wo, Cpad) tile around ~2 MiB so double-buffering fits
    # comfortably inside the (explicit, conservative) 32 MiB scoped-VMEM budget on every gen.
    th_cap = max(1, (2 * 1024 * 1024) // max(1, Wo * Cpad * 4))
    TH = max(1, _largest_divisor(Ho, th_cap))
    nH = Ho // TH

    # ---------------- pass 1: implicit-im2col conv + partial BN stats ----------------
    def conv_stats_kernel(x_ref, w_ref, y_ref, stats_ref):
        # x_ref:    (Hp, Wp, Cin)     bf16  -- whole padded image, reused across h tiles
        # w_ref:    (fs*fs, Cin, Cpad) bf16 -- fetched once (constant index_map)
        # y_ref:    (TH, Wo, Cpad)    f32   -- conv output tile (accumulated in place)
        # stats_ref:(2, Cpad)         f32   -- per-tile [sum, sum-of-squares]
        row0 = pl.multiple_of(pl.program_id(1) * TH, TH)
        y_ref[...] = jnp.zeros_like(y_ref)
        for kh in range(fs):
            rows = x_ref[pl.ds(row0 + kh, TH), :, :]          # (TH, Wp, Cin)
            for kw in range(fs):
                patch = rows[:, kw:kw + Wo, :]                # (TH, Wo, Cin) shifted window
                wk = jnp.broadcast_to(w_ref[kh * fs + kw], (TH, Cin, Cpad))
                y_ref[...] += lax.dot_general(                # batched MXU matmul, f32 acc
                    patch, wk,
                    dimension_numbers=(((2,), (1,)), ((0,), (0,))),
                    preferred_element_type=jnp.float32)
        y = y_ref[...]
        s1 = jnp.sum(jnp.sum(y, axis=0), axis=0, keepdims=True)        # (1, Cpad)
        s2 = jnp.sum(jnp.sum(y * y, axis=0), axis=0, keepdims=True)    # (1, Cpad)
        stats_ref[...] = jnp.concatenate([s1, s2], axis=0)

    flops1 = 2 * N * Ho * Wo * fs * fs * Cin * Cpad
    bytes1 = (x_pad.size * 2 + w.size * 2
              + N * Ho * Wo * Cpad * 4 + N * nH * 2 * Cpad * 4)

    y, stats = pl.pallas_call(
        conv_stats_kernel,
        grid=(N, nH),
        in_specs=[
            pl.BlockSpec((None, Hp, Wp, Cin), lambda n, h: (n, 0, 0, 0)),
            pl.BlockSpec((fs * fs, Cin, Cpad), lambda n, h: (0, 0, 0)),
        ],
        out_specs=[
            pl.BlockSpec((None, TH, Wo, Cpad), lambda n, h: (n, h, 0, 0)),
            pl.BlockSpec((None, None, 2, Cpad), lambda n, h: (n, h, 0, 0)),
        ],
        out_shape=[
            jax.ShapeDtypeStruct((N, Ho, Wo, Cpad), jnp.float32),
            jax.ShapeDtypeStruct((N, nH, 2, Cpad), jnp.float32),
        ],
        compiler_params=pltpu.CompilerParams(
            dimension_semantics=("parallel", "parallel"),
            vmem_limit_bytes=_VMEM_LIMIT),
        cost_estimate=pl.CostEstimate(
            flops=flops1, transcendentals=0, bytes_accessed=bytes1),
    )(x_pad, w)

    # ---------------- tiny JAX glue: fold partial stats into per-channel scale/shift ----------------
    M = N * Ho * Wo
    sums = jnp.sum(stats, axis=(0, 1))                         # (2, Cpad)
    mean = sums[0] / M
    var = jnp.maximum(sums[1] / M - mean * mean, 0.0)          # biased (training-mode) variance
    g = jnp.pad(gamma.astype(jnp.float32), (0, Cpad - Cout))   # padded channels: gamma=0 -> z=0
    b = jnp.pad(beta.astype(jnp.float32), (0, Cpad - Cout))
    inv = lax.rsqrt(var + BN_EPS)
    scale = (g * inv).reshape(1, Cpad)
    shift = (b - mean * g * inv).reshape(1, Cpad)

    # ---------------- pass 2: z = y*scale + shift, then Mish (single exp) ----------------
    def bn_mish_kernel(y_ref, scale_ref, shift_ref, o_ref):
        z = y_ref[...] * scale_ref[...] + shift_ref[...]
        # mish(z) = z * tanh(softplus(z)); with t = e^z:
        #   tanh(softplus(z)) = t*(t+2) / (t*(t+2) + 2)   (one EUP exp instead of exp+log1p+tanh)
        t = jnp.exp(jnp.minimum(z, 20.0))
        num = t * (t + 2.0)
        tanh_sp = num * pl.reciprocal(num + 2.0, approx=True)
        # PyTorch softplus threshold=20: for z > 20, softplus(z)=z and tanh(z)==1 in f32.
        o_ref[...] = jnp.where(z > 20.0, z, z * tanh_sp)

    TM = _largest_divisor(M, 1024, multiple=8)
    if TM == 0:
        TM = M  # full-extent block fallback (allowed when block == array dim)
    y_flat = y.reshape(M, Cpad)
    flops2 = 6 * M * Cpad
    bytes2 = 2 * M * Cpad * 4 + 2 * Cpad * 4

    out_flat = pl.pallas_call(
        bn_mish_kernel,
        grid=(M // TM,),
        in_specs=[
            pl.BlockSpec((TM, Cpad), lambda i: (i, 0)),
            pl.BlockSpec((1, Cpad), lambda i: (0, 0)),   # fetched once, reused across tiles
            pl.BlockSpec((1, Cpad), lambda i: (0, 0)),
        ],
        out_specs=pl.BlockSpec((TM, Cpad), lambda i: (i, 0)),
        out_shape=jax.ShapeDtypeStruct((M, Cpad), jnp.float32),
        compiler_params=pltpu.CompilerParams(
            dimension_semantics=("parallel",),
            vmem_limit_bytes=_VMEM_LIMIT),
        cost_estimate=pl.CostEstimate(
            flops=flops2, transcendentals=M * Cpad, bytes_accessed=bytes2),
    )(y_flat, scale, shift)

    out = out_flat.reshape(N, Ho, Wo, Cpad)[..., :Cout]
    return jnp.transpose(out, (0, 3, 1, 2))


def _reference(x, weight, gamma, beta, fs, stride):
    """Pure-JAX reference (same bf16 input quantization; conv bias cancelled by BN)."""
    pad = (fs - 1) // 2
    y = lax.conv_general_dilated(
        x.astype(jnp.bfloat16), weight.astype(jnp.bfloat16),
        window_strides=(stride, stride), padding=[(pad, pad), (pad, pad)],
        dimension_numbers=("NCHW", "OIHW", "NCHW"),
        preferred_element_type=jnp.float32)
    mean = y.mean(axis=(0, 2, 3), keepdims=True)
    var = y.var(axis=(0, 2, 3), keepdims=True)
    z = (gamma.reshape(1, -1, 1, 1) * (y - mean) * lax.rsqrt(var + BN_EPS)
         + beta.reshape(1, -1, 1, 1))
    sp = jnp.where(z > 20.0, z, jnp.log1p(jnp.exp(jnp.minimum(z, 20.0))))
    return z * jnp.tanh(sp)


if __name__ == "__main__":
    key = jax.random.PRNGKey(0)
    k_x, k_w, k_b = jax.random.split(key, 3)

    N, Cin, H, W = 2, 4, 16, 16
    Cout, ksize, stride = 8, 3, 1

    x = jax.random.normal(k_x, (N, Cin, H, W), dtype=jnp.float32)

    fan_in = Cin * ksize * ksize
    bound = 1.0 / (fan_in ** 0.5)
    weight = jax.random.uniform(k_w, (Cout, Cin, ksize, ksize),
                                minval=-bound, maxval=bound, dtype=jnp.float32)
    bias = jax.random.uniform(k_b, (Cout,), minval=-bound, maxval=bound,
                              dtype=jnp.float32)
    gamma = jnp.ones((Cout,), dtype=jnp.float32)   # BatchNorm weight
    beta = jnp.zeros((Cout,), dtype=jnp.float32)   # BatchNorm bias

    f = jax.jit(conv_block, static_argnames=("filter_size", "stride"))
    out = jax.block_until_ready(
        f(x, weight, bias, gamma, beta, filter_size=ksize, stride=stride))

    assert out.shape == (N, Cout, H, W), out.shape
    assert bool(jnp.all(jnp.isfinite(out)))

    ref = _reference(x, weight, gamma, beta, ksize, stride)
    assert bool(jnp.allclose(out, ref, atol=5e-2, rtol=5e-2)), \
        float(jnp.max(jnp.abs(out - ref)))

    print("KERNEL_OK")
</pallas_src>

<mosaic_0001>
module attributes {stable_mosaic.version = 11 : i64} {
  func.func @bn_mish_kernel(%arg0: i32, %arg1: memref<512x128xf32, #tpu.memory_space<vmem>>, %arg2: memref<1x128xf32, #tpu.memory_space<vmem>>, %arg3: memref<1x128xf32, #tpu.memory_space<vmem>>, %arg4: memref<512x128xf32, #tpu.memory_space<vmem>>) attributes {dimension_semantics = [#tpu.dimension_semantics<parallel>], iteration_bounds = array<i64: 1>, scalar_prefetch = 0 : i64, scratch_operands = 0 : i64, tpu.core_type = #tpu.core_type<tc>, window_params = [{transform_indices = @transform_0, window_bounds = array<i64: 512, 128>}, {pipeline_mode = #tpu.pipeline_mode<synchronous>, transform_indices = @transform_1, window_bounds = array<i64: 1, 128>}, {pipeline_mode = #tpu.pipeline_mode<synchronous>, transform_indices = @transform_2, window_bounds = array<i64: 1, 128>}, {transform_indices = @transform_3, window_bounds = array<i64: 512, 128>}]} {
    %c0 = arith.constant 0 : index
    %c0_0 = arith.constant 0 : index
    %0 = vector.load %arg1[%c0, %c0_0] : memref<512x128xf32, #tpu.memory_space<vmem>>, vector<512x128xf32>
    %c0_1 = arith.constant 0 : index
    %c0_2 = arith.constant 0 : index
    %1 = vector.load %arg2[%c0_1, %c0_2] : memref<1x128xf32, #tpu.memory_space<vmem>>, vector<1x128xf32>
    %2 = vector.broadcast %1 : vector<1x128xf32> to vector<512x128xf32>
    %3 = arith.mulf %0, %2 : vector<512x128xf32>
    %c0_3 = arith.constant 0 : index
    %c0_4 = arith.constant 0 : index
    %4 = vector.load %arg3[%c0_3, %c0_4] : memref<1x128xf32, #tpu.memory_space<vmem>>, vector<1x128xf32>
    %5 = vector.broadcast %4 : vector<1x128xf32> to vector<512x128xf32>
    %6 = arith.addf %3, %5 : vector<512x128xf32>
    %cst = arith.constant 2.000000e+01 : f32
    %7 = vector.broadcast %cst : f32 to vector<512x128xf32>
    %8 = arith.minimumf %6, %7 : vector<512x128xf32>
    %9 = math.exp %8 : vector<512x128xf32>
    %cst_5 = arith.constant 2.000000e+00 : f32
    %10 = vector.broadcast %cst_5 : f32 to vector<512x128xf32>
    %11 = arith.addf %9, %10 : vector<512x128xf32>
    %12 = arith.mulf %9, %11 : vector<512x128xf32>
    %cst_6 = arith.constant 2.000000e+00 : f32
    %13 = vector.broadcast %cst_6 : f32 to vector<512x128xf32>
    %14 = arith.addf %12, %13 : vector<512x128xf32>
    %15 = tpu.reciprocal %14 {approx = true} : vector<512x128xf32> -> vector<512x128xf32>
    %16 = arith.mulf %12, %15 : vector<512x128xf32>
    %cst_7 = arith.constant 2.000000e+01 : f32
    %17 = vector.broadcast %cst_7 : f32 to vector<512x128xf32>
    %18 = arith.cmpf ogt, %6, %17 : vector<512x128xf32>
    %19 = arith.mulf %6, %16 : vector<512x128xf32>
    %20 = arith.select %18, %6, %19 : vector<512x128xi1>, vector<512x128xf32>
    %c0_8 = arith.constant 0 : index
    %c0_9 = arith.constant 0 : index
    %21 = vector.load %arg4[%c0_8, %c0_9] : memref<512x128xf32, #tpu.memory_space<vmem>>, vector<512x128xf32>
    tpu.vector_store %arg4[%c0_8, %c0_9], %20 {strides = array<i32>} : memref<512x128xf32, #tpu.memory_space<vmem>>, vector<512x128xf32>,
    return
  }
  func.func @transform_0(%arg0: i32) -> (i32, i32) {
    %c0_i32 = arith.constant 0 : i32
    %c0_i32_0 = arith.constant 0 : i32
    return %arg0, %c0_i32 : i32, i32
  }
  func.func @transform_1(%arg0: i32) -> (i32, i32) {
    %c0_i32 = arith.constant 0 : i32
    %c0_i32_0 = arith.constant 0 : i32
    %c0_i32_1 = arith.constant 0 : i32
    return %c0_i32, %c0_i32_0 : i32, i32
  }
  func.func @transform_2(%arg0: i32) -> (i32, i32) {
    %c0_i32 = arith.constant 0 : i32
    %c0_i32_0 = arith.constant 0 : i32
    %c0_i32_1 = arith.constant 0 : i32
    return %c0_i32, %c0_i32_0 : i32, i32
  }
  func.func @transform_3(%arg0: i32) -> (i32, i32) {
    %c0_i32 = arith.constant 0 : i32
    %c0_i32_0 = arith.constant 0 : i32
    return %arg0, %c0_i32 : i32, i32
  }
}

module attributes {stable_mosaic.version = 11 : i64} {
  func.func @conv_stats_kernel(%arg0: i32, %arg1: i32, %arg2: memref<1x18x18x4xbf16, #tpu.memory_space<vmem>>, %arg3: memref<9x4x128xbf16, #tpu.memory_space<vmem>>, %arg4: memref<1x16x16x128xf32, #tpu.memory_space<vmem>>, %arg5: memref<1x1x2x128xf32, #tpu.memory_space<vmem>>) attributes {dimension_semantics = [#tpu.dimension_semantics<parallel>, #tpu.dimension_semantics<parallel>], iteration_bounds = array<i64: 2, 1>, scalar_prefetch = 0 : i64, scratch_operands = 0 : i64, tpu.core_type = #tpu.core_type<tc>, window_params = [{transform_indices = @transform_0, window_bounds = array<i64: 1, 18, 18, 4>}, {pipeline_mode = #tpu.pipeline_mode<synchronous>, transform_indices = @transform_1, window_bounds = array<i64: 9, 4, 128>}, {transform_indices = @transform_2, window_bounds = array<i64: 1, 16, 16, 128>}, {transform_indices = @transform_3, window_bounds = array<i64: 1, 1, 2, 128>}]} {
    %c16_i32 = arith.constant 16 : i32
    %0 = arith.muli %arg1, %c16_i32 : i32
    %1 = tpu.assume_multiple %0, 16 : i32
    %cst = arith.constant 0.000000e+00 : f32
    %2 = vector.broadcast %cst : f32 to vector<16x16x128xf32>
    %c0 = arith.constant 0 : index
    %c0_0 = arith.constant 0 : index
    %c0_1 = arith.constant 0 : index
    %c0_2 = arith.constant 0 : index
    %3 = vector.load %arg4[%c0, %c0_0, %c0_1, %c0_2] : memref<1x16x16x128xf32, #tpu.memory_space<vmem>>, vector<1x16x16x128xf32>
    %4 = vector.shape_cast %3 : vector<1x16x16x128xf32> to vector<16x16x128xf32>
    %5 = vector.shape_cast %2 : vector<16x16x128xf32> to vector<1x16x16x128xf32>
    tpu.vector_store %arg4[%c0, %c0_0, %c0_1, %c0_2], %5 {strides = array<i32>} : memref<1x16x16x128xf32, #tpu.memory_space<vmem>>, vector<1x16x16x128xf32>,
    %c0_i32 = arith.constant 0 : i32
    %6 = arith.addi %1, %c0_i32 : i32
    %c0_3 = arith.constant 0 : index
    %7 = arith.index_cast %6 : i32 to index
    %c0_4 = arith.constant 0 : index
    %c0_5 = arith.constant 0 : index
    %8 = vector.load %arg2[%c0_3, %7, %c0_4, %c0_5] : memref<1x18x18x4xbf16, #tpu.memory_space<vmem>>, vector<1x16x18x4xbf16>
    %9 = vector.shape_cast %8 : vector<1x16x18x4xbf16> to vector<16x18x4xbf16>
    %10 = vector.extract_strided_slice %9 {offsets = [0, 0, 0], sizes = [16, 16, 4], strides = [1, 1, 1]} : vector<16x18x4xbf16> to vector<16x16x4xbf16>
    %c0_6 = arith.constant 0 : index
    %c0_7 = arith.constant 0 : index
    %c0_8 = arith.constant 0 : index
    %11 = vector.load %arg3[%c0_6, %c0_7, %c0_8] : memref<9x4x128xbf16, #tpu.memory_space<vmem>>, vector<1x4x128xbf16>
    %12 = vector.shape_cast %11 : vector<1x4x128xbf16> to vector<4x128xbf16>
    %13 = vector.shape_cast %12 : vector<4x128xbf16> to vector<1x4x128xbf16>
    %14 = vector.broadcast %13 : vector<1x4x128xbf16> to vector<16x4x128xbf16>
    %c0_9 = arith.constant 0 : index
    %c0_10 = arith.constant 0 : index
    %c0_11 = arith.constant 0 : index
    %c0_12 = arith.constant 0 : index
    %15 = vector.load %arg4[%c0_9, %c0_10, %c0_11, %c0_12] : memref<1x16x16x128xf32, #tpu.memory_space<vmem>>, vector<1x16x16x128xf32>
    %16 = vector.shape_cast %15 : vector<1x16x16x128xf32> to vector<16x16x128xf32>
    %cst_13 = arith.constant dense<0.000000e+00> : vector<16x16x128xf32>
    %17 = tpu.matmul %10, %14, %cst_13 {dimension_numbers = #tpu.dot_dimension_numbers<[2], [1], [1], [2], [0, 0, 0, 1, 1, 2], [0], [0]>} : vector<16x16x4xbf16>, vector<16x4x128xbf16>, vector<16x16x128xf32> -> vector<16x16x128xf32>
    %18 = arith.addf %16, %17 : vector<16x16x128xf32>
    %c0_14 = arith.constant 0 : index
    %c0_15 = arith.constant 0 : index
    %c0_16 = arith.constant 0 : index
    %c0_17 = arith.constant 0 : index
    %19 = vector.load %arg4[%c0_14, %c0_15, %c0_16, %c0_17] : memref<1x16x16x128xf32, #tpu.memory_space<vmem>>, vector<1x16x16x128xf32>
    %20 = vector.shape_cast %19 : vector<1x16x16x128xf32> to vector<16x16x128xf32>
    %21 = vector.shape_cast %18 : vector<16x16x128xf32> to vector<1x16x16x128xf32>
    tpu.vector_store %arg4[%c0_14, %c0_15, %c0_16, %c0_17], %21 {strides = array<i32>} : memref<1x16x16x128xf32, #tpu.memory_space<vmem>>, vector<1x16x16x128xf32>,
    %22 = vector.extract_strided_slice %9 {offsets = [0, 1, 0], sizes = [16, 16, 4], strides = [1, 1, 1]} : vector<16x18x4xbf16> to vector<16x16x4xbf16>
    %c1 = arith.constant 1 : index
    %c0_18 = arith.constant 0 : index
    %c0_19 = arith.constant 0 : index
    %23 = vector.load %arg3[%c1, %c0_18, %c0_19] : memref<9x4x128xbf16, #tpu.memory_space<vmem>>, vector<1x4x128xbf16>
    %24 = vector.shape_cast %23 : vector<1x4x128xbf16> to vector<4x128xbf16>
    %25 = vector.shape_cast %24 : vector<4x128xbf16> to vector<1x4x128xbf16>
    %26 = vector.broadcast %25 : vector<1x4x128xbf16> to vector<16x4x128xbf16>
    %c0_20 = arith.constant 0 : index
    %c0_21 = arith.constant 0 : index
    %c0_22 = arith.constant 0 : index
    %c0_23 = arith.constant 0 : index
    %27 = vector.load %arg4[%c0_20, %c0_21, %c0_22, %c0_23] : memref<1x16x16x128xf32, #tpu.memory_space<vmem>>, vector<1x16x16x128xf32>
    %28 = vector.shape_cast %27 : vector<1x16x16x128xf32> to vector<16x16x128xf32>
    %cst_24 = arith.constant dense<0.000000e+00> : vector<16x16x128xf32>
    %29 = tpu.matmul %22, %26, %cst_24 {dimension_numbers = #tpu.dot_dimension_numbers<[2], [1], [1], [2], [0, 0, 0, 1, 1, 2], [0], [0]>} : vector<16x16x4xbf16>, vector<16x4x128xbf16>, vector<16x16x128xf32> -> vector<16x16x128xf32>
    %30 = arith.addf %28, %29 : vector<16x16x128xf32>
    %c0_25 = arith.constant 0 : index
    %c0_26 = arith.constant 0 : index
    %c0_27 = arith.constant 0 : index
    %c0_28 = arith.constant 0 : index
    %31 = vector.load %arg4[%c0_25, %c0_26, %c0_27, %c0_28] : memref<1x16x16x128xf32, #tpu.memory_space<vmem>>, vector<1x16x16x128xf32>
    %32 = vector.shape_cast %31 : vector<1x16x16x128xf32> to vector<16x16x128xf32>
    %33 = vector.shape_cast %30 : vector<16x16x128xf32> to vector<1x16x16x128xf32>
    tpu.vector_store %arg4[%c0_25, %c0_26, %c0_27, %c0_28], %33 {strides = array<i32>} : memref<1x16x16x128xf32, #tpu.memory_space<vmem>>, vector<1x16x16x128xf32>,
    %34 = vector.extract_strided_slice %9 {offsets = [0, 2, 0], sizes = [16, 16, 4], strides = [1, 1, 1]} : vector<16x18x4xbf16> to vector<16x16x4xbf16>
    %c2 = arith.constant 2 : index
    %c0_29 = arith.constant 0 : index
    %c0_30 = arith.constant 0 : index
    %35 = vector.load %arg3[%c2, %c0_29, %c0_30] : memref<9x4x128xbf16, #tpu.memory_space<vmem>>, vector<1x4x128xbf16>
    %36 = vector.shape_cast %35 : vector<1x4x128xbf16> to vector<4x128xbf16>
    %37 = vector.shape_cast %36 : vector<4x128xbf16> to vector<1x4x128xbf16>
    %38 = vector.broadcast %37 : vector<1x4x128xbf16> to vector<16x4x128xbf16>
    %c0_31 = arith.constant 0 : index
    %c0_32 = arith.constant 0 : index
    %c0_33 = arith.constant 0 : index
    %c0_34 = arith.constant 0 : index
    %39 = vector.load %arg4[%c0_31, %c0_32, %c0_33, %c0_34] : memref<1x16x16x128xf32, #tpu.memory_space<vmem>>, vector<1x16x16x128xf32>
    %40 = vector.shape_cast %39 : vector<1x16x16x128xf32> to vector<16x16x128xf32>
    %cst_35 = arith.constant dense<0.000000e+00> : vector<16x16x128xf32>
    %41 = tpu.matmul %34, %38, %cst_35 {dimension_numbers = #tpu.dot_dimension_numbers<[2], [1], [1], [2], [0, 0, 0, 1, 1, 2], [0], [0]>} : vector<16x16x4xbf16>, vector<16x4x128xbf16>, vector<16x16x128xf32> -> vector<16x16x128xf32>
    %42 = arith.addf %40, %41 : vector<16x16x128xf32>
    %c0_36 = arith.constant 0 : index
    %c0_37 = arith.constant 0 : index
    %c0_38 = arith.constant 0 : index
    %c0_39 = arith.constant 0 : index
    %43 = vector.load %arg4[%c0_36, %c0_37, %c0_38, %c0_39] : memref<1x16x16x128xf32, #tpu.memory_space<vmem>>, vector<1x16x16x128xf32>
    %44 = vector.shape_cast %43 : vector<1x16x16x128xf32> to vector<16x16x128xf32>
    %45 = vector.shape_cast %42 : vector<16x16x128xf32> to vector<1x16x16x128xf32>
    tpu.vector_store %arg4[%c0_36, %c0_37, %c0_38, %c0_39], %45 {strides = array<i32>} : memref<1x16x16x128xf32, #tpu.memory_space<vmem>>, vector<1x16x16x128xf32>,
    %c1_i32 = arith.constant 1 : i32
    %46 = arith.addi %1, %c1_i32 : i32
    %c0_40 = arith.constant 0 : index
    %47 = arith.index_cast %46 : i32 to index
    %c0_41 = arith.constant 0 : index
    %c0_42 = arith.constant 0 : index
    %48 = vector.load %arg2[%c0_40, %47, %c0_41, %c0_42] : memref<1x18x18x4xbf16, #tpu.memory_space<vmem>>, vector<1x16x18x4xbf16>
    %49 = vector.shape_cast %48 : vector<1x16x18x4xbf16> to vector<16x18x4xbf16>
    %50 = vector.extract_strided_slice %49 {offsets = [0, 0, 0], sizes = [16, 16, 4], strides = [1, 1, 1]} : vector<16x18x4xbf16> to vector<16x16x4xbf16>
    %c3 = arith.constant 3 : index
    %c0_43 = arith.constant 0 : index
    %c0_44 = arith.constant 0 : index
    %51 = vector.load %arg3[%c3, %c0_43, %c0_44] : memref<9x4x128xbf16, #tpu.memory_space<vmem>>, vector<1x4x128xbf16>
    %52 = vector.shape_cast %51 : vector<1x4x128xbf16> to vector<4x128xbf16>
    %53 = vector.shape_cast %52 : vector<4x128xbf16> to vector<1x4x128xbf16>
    %54 = vector.broadcast %53 : vector<1x4x128xbf16> to vector<16x4x128xbf16>
    %c0_45 = arith.constant 0 : index
    %c0_46 = arith.constant 0 : index
    %c0_47 = arith.constant 0 : index
    %c0_48 = arith.constant 0 : index
    %55 = vector.load %arg4[%c0_45, %c0_46, %c0_47, %c0_48] : memref<1x16x16x128xf32, #tpu.memory_space<vmem>>, vector<1x16x16x128xf32>
    %56 = vector.shape_cast %55 : vector<1x16x16x128xf32> to vector<16x16x128xf32>
    %cst_49 = arith.constant dense<0.000000e+00> : vector<16x16x128xf32>
    %57 = tpu.matmul %50, %54, %cst_49 {dimension_numbers = #tpu.dot_dimension_numbers<[2], [1], [1], [2], [0, 0, 0, 1, 1, 2], [0], [0]>} : vector<16x16x4xbf16>, vector<16x4x128xbf16>, vector<16x16x128xf32> -> vector<16x16x128xf32>
    %58 = arith.addf %56, %57 : vector<16x16x128xf32>
    %c0_50 = arith.constant 0 : index
    %c0_51 = arith.constant 0 : index
    %c0_52 = arith.constant 0 : index
    %c0_53 = arith.constant 0 : index
    %59 = vector.load %arg4[%c0_50, %c0_51, %c0_52, %c0_53] : memref<1x16x16x128xf32, #tpu.memory_space<vmem>>, vector<1x16x16x128xf32>
    %60 = vector.shape_cast %59 : vector<1x16x16x128xf32> to vector<16x16x128xf32>
    %61 = vector.shape_cast %58 : vector<16x16x128xf32> to vector<1x16x16x128xf32>
    tpu.vector_store %arg4[%c0_50, %c0_51, %c0_52, %c0_53], %61 {strides = array<i32>} : memref<1x16x16x128xf32, #tpu.memory_space<vmem>>, vector<1x16x16x128xf32>,
    %62 = vector.extract_strided_slice %49 {offsets = [0, 1, 0], sizes = [16, 16, 4], strides = [1, 1, 1]} : vector<16x18x4xbf16> to vector<16x16x4xbf16>
    %c4 = arith.constant 4 : index
    %c0_54 = arith.constant 0 : index
    %c0_55 = arith.constant 0 : index
    %63 = vector.load %arg3[%c4, %c0_54, %c0_55] : memref<9x4x128xbf16, #tpu.memory_space<vmem>>, vector<1x4x128xbf16>
    %64 = vector.shape_cast %63 : vector<1x4x128xbf16> to vector<4x128xbf16>
    %65 = vector.shape_cast %64 : vector<4x128xbf16> to vector<1x4x128xbf16>
    %66 = vector.broadcast %65 : vector<1x4x128xbf16> to vector<16x4x128xbf16>
    %c0_56 = arith.constant 0 : index
    %c0_57 = arith.constant 0 : index
    %c0_58 = arith.constant 0 : index
    %c0_59 = arith.constant 0 : index
    %67 = vector.load %arg4[%c0_56, %c0_57, %c0_58, %c0_59] : memref<1x16x16x128xf32, #tpu.memory_space<vmem>>, vector<1x16x16x128xf32>
    %68 = vector.shape_cast %67 : vector<1x16x16x128xf32> to vector<16x16x128xf32>
    %cst_60 = arith.constant dense<0.000000e+00> : vector<16x16x128xf32>
    %69 = tpu.matmul %62, %66, %cst_60 {dimension_numbers = #tpu.dot_dimension_numbers<[2], [1], [1], [2], [0, 0, 0, 1, 1, 2], [0], [0]>} : vector<16x16x4xbf16>, vector<16x4x128xbf16>, vector<16x16x128xf32> -> vector<16x16x128xf32>
    %70 = arith.addf %68, %69 : vector<16x16x128xf32>
    %c0_61 = arith.constant 0 : index
    %c0_62 = arith.constant 0 : index
    %c0_63 = arith.constant 0 : index
    %c0_64 = arith.constant 0 : index
    %71 = vector.load %arg4[%c0_61, %c0_62, %c0_63, %c0_64] : memref<1x16x16x128xf32, #tpu.memory_space<vmem>>, vector<1x16x16x128xf32>
    %72 = vector.shape_cast %71 : vector<1x16x16x128xf32> to vector<16x16x128xf32>
    %73 = vector.shape_cast %70 : vector<16x16x128xf32> to vector<1x16x16x128xf32>
    tpu.vector_store %arg4[%c0_61, %c0_62, %c0_63, %c0_64], %73 {strides = array<i32>} : memref<1x16x16x128xf32, #tpu.memory_space<vmem>>, vector<1x16x16x128xf32>,
    %74 = vector.extract_strided_slice %49 {offsets = [0, 2, 0], sizes = [16, 16, 4], strides = [1, 1, 1]} : vector<16x18x4xbf16> to vector<16x16x4xbf16>
    %c5 = arith.constant 5 : index
    %c0_65 = arith.constant 0 : index
    %c0_66 = arith.constant 0 : index
    %75 = vector.load %arg3[%c5, %c0_65, %c0_66] : memref<9x4x128xbf16, #tpu.memory_space<vmem>>, vector<1x4x128xbf16>
    %76 = vector.shape_cast %75 : vector<1x4x128xbf16> to vector<4x128xbf16>
    %77 = vector.shape_cast %76 : vector<4x128xbf16> to vector<1x4x128xbf16>
    %78 = vector.broadcast %77 : vector<1x4x128xbf16> to vector<16x4x128xbf16>
    %c0_67 = arith.constant 0 : index
    %c0_68 = arith.constant 0 : index
    %c0_69 = arith.constant 0 : index
    %c0_70 = arith.constant 0 : index
    %79 = vector.load %arg4[%c0_67, %c0_68, %c0_69, %c0_70] : memref<1x16x16x128xf32, #tpu.memory_space<vmem>>, vector<1x16x16x128xf32>
    %80 = vector.shape_cast %79 : vector<1x16x16x128xf32> to vector<16x16x128xf32>
    %cst_71 = arith.constant dense<0.000000e+00> : vector<16x16x128xf32>
    %81 = tpu.matmul %74, %78, %cst_71 {dimension_numbers = #tpu.dot_dimension_numbers<[2], [1], [1], [2], [0, 0, 0, 1, 1, 2], [0], [0]>} : vector<16x16x4xbf16>, vector<16x4x128xbf16>, vector<16x16x128xf32> -> vector<16x16x128xf32>
    %82 = arith.addf %80, %81 : vector<16x16x128xf32>
    %c0_72 = arith.constant 0 : index
    %c0_73 = arith.constant 0 : index
    %c0_74 = arith.constant 0 : index
    %c0_75 = arith.constant 0 : index
    %83 = vector.load %arg4[%c0_72, %c0_73, %c0_74, %c0_75] : memref<1x16x16x128xf32, #tpu.memory_space<vmem>>, vector<1x16x16x128xf32>
    %84 = vector.shape_cast %83 : vector<1x16x16x128xf32> to vector<16x16x128xf32>
    %85 = vector.shape_cast %82 : vector<16x16x128xf32> to vector<1x16x16x128xf32>
    tpu.vector_store %arg4[%c0_72, %c0_73, %c0_74, %c0_75], %85 {strides = array<i32>} : memref<1x16x16x128xf32, #tpu.memory_space<vmem>>, vector<1x16x16x128xf32>,
    %c2_i32 = arith.constant 2 : i32
    %86 = arith.addi %1, %c2_i32 : i32
    %c0_76 = arith.constant 0 : index
    %87 = arith.index_cast %86 : i32 to index
    %c0_77 = arith.constant 0 : index
    %c0_78 = arith.constant 0 : index
    %88 = vector.load %arg2[%c0_76, %87, %c0_77, %c0_78] : memref<1x18x18x4xbf16, #tpu.memory_space<vmem>>, vector<1x16x18x4xbf16>
    %89 = vector.shape_cast %88 : vector<1x16x18x4xbf16> to vector<16x18x4xbf16>
    %90 = vector.extract_strided_slice %89 {offsets = [0, 0, 0], sizes = [16, 16, 4], strides = [1, 1, 1]} : vector<16x18x4xbf16> to vector<16x16x4xbf16>
    %c6 = arith.constant 6 : index
    %c0_79 = arith.constant 0 : index
    %c0_80 = arith.constant 0 : index
    %91 = vector.load %arg3[%c6, %c0_79, %c0_80] : memref<9x4x128xbf16, #tpu.memory_space<vmem>>, vector<1x4x128xbf16>
    %92 = vector.shape_cast %91 : vector<1x4x128xbf16> to vector<4x128xbf16>
    %93 = vector.shape_cast %92 : vector<4x128xbf16> to vector<1x4x128xbf16>
    %94 = vector.broadcast %93 : vector<1x4x128xbf16> to vector<16x4x128xbf16>
    %c0_81 = arith.constant 0 : index
    %c0_82 = arith.constant 0 : index
    %c0_83 = arith.constant 0 : index
    %c0_84 = arith.constant 0 : index
    %95 = vector.load %arg4[%c0_81, %c0_82, %c0_83, %c0_84] : memref<1x16x16x128xf32, #tpu.memory_space<vmem>>, vector<1x16x16x128xf32>
    %96 = vector.shape_cast %95 : vector<1x16x16x128xf32> to vector<16x16x128xf32>
    %cst_85 = arith.constant dense<0.000000e+00> : vector<16x16x128xf32>
    %97 = tpu.matmul %90, %94, %cst_85 {dimension_numbers = #tpu.dot_dimension_numbers<[2], [1], [1], [2], [0, 0, 0, 1, 1, 2], [0], [0]>} : vector<16x16x4xbf16>, vector<16x4x128xbf16>, vector<16x16x128xf32> -> vector<16x16x128xf32>
    %98 = arith.addf %96, %97 : vector<16x16x128xf32>
    %c0_86 = arith.constant 0 : index
    %c0_87 = arith.constant 0 : index
    %c0_88 = arith.constant 0 : index
    %c0_89 = arith.constant 0 : index
    %99 = vector.load %arg4[%c0_86, %c0_87, %c0_88, %c0_89] : memref<1x16x16x128xf32, #tpu.memory_space<vmem>>, vector<1x16x16x128xf32>
    %100 = vector.shape_cast %99 : vector<1x16x16x128xf32> to vector<16x16x128xf32>
    %101 = vector.shape_cast %98 : vector<16x16x128xf32> to vector<1x16x16x128xf32>
    tpu.vector_store %arg4[%c0_86, %c0_87, %c0_88, %c0_89], %101 {strides = array<i32>} : memref<1x16x16x128xf32, #tpu.memory_space<vmem>>, vector<1x16x16x128xf32>,
    %102 = vector.extract_strided_slice %89 {offsets = [0, 1, 0], sizes = [16, 16, 4], strides = [1, 1, 1]} : vector<16x18x4xbf16> to vector<16x16x4xbf16>
    %c7 = arith.constant 7 : index
    %c0_90 = arith.constant 0 : index
    %c0_91 = arith.constant 0 : index
    %103 = vector.load %arg3[%c7, %c0_90, %c0_91] : memref<9x4x128xbf16, #tpu.memory_space<vmem>>, vector<1x4x128xbf16>
    %104 = vector.shape_cast %103 : vector<1x4x128xbf16> to vector<4x128xbf16>
    %105 = vector.shape_cast %104 : vector<4x128xbf16> to vector<1x4x128xbf16>
    %106 = vector.broadcast %105 : vector<1x4x128xbf16> to vector<16x4x128xbf16>
    %c0_92 = arith.constant 0 : index
    %c0_93 = arith.constant 0 : index
    %c0_94 = arith.constant 0 : index
    %c0_95 = arith.constant 0 : index
    %107 = vector.load %arg4[%c0_92, %c0_93, %c0_94, %c0_95] : memref<1x16x16x128xf32, #tpu.memory_space<vmem>>, vector<1x16x16x128xf32>
    %108 = vector.shape_cast %107 : vector<1x16x16x128xf32> to vector<16x16x128xf32>
    %cst_96 = arith.constant dense<0.000000e+00> : vector<16x16x128xf32>
    %109 = tpu.matmul %102, %106, %cst_96 {dimension_numbers = #tpu.dot_dimension_numbers<[2], [1], [1], [2], [0, 0, 0, 1, 1, 2], [0], [0]>} : vector<16x16x4xbf16>, vector<16x4x128xbf16>, vector<16x16x128xf32> -> vector<16x16x128xf32>
    %110 = arith.addf %108, %109 : vector<16x16x128xf32>
    %c0_97 = arith.constant 0 : index
    %c0_98 = arith.constant 0 : index
    %c0_99 = arith.constant 0 : index
    %c0_100 = arith.constant 0 : index
    %111 = vector.load %arg4[%c0_97, %c0_98, %c0_99, %c0_100] : memref<1x16x16x128xf32, #tpu.memory_space<vmem>>, vector<1x16x16x128xf32>
    %112 = vector.shape_cast %111 : vector<1x16x16x128xf32> to vector<16x16x128xf32>
    %113 = vector.shape_cast %110 : vector<16x16x128xf32> to vector<1x16x16x128xf32>
    tpu.vector_store %arg4[%c0_97, %c0_98, %c0_99, %c0_100], %113 {strides = array<i32>} : memref<1x16x16x128xf32, #tpu.memory_space<vmem>>, vector<1x16x16x128xf32>,
    %114 = vector.extract_strided_slice %89 {offsets = [0, 2, 0], sizes = [16, 16, 4], strides = [1, 1, 1]} : vector<16x18x4xbf16> to vector<16x16x4xbf16>
    %c8 = arith.constant 8 : index
    %c0_101 = arith.constant 0 : index
    %c0_102 = arith.constant 0 : index
    %115 = vector.load %arg3[%c8, %c0_101, %c0_102] : memref<9x4x128xbf16, #tpu.memory_space<vmem>>, vector<1x4x128xbf16>
    %116 = vector.shape_cast %115 : vector<1x4x128xbf16> to vector<4x128xbf16>
    %117 = vector.shape_cast %116 : vector<4x128xbf16> to vector<1x4x128xbf16>
    %118 = vector.broadcast %117 : vector<1x4x128xbf16> to vector<16x4x128xbf16>
    %c0_103 = arith.constant 0 : index
    %c0_104 = arith.constant 0 : index
    %c0_105 = arith.constant 0 : index
    %c0_106 = arith.constant 0 : index
    %119 = vector.load %arg4[%c0_103, %c0_104, %c0_105, %c0_106] : memref<1x16x16x128xf32, #tpu.memory_space<vmem>>, vector<1x16x16x128xf32>
    %120 = vector.shape_cast %119 : vector<1x16x16x128xf32> to vector<16x16x128xf32>
    %cst_107 = arith.constant dense<0.000000e+00> : vector<16x16x128xf32>
    %121 = tpu.matmul %114, %118, %cst_107 {dimension_numbers = #tpu.dot_dimension_numbers<[2], [1], [1], [2], [0, 0, 0, 1, 1, 2], [0], [0]>} : vector<16x16x4xbf16>, vector<16x4x128xbf16>, vector<16x16x128xf32> -> vector<16x16x128xf32>
    %122 = arith.addf %120, %121 : vector<16x16x128xf32>
    %c0_108 = arith.constant 0 : index
    %c0_109 = arith.constant 0 : index
    %c0_110 = arith.constant 0 : index
    %c0_111 = arith.constant 0 : index
    %123 = vector.load %arg4[%c0_108, %c0_109, %c0_110, %c0_111] : memref<1x16x16x128xf32, #tpu.memory_space<vmem>>, vector<1x16x16x128xf32>
    %124 = vector.shape_cast %123 : vector<1x16x16x128xf32> to vector<16x16x128xf32>
    %125 = vector.shape_cast %122 : vector<16x16x128xf32> to vector<1x16x16x128xf32>
    tpu.vector_store %arg4[%c0_108, %c0_109, %c0_110, %c0_111], %125 {strides = array<i32>} : memref<1x16x16x128xf32, #tpu.memory_space<vmem>>, vector<1x16x16x128xf32>,
    %c0_112 = arith.constant 0 : index
    %c0_113 = arith.constant 0 : index
    %c0_114 = arith.constant 0 : index
    %c0_115 = arith.constant 0 : index
    %126 = vector.load %arg4[%c0_112, %c0_113, %c0_114, %c0_115] : memref<1x16x16x128xf32, #tpu.memory_space<vmem>>, vector<1x16x16x128xf32>
    %127 = vector.shape_cast %126 : vector<1x16x16x128xf32> to vector<16x16x128xf32>
    %cst_116 = arith.constant dense<0.000000e+00> : vector<16x128xf32>
    %128 = vector.multi_reduction <add>, %127, %cst_116 [0] : vector<16x16x128xf32> to vector<16x128xf32>
    %cst_117 = arith.constant dense<0.000000e+00> : vector<128xf32>
    %129 = vector.multi_reduction <add>, %128, %cst_117 [0] : vector<16x128xf32> to vector<128xf32>
    %130 = vector.shape_cast %129 : vector<128xf32> to vector<1x128xf32>
    %131 = arith.mulf %127, %127 : vector<16x16x128xf32>
    %cst_118 = arith.constant dense<0.000000e+00> : vector<16x128xf32>
    %132 = vector.multi_reduction <add>, %131, %cst_118 [0] : vector<16x16x128xf32> to vector<16x128xf32>
    %cst_119 = arith.constant dense<0.000000e+00> : vector<128xf32>
    %133 = vector.multi_reduction <add>, %132, %cst_119 [0] : vector<16x128xf32> to vector<128xf32>
    %134 = vector.shape_cast %133 : vector<128xf32> to vector<1x128xf32>
    %135 = tpu.concatenate %130, %134 in 0 : vector<1x128xf32>, vector<1x128xf32> -> vector<2x128xf32>
    %c0_120 = arith.constant 0 : index
    %c0_121 = arith.constant 0 : index
    %c0_122 = arith.constant 0 : index
    %c0_123 = arith.constant 0 : index
    %136 = vector.load %arg5[%c0_120, %c0_121, %c0_122, %c0_123] : memref<1x1x2x128xf32, #tpu.memory_space<vmem>>, vector<1x1x2x128xf32>
    %137 = vector.shape_cast %136 : vector<1x1x2x128xf32> to vector<2x128xf32>
    %138 = vector.shape_cast %135 : vector<2x128xf32> to vector<1x1x2x128xf32>
    tpu.vector_store %arg5[%c0_120, %c0_121, %c0_122, %c0_123], %138 {strides = array<i32>} : memref<1x1x2x128xf32, #tpu.memory_space<vmem>>, vector<1x1x2x128xf32>,
    return
  }
  func.func @transform_0(%arg0: i32, %arg1: i32) -> (i32, i32, i32, i32) {
    %c0_i32 = arith.constant 0 : i32
    %c0_i32_0 = arith.constant 0 : i32
    %c0_i32_1 = arith.constant 0 : i32
    %c0_i32_2 = arith.constant 0 : i32
    return %arg0, %c0_i32, %c0_i32_0, %c0_i32_1 : i32, i32, i32, i32
  }
  func.func @transform_1(%arg0: i32, %arg1: i32) -> (i32, i32, i32) {
    %c0_i32 = arith.constant 0 : i32
    %c0_i32_0 = arith.constant 0 : i32
    %c0_i32_1 = arith.constant 0 : i32
    %c0_i32_2 = arith.constant 0 : i32
    return %c0_i32, %c0_i32_0, %c0_i32_1 : i32, i32, i32
  }
  func.func @transform_2(%arg0: i32, %arg1: i32) -> (i32, i32, i32, i32) {
    %c0_i32 = arith.constant 0 : i32
    %c0_i32_0 = arith.constant 0 : i32
    %c0_i32_1 = arith.constant 0 : i32
    return %arg0, %arg1, %c0_i32, %c0_i32_0 : i32, i32, i32, i32
  }
  func.func @transform_3(%arg0: i32, %arg1: i32) -> (i32, i32, i32, i32) {
    %c0_i32 = arith.constant 0 : i32
    %c0_i32_0 = arith.constant 0 : i32
    %c0_i32_1 = arith.constant 0 : i32
    return %arg0, %arg1, %c0_i32, %c0_i32_0 : i32, i32, i32, i32
  }
}

</mosaic_0001>

<llo_original>
// kernel: conv_block.3
$region0: #{conv_block.3}
  #allocation0 [shape = 'u32[]', space=smem, size = 0x4, offset = 0x4, fixed_abs, tag = 'smem constant byte address 0x4 - core index']
  #allocation1 [shape = 'u32[72,128]{1,0:T(1,128)}', space=vmem, size = 0x9000, scoped, tag = 'internal scratch']
  %s0 = inlined_call_operand.vmem [shape: f32[512,128], index: 0, kind: input, shape index: {}]
  %s1 = inlined_call_operand.vmem [shape: f32[1,128], index: 1, kind: input, shape index: {}]
  %s2 = inlined_call_operand.vmem [shape: f32[1,128], index: 2, kind: input, shape index: {}]
  %s3 = inlined_call_operand.vmem [shape: f32[512,128], index: 3, kind: output, shape index: {}]
  %s4 = sld [smem:[#allocation0]]
  $region22: #{conv_block.3} parent=0
    _
  %s6 = ssub.s32 1, %s4
  %s7 = scalar_select 0, %s6, %s4
  // Predicated region
  $region2: #{conv_block.3} parent=0 // pred_check
    _
  $region3: #{conv_block.3} parent=0 // pred_check_branch
    %9 = sbr.rel (0) target = $region5
  $region4: #{conv_block.3} parent=0 // pred_region
    _
  $region5: #{conv_block.3} parent=0 // pred_fallthru
    _
  // Predicated region
  $region6: #{conv_block.3} parent=0 // pred_check
    _
  $region7: #{conv_block.3} parent=0 // pred_check_branch
    %11 = sbr.rel (0) target = $region9
  $region8: #{conv_block.3} parent=0 // pred_region
    _
  $region9: #{conv_block.3} parent=0 // pred_fallthru
    _
  // Predicated region
  $region10: #{conv_block.3} parent=0 // pred_check
    _
  $region11: #{conv_block.3} parent=0 // pred_check_branch
    %13 = sbr.rel (0) target = $region13
  $region12: #{conv_block.3} parent=0 // pred_region
    _
  $region13: #{conv_block.3} parent=0 // pred_fallthru
    _
  %v14 = vld [vmem:[%s0] sm:$0xff]
  %v15 = vld [vmem:[%s0 + $0x8] sm:$0xff]
  %v16 = vld [vmem:[%s0 + $0x10] sm:$0xff]
  %v17 = vld [vmem:[%s0 + $0x18] sm:$0xff]
  %v18 = vld [vmem:[%s0 + $0x20] sm:$0xff]
  %v19 = vld [vmem:[%s0 + $0x28] sm:$0xff]
  %v20 = vld [vmem:[%s0 + $0x30] sm:$0xff]
  %v21 = vld [vmem:[%s0 + $0x38] sm:$0xff]
  %v22 = vld [vmem:[%s0 + $0x40] sm:$0xff]
  %v23 = vld [vmem:[%s0 + $0x48] sm:$0xff]
  %v24 = vld [vmem:[%s0 + $0x50] sm:$0xff]
  %v25 = vld [vmem:[%s0 + $0x58] sm:$0xff]
  %v26 = vld [vmem:[%s0 + $0x60] sm:$0xff]
  %v27 = vld [vmem:[%s0 + $0x68] sm:$0xff]
  %v28 = vld [vmem:[%s0 + $0x70] sm:$0xff]
  %v29 = vld [vmem:[%s0 + $0x78] sm:$0xff]
  %v30 = vld [vmem:[%s0 + $0x80] sm:$0xff]
  %v31 = vld [vmem:[%s0 + $0x88] sm:$0xff]
  %v32 = vld [vmem:[%s0 + $0x90] sm:$0xff]
  %v33 = vld [vmem:[%s0 + $0x98] sm:$0xff]
  %v34 = vld [vmem:[%s0 + $0xa0] sm:$0xff]
  %v35 = vld [vmem:[%s0 + $0xa8] sm:$0xff]
  %v36 = vld [vmem:[%s0 + $0xb0] sm:$0xff]
  %v37 = vld [vmem:[%s0 + $0xb8] sm:$0xff]
  %v38 = vld [vmem:[%s0 + $0xc0] sm:$0xff]
  %v39 = vld [vmem:[%s0 + $0xc8] sm:$0xff]
  %v40 = vld [vmem:[%s0 + $0xd0] sm:$0xff]
  %v41 = vld [vmem:[%s0 + $0xd8] sm:$0xff]
  %v42 = vld [vmem:[%s0 + $0xe0] sm:$0xff]
  %v43 = vld [vmem:[%s0 + $0xe8] sm:$0xff]
  %v44 = vld [vmem:[%s0 + $0xf0] sm:$0xff]
  %v45 = vld [vmem:[%s0 + $0xf8] sm:$0xff]
  %v46 = vld [vmem:[%s0 + $0x100] sm:$0xff]
  %v47 = vld [vmem:[%s0 + $0x108] sm:$0xff]
  %v48 = vld [vmem:[%s0 + $0x110] sm:$0xff]
  %v49 = vld [vmem:[%s0 + $0x118] sm:$0xff]
  %v50 = vld [vmem:[%s0 + $0x120] sm:$0xff]
  %v51 = vld [vmem:[%s0 + $0x128] sm:$0xff]
  %v52 = vld [vmem:[%s0 + $0x130] sm:$0xff]
  %v53 = vld [vmem:[%s0 + $0x138] sm:$0xff]
  %v54 = vld [vmem:[%s0 + $0x140] sm:$0xff]
  %v55 = vld [vmem:[%s0 + $0x148] sm:$0xff]
  %v56 = vld [vmem:[%s0 + $0x150] sm:$0xff]
  %v57 = vld [vmem:[%s0 + $0x158] sm:$0xff]
  %v58 = vld [vmem:[%s0 + $0x160] sm:$0xff]
  %v59 = vld [vmem:[%s0 + $0x168] sm:$0xff]
  %v60 = vld [vmem:[%s0 + $0x170] sm:$0xff]
  %v61 = vld [vmem:[%s0 + $0x178] sm:$0xff]
  %v62 = vld [vmem:[%s0 + $0x180] sm:$0xff]
  %v63 = vld [vmem:[%s0 + $0x188] sm:$0xff]
  %v64 = vld [vmem:[%s0 + $0x190] sm:$0xff]
  %v65 = vld [vmem:[%s0 + $0x198] sm:$0xff]
  %v66 = vld [vmem:[%s0 + $0x1a0] sm:$0xff]
  %v67 = vld [vmem:[%s0 + $0x1a8] sm:$0xff]
  %v68 = vld [vmem:[%s0 + $0x1b0] sm:$0xff]
  %v69 = vld [vmem:[%s0 + $0x1b8] sm:$0xff]
  %v70 = vld [vmem:[%s0 + $0x1c0] sm:$0xff]
  %v71 = vld [vmem:[%s0 + $0x1c8] sm:$0xff]
  %v72 = vld [vmem:[%s0 + $0x1d0] sm:$0xff]
  %v73 = vld [vmem:[%s0 + $0x1d8] sm:$0xff]
  %v74 = vld [vmem:[%s0 + $0x1e0] sm:$0xff]
  %v75 = vld [vmem:[%s0 + $0x1e8] sm:$0xff]
  %v76 = vld [vmem:[%s0 + $0x1f0] sm:$0xff]
  %v77 = vld [vmem:[%s0 + $0x1f8] sm:$0xff]
  %v78 = vld [vmem:[%s1] sm:$0x1]
  %v80 = vperm.slane %v78, 0
  %v82 = vmul.f32 %v14, %v80
  %v83 = vmul.f32 %v15, %v80
  %v84 = vmul.f32 %v16, %v80
  %v85 = vmul.f32 %v17, %v80
  %v86 = vmul.f32 %v18, %v80
  %v87 = vmul.f32 %v19, %v80
  %v88 = vmul.f32 %v20, %v80
  %v89 = vmul.f32 %v21, %v80
  %v90 = vmul.f32 %v22, %v80
  %v91 = vmul.f32 %v23, %v80
  %v92 = vmul.f32 %v24, %v80
  %v93 = vmul.f32 %v25, %v80
  %v94 = vmul.f32 %v26, %v80
  %v95 = vmul.f32 %v27, %v80
  %v96 = vmul.f32 %v28, %v80
  %v97 = vmul.f32 %v29, %v80
  %v98 = vmul.f32 %v30, %v80
  %v99 = vmul.f32 %v31, %v80
  %v100 = vmul.f32 %v32, %v80
  %v101 = vmul.f32 %v33, %v80
  %v102 = vmul.f32 %v34, %v80
  %v103 = vmul.f32 %v35, %v80
  %v104 = vmul.f32 %v36, %v80
  %v105 = vmul.f32 %v37, %v80
  %v106 = vmul.f32 %v38, %v80
  %v107 = vmul.f32 %v39, %v80
  %v108 = vmul.f32 %v40, %v80
  %v109 = vmul.f32 %v41, %v80
  %v110 = vmul.f32 %v42, %v80
  %v111 = vmul.f32 %v43, %v80
  %v112 = vmul.f32 %v44, %v80
  %v113 = vmul.f32 %v45, %v80
  %v114 = vmul.f32 %v46, %v80
  %v115 = vmul.f32 %v47, %v80
  %v116 = vmul.f32 %v48, %v80
  %v117 = vmul.f32 %v49, %v80
  %v118 = vmul.f32 %v50, %v80
  %v119 = vmul.f32 %v51, %v80
  %v120 = vmul.f32 %v52, %v80
  %v121 = vmul.f32 %v53, %v80
  %v122 = vmul.f32 %v54, %v80
  %v123 = vmul.f32 %v55, %v80
  %v124 = vmul.f32 %v56, %v80
  %v125 = vmul.f32 %v57, %v80
  %v126 = vmul.f32 %v58, %v80
  %v127 = vmul.f32 %v59, %v80
  %v128 = vmul.f32 %v60, %v80
  %v129 = vmul.f32 %v61, %v80
  %v130 = vmul.f32 %v62, %v80
  %v131 = vmul.f32 %v63, %v80
  %v132 = vmul.f32 %v64, %v80
  %v133 = vmul.f32 %v65, %v80
  %v134 = vmul.f32 %v66, %v80
  %v135 = vmul.f32 %v67, %v80
  %v136 = vmul.f32 %v68, %v80
  %v137 = vmul.f32 %v69, %v80
  %v138 = vmul.f32 %v70, %v80
  %v139 = vmul.f32 %v71, %v80
  %v140 = vmul.f32 %v72, %v80
  %v141 = vmul.f32 %v73, %v80
  %v142 = vmul.f32 %v74, %v80
  %v143 = vmul.f32 %v75, %v80
  %v144 = vmul.f32 %v76, %v80
  %v145 = vmul.f32 %v77, %v80
  %v146 = vld [vmem:[%s2] sm:$0x1]
  %v148 = vperm.slane %v146, 0
  %v150 = vadd.f32 %v82, %v148
  %v151 = vadd.f32 %v83, %v148
  %v152 = vadd.f32 %v84, %v148
  %v153 = vadd.f32 %v85, %v148
  %v154 = vadd.f32 %v86, %v148
  %v155 = vadd.f32 %v87, %v148
  %v156 = vadd.f32 %v88, %v148
  %v157 = vadd.f32 %v89, %v148
  %v158 = vadd.f32 %v90, %v148
  %v159 = vadd.f32 %v91, %v148
  %v160 = vadd.f32 %v92, %v148
  %v161 = vadd.f32 %v93, %v148
  %v162 = vadd.f32 %v94, %v148
  %v163 = vadd.f32 %v95, %v148
  %v164 = vadd.f32 %v96, %v148
  %v165 = vadd.f32 %v97, %v148
  %v166 = vadd.f32 %v98, %v148
  %v167 = vadd.f32 %v99, %v148
  %v168 = vadd.f32 %v100, %v148
  %v169 = vadd.f32 %v101, %v148
  %v170 = vadd.f32 %v102, %v148
  %v171 = vadd.f32 %v103, %v148
  %v172 = vadd.f32 %v104, %v148
  %v173 = vadd.f32 %v105, %v148
  %v174 = vadd.f32 %v106, %v148
  %v175 = vadd.f32 %v107, %v148
  %v176 = vadd.f32 %v108, %v148
  %v177 = vadd.f32 %v109, %v148
  %v178 = vadd.f32 %v110, %v148
  %v179 = vadd.f32 %v111, %v148
  %v180 = vadd.f32 %v112, %v148
  %v181 = vadd.f32 %v113, %v148
  %v182 = vadd.f32 %v114, %v148
  %v183 = vadd.f32 %v115, %v148
  %v184 = vadd.f32 %v116, %v148
  %v185 = vadd.f32 %v117, %v148
  %v186 = vadd.f32 %v118, %v148
  %v187 = vadd.f32 %v119, %v148
  %v188 = vadd.f32 %v120, %v148
  %v189 = vadd.f32 %v121, %v148
  %v190 = vadd.f32 %v122, %v148
  %v191 = vadd.f32 %v123, %v148
  %v192 = vadd.f32 %v124, %v148
  %v193 = vadd.f32 %v125, %v148
  %v194 = vadd.f32 %v126, %v148
  %v195 = vadd.f32 %v127, %v148
  %v196 = vadd.f32 %v128, %v148
  %v197 = vadd.f32 %v129, %v148
  %v198 = vadd.f32 %v130, %v148
  %v199 = vadd.f32 %v131, %v148
  %v200 = vadd.f32 %v132, %v148
  %v201 = vadd.f32 %v133, %v148
  %v202 = vadd.f32 %v134, %v148
  %v203 = vadd.f32 %v135, %v148
  %v204 = vadd.f32 %v136, %v148
  %v205 = vadd.f32 %v137, %v148
  %v206 = vadd.f32 %v138, %v148
  %v207 = vadd.f32 %v139, %v148
  %v208 = vadd.f32 %v140, %v148
  %v209 = vadd.f32 %v141, %v148
  %v210 = vadd.f32 %v142, %v148
  %v211 = vadd.f32 %v143, %v148
  %v212 = vadd.f32 %v144, %v148
  %v213 = vadd.f32 %v145, %v148
  %v214 = vmin.f32 %v150, 20.0
  %v215 = vmin.f32 %v151, 20.0
  %v216 = vmin.f32 %v152, 20.0
  %v217 = vmin.f32 %v153, 20.0
  %v218 = vmin.f32 %v154, 20.0
  %v219 = vmin.f32 %v155, 20.0
  %v220 = vmin.f32 %v156, 20.0
  %v221 = vmin.f32 %v157, 20.0
  %v222 = vmin.f32 %v158, 20.0
  %v223 = vmin.f32 %v159, 20.0
  %v224 = vmin.f32 %v160, 20.0
  %v225 = vmin.f32 %v161, 20.0
  %v226 = vmin.f32 %v162, 20.0
  %v227 = vmin.f32 %v163, 20.0
  %v228 = vmin.f32 %v164, 20.0
  %v229 = vmin.f32 %v165, 20.0
  %v230 = vmin.f32 %v166, 20.0
  %v231 = vmin.f32 %v167, 20.0
  %v232 = vmin.f32 %v168, 20.0
  %v233 = vmin.f32 %v169, 20.0
  %v234 = vmin.f32 %v170, 20.0
  %v235 = vmin.f32 %v171, 20.0
  %v236 = vmin.f32 %v172, 20.0
  %v237 = vmin.f32 %v173, 20.0
  %v238 = vmin.f32 %v174, 20.0
  %v239 = vmin.f32 %v175, 20.0
  %v240 = vmin.f32 %v176, 20.0
  %v241 = vmin.f32 %v177, 20.0
  %v242 = vmin.f32 %v178, 20.0
  %v243 = vmin.f32 %v179, 20.0
  %v244 = vmin.f32 %v180, 20.0
  %v245 = vmin.f32 %v181, 20.0
  %v246 = vmin.f32 %v182, 20.0
  %v247 = vmin.f32 %v183, 20.0
  %v248 = vmin.f32 %v184, 20.0
  %v249 = vmin.f32 %v185, 20.0
  %v250 = vmin.f32 %v186, 20.0
  %v251 = vmin.f32 %v187, 20.0
  %v252 = vmin.f32 %v188, 20.0
  %v253 = vmin.f32 %v189, 20.0
  %v254 = vmin.f32 %v190, 20.0
  %v255 = vmin.f32 %v191, 20.0
  %v256 = vmin.f32 %v192, 20.0
  %v257 = vmin.f32 %v193, 20.0
  %v258 = vmin.f32 %v194, 20.0
  %v259 = vmin.f32 %v195, 20.0
  %v260 = vmin.f32 %v196, 20.0
  %v261 = vmin.f32 %v197, 20.0
  %v262 = vmin.f32 %v198, 20.0
  %v263 = vmin.f32 %v199, 20.0
  %v264 = vmin.f32 %v200, 20.0
  %v265 = vmin.f32 %v201, 20.0
  %v266 = vmin.f32 %v202, 20.0
  %v267 = vmin.f32 %v203, 20.0
  %v268 = vmin.f32 %v204, 20.0
  %v269 = vmin.f32 %v205, 20.0
  %v270 = vmin.f32 %v206, 20.0
  %v271 = vmin.f32 %v207, 20.0
  %v272 = vmin.f32 %v208, 20.0
  %v273 = vmin.f32 %v209, 20.0
  %v274 = vmin.f32 %v210, 20.0
  %v275 = vmin.f32 %v211, 20.0
  %v276 = vmin.f32 %v212, 20.0
  %v277 = vmin.f32 %v213, 20.0
  %v278 = vmul.f32 %v214, 1.442695
  %v279 = vpow.pop %v278
  %v280 = vmul.f32 %v215, 1.442695
  %v281 = vpow.pop %v280
  %v282 = vmul.f32 %v216, 1.442695
  %v283 = vpow.pop %v282
  %v284 = vmul.f32 %v217, 1.442695
  %v285 = vpow.pop %v284
  %v286 = vmul.f32 %v218, 1.442695
  %v287 = vpow.pop %v286
  %v288 = vmul.f32 %v219, 1.442695
  %v289 = vpow.pop %v288
  %v290 = vmul.f32 %v220, 1.442695
  %v291 = vpow.pop %v290
  %v292 = vmul.f32 %v221, 1.442695
  %v293 = vpow.pop %v292
  %v294 = vmul.f32 %v222, 1.442695
  %v295 = vpow.pop %v294
  %v296 = vmul.f32 %v223, 1.442695
  %v297 = vpow.pop %v296
  %v298 = vmul.f32 %v224, 1.442695
  %v299 = vpow.pop %v298
  %v300 = vmul.f32 %v225, 1.442695
  %v301 = vpow.pop %v300
  %v302 = vmul.f32 %v226, 1.442695
  %v303 = vpow.pop %v302
  %v304 = vmul.f32 %v227, 1.442695
  %v305 = vpow.pop %v304
  %v306 = vmul.f32 %v228, 1.442695
  %v307 = vpow.pop %v306
  %v308 = vmul.f32 %v229, 1.442695
  %v309 = vpow.pop %v308
  %v310 = vmul.f32 %v230, 1.442695
  %v311 = vpow.pop %v310
  %v312 = vmul.f32 %v231, 1.442695
  %v313 = vpow.pop %v312
  %v314 = vmul.f32 %v232, 1.442695
  %v315 = vpow.pop %v314
  %v316 = vmul.f32 %v233, 1.442695
  %v317 = vpow.pop %v316
  %v318 = vmul.f32 %v234, 1.442695
  %v319 = vpow.pop %v318
  %v320 = vmul.f32 %v235, 1.442695
  %v321 = vpow.pop %v320
  %v322 = vmul.f32 %v236, 1.442695
  %v323 = vpow.pop %v322
  %v324 = vmul.f32 %v237, 1.442695
  %v325 = vpow.pop %v324
  %v326 = vmul.f32 %v238, 1.442695
  %v327 = vpow.pop %v326
  %v328 = vmul.f32 %v239, 1.442695
  %v329 = vpow.pop %v328
  %v330 = vmul.f32 %v240, 1.442695
  %v331 = vpow.pop %v330
  %v332 = vmul.f32 %v241, 1.442695
  %v333 = vpow.pop %v332
  %v334 = vmul.f32 %v242, 1.442695
  %v335 = vpow.pop %v334
  %v336 = vmul.f32 %v243, 1.442695
  %v337 = vpow.pop %v336
  %v338 = vmul.f32 %v244, 1.442695
  %v339 = vpow.pop %v338
  %v340 = vmul.f32 %v245, 1.442695
  %v341 = vpow.pop %v340
  %v342 = vmul.f32 %v246, 1.442695
  %v343 = vpow.pop %v342
  %v344 = vmul.f32 %v247, 1.442695
  %v345 = vpow.pop %v344
  %v346 = vmul.f32 %v248, 1.442695
  %v347 = vpow.pop %v346
  %v348 = vmul.f32 %v249, 1.442695
  %v349 = vpow.pop %v348
  %v350 = vmul.f32 %v250, 1.442695
  %v351 = vpow.pop %v350
  %v352 = vmul.f32 %v251, 1.442695
  %v353 = vpow.pop %v352
  %v354 = vmul.f32 %v252, 1.442695
  %v355 = vpow.pop %v354
  %v356 = vmul.f32 %v253, 1.442695
  %v357 = vpow.pop %v356
  %v358 = vmul.f32 %v254, 1.442695
  %v359 = vpow.pop %v358
  %v360 = vmul.f32 %v255, 1.442695
  %v361 = vpow.pop %v360
  %v362 = vmul.f32 %v256, 1.442695
  %v363 = vpow.pop %v362
  %v364 = vmul.f32 %v257, 1.442695
  %v365 = vpow.pop %v364
  %v366 = vmul.f32 %v258, 1.442695
  %v367 = vpow.pop %v366
  %v368 = vmul.f32 %v259, 1.442695
  %v369 = vpow.pop %v368
  %v370 = vmul.f32 %v260, 1.442695
  %v371 = vpow.pop %v370
  %v372 = vmul.f32 %v261, 1.442695
  %v373 = vpow.pop %v372
  %v374 = vmul.f32 %v262, 1.442695
  %v375 = vpow.pop %v374
  %v376 = vmul.f32 %v263, 1.442695
  %v377 = vpow.pop %v376
  %v378 = vmul.f32 %v264, 1.442695
  %v379 = vpow.pop %v378
  %v380 = vmul.f32 %v265, 1.442695
  %v381 = vpow.pop %v380
  %v382 = vmul.f32 %v266, 1.442695
  %v383 = vpow.pop %v382
  %v384 = vmul.f32 %v267, 1.442695
  %v385 = vpow.pop %v384
  %v386 = vmul.f32 %v268, 1.442695
  %v387 = vpow.pop %v386
  %v388 = vmul.f32 %v269, 1.442695
  %v389 = vpow.pop %v388
  %v390 = vmul.f32 %v270, 1.442695
  %v391 = vpow.pop %v390
  %v392 = vmul.f32 %v271, 1.442695
  %v393 = vpow.pop %v392
  %v394 = vmul.f32 %v272, 1.442695
  %v395 = vpow.pop %v394
  %v396 = vmul.f32 %v273, 1.442695
  %v397 = vpow.pop %v396
  %v398 = vmul.f32 %v274, 1.442695
  %v399 = vpow.pop %v398
  %v400 = vmul.f32 %v275, 1.442695
  %v401 = vpow.pop %v400
  %v402 = vmul.f32 %v276, 1.442695
  %v403 = vpow.pop %v402
  %v404 = vmul.f32 %v277, 1.442695
  %v405 = vpow.pop %v404
  %v406 = vadd.f32 %v279, 2.0
  %v407 = vadd.f32 %v281, 2.0
  %v408 = vadd.f32 %v283, 2.0
  %v409 = vadd.f32 %v285, 2.0
  %v410 = vadd.f32 %v287, 2.0
  %v411 = vadd.f32 %v289, 2.0
  %v412 = vadd.f32 %v291, 2.0
  %v413 = vadd.f32 %v293, 2.0
  %v414 = vadd.f32 %v295, 2.0
  %v415 = vadd.f32 %v297, 2.0
  %v416 = vadd.f32 %v299, 2.0
  %v417 = vadd.f32 %v301, 2.0
  %v418 = vadd.f32 %v303, 2.0
  %v419 = vadd.f32 %v305, 2.0
  %v420 = vadd.f32 %v307, 2.0
  %v421 = vadd.f32 %v309, 2.0
  %v422 = vadd.f32 %v311, 2.0
  %v423 = vadd.f32 %v313, 2.0
  %v424 = vadd.f32 %v315, 2.0
  %v425 = vadd.f32 %v317, 2.0
  %v426 = vadd.f32 %v319, 2.0
  %v427 = vadd.f32 %v321, 2.0
  %v428 = vadd.f32 %v323, 2.0
  %v429 = vadd.f32 %v325, 2.0
  %v430 = vadd.f32 %v327, 2.0
  %v431 = vadd.f32 %v329, 2.0
  %v432 = vadd.f32 %v331, 2.0
  %v433 = vadd.f32 %v333, 2.0
  %v434 = vadd.f32 %v335, 2.0
  %v435 = vadd.f32 %v337, 2.0
  %v436 = vadd.f32 %v339, 2.0
  %v437 = vadd.f32 %v341, 2.0
  %v438 = vadd.f32 %v343, 2.0
  %v439 = vadd.f32 %v345, 2.0
  %v440 = vadd.f32 %v347, 2.0
  %v441 = vadd.f32 %v349, 2.0
  %v442 = vadd.f32 %v351, 2.0
  %v443 = vadd.f32 %v353, 2.0
  %v444 = vadd.f32 %v355, 2.0
  %v445 = vadd.f32 %v357, 2.0
  %v446 = vadd.f32 %v359, 2.0
  %v447 = vadd.f32 %v361, 2.0
  %v448 = vadd.f32 %v363, 2.0
  %v449 = vadd.f32 %v365, 2.0
  %v450 = vadd.f32 %v367, 2.0
  %v451 = vadd.f32 %v369, 2.0
  %v452 = vadd.f32 %v371, 2.0
  %v453 = vadd.f32 %v373, 2.0
  %v454 = vadd.f32 %v375, 2.0
  %v455 = vadd.f32 %v377, 2.0
  %v456 = vadd.f32 %v379, 2.0
  %v457 = vadd.f32 %v381, 2.0
  %v458 = vadd.f32 %v383, 2.0
  %v459 = vadd.f32 %v385, 2.0
  %v460 = vadd.f32 %v387, 2.0
  %v461 = vadd.f32 %v389, 2.0
  %v462 = vadd.f32 %v391, 2.0
  %v463 = vadd.f32 %v393, 2.0
  %v464 = vadd.f32 %v395, 2.0
  %v465 = vadd.f32 %v397, 2.0
  %v466 = vadd.f32 %v399, 2.0
  %v467 = vadd.f32 %v401, 2.0
  %v468 = vadd.f32 %v403, 2.0
  %v469 = vadd.f32 %v405, 2.0
  %v470 = vmul.f32 %v279, %v406
  %v471 = vmul.f32 %v281, %v407
  %v472 = vmul.f32 %v283, %v408
  %v473 = vmul.f32 %v285, %v409
  %v474 = vmul.f32 %v287, %v410
  %v475 = vmul.f32 %v289, %v411
  %v476 = vmul.f32 %v291, %v412
  %v477 = vmul.f32 %v293, %v413
  %v478 = vmul.f32 %v295, %v414
  %v479 = vmul.f32 %v297, %v415
  %v480 = vmul.f32 %v299, %v416
  %v481 = vmul.f32 %v301, %v417
  %v482 = vmul.f32 %v303, %v418
  %v483 = vmul.f32 %v305, %v419
  %v484 = vmul.f32 %v307, %v420
  %v485 = vmul.f32 %v309, %v421
  %v486 = vmul.f32 %v311, %v422
  %v487 = vmul.f32 %v313, %v423
  %v488 = vmul.f32 %v315, %v424
  %v489 = vmul.f32 %v317, %v425
  %v490 = vmul.f32 %v319, %v426
  %v491 = vmul.f32 %v321, %v427
  %v492 = vmul.f32 %v323, %v428
  %v493 = vmul.f32 %v325, %v429
  %v494 = vmul.f32 %v327, %v430
  %v495 = vmul.f32 %v329, %v431
  %v496 = vmul.f32 %v331, %v432
  %v497 = vmul.f32 %v333, %v433
  %v498 = vmul.f32 %v335, %v434
  %v499 = vmul.f32 %v337, %v435
  %v500 = vmul.f32 %v339, %v436
  %v501 = vmul.f32 %v341, %v437
  %v502 = vmul.f32 %v343, %v438
  %v503 = vmul.f32 %v345, %v439
  %v504 = vmul.f32 %v347, %v440
  %v505 = vmul.f32 %v349, %v441
  %v506 = vmul.f32 %v351, %v442
  %v507 = vmul.f32 %v353, %v443
  %v508 = vmul.f32 %v355, %v444
  %v509 = vmul.f32 %v357, %v445
  %v510 = vmul.f32 %v359, %v446
  %v511 = vmul.f32 %v361, %v447
  %v512 = vmul.f32 %v363, %v448
  %v513 = vmul.f32 %v365, %v449
  %v514 = vmul.f32 %v367, %v450
  %v515 = vmul.f32 %v369, %v451
  %v516 = vmul.f32 %v371, %v452
  %v517 = vmul.f32 %v373, %v453
  %v518 = vmul.f32 %v375, %v454
  %v519 = vmul.f32 %v377, %v455
  %v520 = vmul.f32 %v379, %v456
  %v521 = vmul.f32 %v381, %v457
  %v522 = vmul.f32 %v383, %v458
  %v523 = vmul.f32 %v385, %v459
  %v524 = vmul.f32 %v387, %v460
  %v525 = vmul.f32 %v389, %v461
  %v526 = vmul.f32 %v391, %v462
  %v527 = vmul.f32 %v393, %v463
  %v528 = vmul.f32 %v395, %v464
  %v529 = vmul.f32 %v397, %v465
  %v530 = vmul.f32 %v399, %v466
  %v531 = vmul.f32 %v401, %v467
  %v532 = vmul.f32 %v403, %v468
  %v533 = vmul.f32 %v405, %v469
  %v534 = vadd.f32 %v470, 2.0
  %v535 = vadd.f32 %v471, 2.0
  %v536 = vadd.f32 %v472, 2.0
  %v537 = vadd.f32 %v473, 2.0
  %v538 = vadd.f32 %v474, 2.0
  %v539 = vadd.f32 %v475, 2.0
  %v540 = vadd.f32 %v476, 2.0
  %v541 = vadd.f32 %v477, 2.0
  %v542 = vadd.f32 %v478, 2.0
  %v543 = vadd.f32 %v479, 2.0
  %v544 = vadd.f32 %v480, 2.0
  %v545 = vadd.f32 %v481, 2.0
  %v546 = vadd.f32 %v482, 2.0
  %v547 = vadd.f32 %v483, 2.0
  %v548 = vadd.f32 %v484, 2.0
  %v549 = vadd.f32 %v485, 2.0
  %v550 = vadd.f32 %v486, 2.0
  %v551 = vadd.f32 %v487, 2.0
  %v552 = vadd.f32 %v488, 2.0
  %v553 = vadd.f32 %v489, 2.0
  %v554 = vadd.f32 %v490, 2.0
  %v555 = vadd.f32 %v491, 2.0
  %v556 = vadd.f32 %v492, 2.0
  %v557 = vadd.f32 %v493, 2.0
  %v558 = vadd.f32 %v494, 2.0
  %v559 = vadd.f32 %v495, 2.0
  %v560 = vadd.f32 %v496, 2.0
  %v561 = vadd.f32 %v497, 2.0
  %v562 = vadd.f32 %v498, 2.0
  %v563 = vadd.f32 %v499, 2.0
  %v564 = vadd.f32 %v500, 2.0
  %v565 = vadd.f32 %v501, 2.0
  %v566 = vadd.f32 %v502, 2.0
  %v567 = vadd.f32 %v503, 2.0
  %v568 = vadd.f32 %v504, 2.0
  %v569 = vadd.f32 %v505, 2.0
  %v570 = vadd.f32 %v506, 2.0
  %v571 = vadd.f32 %v507, 2.0
  %v572 = vadd.f32 %v508, 2.0
  %v573 = vadd.f32 %v509, 2.0
  %v574 = vadd.f32 %v510, 2.0
  %v575 = vadd.f32 %v511, 2.0
  %v576 = vadd.f32 %v512, 2.0
  %v577 = vadd.f32 %v513, 2.0
  %v578 = vadd.f32 %v514, 2.0
  %v579 = vadd.f32 %v515, 2.0
  %v580 = vadd.f32 %v516, 2.0
  %v581 = vadd.f32 %v517, 2.0
  %v582 = vadd.f32 %v518, 2.0
  %v583 = vadd.f32 %v519, 2.0
  %v584 = vadd.f32 %v520, 2.0
  %v585 = vadd.f32 %v521, 2.0
  %v586 = vadd.f32 %v522, 2.0
  %v587 = vadd.f32 %v523, 2.0
  %v588 = vadd.f32 %v524, 2.0
  %v589 = vadd.f32 %v525, 2.0
  %v590 = vadd.f32 %v526, 2.0
  %v591 = vadd.f32 %v527, 2.0
  %v592 = vadd.f32 %v528, 2.0
  %v593 = vadd.f32 %v529, 2.0
  %v594 = vadd.f32 %v530, 2.0
  %v595 = vadd.f32 %v531, 2.0
  %v596 = vadd.f32 %v532, 2.0
  %v597 = vadd.f32 %v533, 2.0
  %v598 = vrcp.pop %v534
  %v599 = vrcp.pop %v535
  %v600 = vrcp.pop %v536
  %v601 = vrcp.pop %v537
  %v602 = vrcp.pop %v538
  %v603 = vrcp.pop %v539
  %v604 = vrcp.pop %v540
  %v605 = vrcp.pop %v541
  %v606 = vrcp.pop %v542
  %v607 = vrcp.pop %v543
  %v608 = vrcp.pop %v544
  %v609 = vrcp.pop %v545
  %v610 = vrcp.pop %v546
  %v611 = vrcp.pop %v547
  %v612 = vrcp.pop %v548
  %v613 = vrcp.pop %v549
  %v614 = vrcp.pop %v550
  %v615 = vrcp.pop %v551
  %v616 = vrcp.pop %v552
  %v617 = vrcp.pop %v553
  %v618 = vrcp.pop %v554
  %v619 = vrcp.pop %v555
  %v620 = vrcp.pop %v556
  %v621 = vrcp.pop %v557
  %v622 = vrcp.pop %v558
  %v623 = vrcp.pop %v559
  %v624 = vrcp.pop %v560
  %v625 = vrcp.pop %v561
  %v626 = vrcp.pop %v562
  %v627 = vrcp.pop %v563
  %v628 = vrcp.pop %v564
  %v629 = vrcp.pop %v565
  %v630 = vrcp.pop %v566
  %v631 = vrcp.pop %v567
  %v632 = vrcp.pop %v568
  %v633 = vrcp.pop %v569
  %v634 = vrcp.pop %v570
  %v635 = vrcp.pop %v571
  %v636 = vrcp.pop %v572
  %v637 = vrcp.pop %v573
  %v638 = vrcp.pop %v574
  %v639 = vrcp.pop %v575
  %v640 = vrcp.pop %v576
  %v641 = vrcp.pop %v577
  %v642 = vrcp.pop %v578
  %v643 = vrcp.pop %v579
  %v644 = vrcp.pop %v580
  %v645 = vrcp.pop %v581
  %v646 = vrcp.pop %v582
  %v647 = vrcp.pop %v583
  %v648 = vrcp.pop %v584
  %v649 = vrcp.pop %v585
  %v650 = vrcp.pop %v586
  %v651 = vrcp.pop %v587
  %v652 = vrcp.pop %v588
  %v653 = vrcp.pop %v589
  %v654 = vrcp.pop %v590
  %v655 = vrcp.pop %v591
  %v656 = vrcp.pop %v592
  %v657 = vrcp.pop %v593
  %v658 = vrcp.pop %v594
  %v659 = vrcp.pop %v595
  %v660 = vrcp.pop %v596
  %v661 = vrcp.pop %v597
  %v662 = vmul.f32 %v470, %v598
  %v663 = vmul.f32 %v471, %v599
  %v664 = vmul.f32 %v472, %v600
  %v665 = vmul.f32 %v473, %v601
  %v666 = vmul.f32 %v474, %v602
  %v667 = vmul.f32 %v475, %v603
  %v668 = vmul.f32 %v476, %v604
  %v669 = vmul.f32 %v477, %v605
  %v670 = vmul.f32 %v478, %v606
  %v671 = vmul.f32 %v479, %v607
  %v672 = vmul.f32 %v480, %v608
  %v673 = vmul.f32 %v481, %v609
  %v674 = vmul.f32 %v482, %v610
  %v675 = vmul.f32 %v483, %v611
  %v676 = vmul.f32 %v484, %v612
  %v677 = vmul.f32 %v485, %v613
  %v678 = vmul.f32 %v486, %v614
  %v679 = vmul.f32 %v487, %v615
  %v680 = vmul.f32 %v488, %v616
  %v681 = vmul.f32 %v489, %v617
  %v682 = vmul.f32 %v490, %v618
  %v683 = vmul.f32 %v491, %v619
  %v684 = vmul.f32 %v492, %v620
  %v685 = vmul.f32 %v493, %v621
  %v686 = vmul.f32 %v494, %v622
  %v687 = vmul.f32 %v495, %v623
  %v688 = vmul.f32 %v496, %v624
  %v689 = vmul.f32 %v497, %v625
  %v690 = vmul.f32 %v498, %v626
  %v691 = vmul.f32 %v499, %v627
  %v692 = vmul.f32 %v500, %v628
  %v693 = vmul.f32 %v501, %v629
  %v694 = vmul.f32 %v502, %v630
  %v695 = vmul.f32 %v503, %v631
  %v696 = vmul.f32 %v504, %v632
  %v697 = vmul.f32 %v505, %v633
  %v698 = vmul.f32 %v506, %v634
  %v699 = vmul.f32 %v507, %v635
  %v700 = vmul.f32 %v508, %v636
  %v701 = vmul.f32 %v509, %v637
  %v702 = vmul.f32 %v510, %v638
  %v703 = vmul.f32 %v511, %v639
  %v704 = vmul.f32 %v512, %v640
  %v705 = vmul.f32 %v513, %v641
  %v706 = vmul.f32 %v514, %v642
  %v707 = vmul.f32 %v515, %v643
  %v708 = vmul.f32 %v516, %v644
  %v709 = vmul.f32 %v517, %v645
  %v710 = vmul.f32 %v518, %v646
  %v711 = vmul.f32 %v519, %v647
  %v712 = vmul.f32 %v520, %v648
  %v713 = vmul.f32 %v521, %v649
  %v714 = vmul.f32 %v522, %v650
  %v715 = vmul.f32 %v523, %v651
  %v716 = vmul.f32 %v524, %v652
  %v717 = vmul.f32 %v525, %v653
  %v718 = vmul.f32 %v526, %v654
  %v719 = vmul.f32 %v527, %v655
  %v720 = vmul.f32 %v528, %v656
  %v721 = vmul.f32 %v529, %v657
  %v722 = vmul.f32 %v530, %v658
  %v723 = vmul.f32 %v531, %v659
  %v724 = vmul.f32 %v532, %v660
  %v725 = vmul.f32 %v533, %v661
  %vm726 = vcmp.gt.f32.partialorder %v150, 20.0
  %vm727 = vcmp.gt.f32.partialorder %v151, 20.0
  %vm728 = vcmp.gt.f32.partialorder %v152, 20.0
  %vm729 = vcmp.gt.f32.partialorder %v153, 20.0
  %vm730 = vcmp.gt.f32.partialorder %v154, 20.0
  %vm731 = vcmp.gt.f32.partialorder %v155, 20.0
  %vm732 = vcmp.gt.f32.partialorder %v156, 20.0
  %vm733 = vcmp.gt.f32.partialorder %v157, 20.0
  %vm734 = vcmp.gt.f32.partialorder %v158, 20.0
  %vm735 = vcmp.gt.f32.partialorder %v159, 20.0
  %vm736 = vcmp.gt.f32.partialorder %v160, 20.0
  %vm737 = vcmp.gt.f32.partialorder %v161, 20.0
  %vm738 = vcmp.gt.f32.partialorder %v162, 20.0
  %vm739 = vcmp.gt.f32.partialorder %v163, 20.0
  %vm740 = vcmp.gt.f32.partialorder %v164, 20.0
  %vm741 = vcmp.gt.f32.partialorder %v165, 20.0
  %vm742 = vcmp.gt.f32.partialorder %v166, 20.0
  %vm743 = vcmp.gt.f32.partialorder %v167, 20.0
  %vm744 = vcmp.gt.f32.partialorder %v168, 20.0
  %vm745 = vcmp.gt.f32.partialorder %v169, 20.0
  %vm746 = vcmp.gt.f32.partialorder %v170, 20.0
  %vm747 = vcmp.gt.f32.partialorder %v171, 20.0
  %vm748 = vcmp.gt.f32.partialorder %v172, 20.0
  %vm749 = vcmp.gt.f32.partialorder %v173, 20.0
  %vm750 = vcmp.gt.f32.partialorder %v174, 20.0
  %vm751 = vcmp.gt.f32.partialorder %v175, 20.0
  %vm752 = vcmp.gt.f32.partialorder %v176, 20.0
  %vm753 = vcmp.gt.f32.partialorder %v177, 20.0
  %vm754 = vcmp.gt.f32.partialorder %v178, 20.0
  %vm755 = vcmp.gt.f32.partialorder %v179, 20.0
  %vm756 = vcmp.gt.f32.partialorder %v180, 20.0
  %vm757 = vcmp.gt.f32.partialorder %v181, 20.0
  %vm758 = vcmp.gt.f32.partialorder %v182, 20.0
  %vm759 = vcmp.gt.f32.partialorder %v183, 20.0
  %vm760 = vcmp.gt.f32.partialorder %v184, 20.0
  %vm761 = vcmp.gt.f32.partialorder %v185, 20.0
  %vm762 = vcmp.gt.f32.partialorder %v186, 20.0
  %vm763 = vcmp.gt.f32.partialorder %v187, 20.0
  %vm764 = vcmp.gt.f32.partialorder %v188, 20.0
  %vm765 = vcmp.gt.f32.partialorder %v189, 20.0
  %vm766 = vcmp.gt.f32.partialorder %v190, 20.0
  %vm767 = vcmp.gt.f32.partialorder %v191, 20.0
  %vm768 = vcmp.gt.f32.partialorder %v192, 20.0
  %vm769 = vcmp.gt.f32.partialorder %v193, 20.0
  %vm770 = vcmp.gt.f32.partialorder %v194, 20.0
  %vm771 = vcmp.gt.f32.partialorder %v195, 20.0
  %vm772 = vcmp.gt.f32.partialorder %v196, 20.0
  %vm773 = vcmp.gt.f32.partialorder %v197, 20.0
  %vm774 = vcmp.gt.f32.partialorder %v198, 20.0
  %vm775 = vcmp.gt.f32.partialorder %v199, 20.0
  %vm776 = vcmp.gt.f32.partialorder %v200, 20.0
  %vm777 = vcmp.gt.f32.partialorder %v201, 20.0
  %vm778 = vcmp.gt.f32.partialorder %v202, 20.0
  %vm779 = vcmp.gt.f32.partialorder %v203, 20.0
  %vm780 = vcmp.gt.f32.partialorder %v204, 20.0
  %vm781 = vcmp.gt.f32.partialorder %v205, 20.0
  %vm782 = vcmp.gt.f32.partialorder %v206, 20.0
  %vm783 = vcmp.gt.f32.partialorder %v207, 20.0
  %vm784 = vcmp.gt.f32.partialorder %v208, 20.0
  %vm785 = vcmp.gt.f32.partialorder %v209, 20.0
  %vm786 = vcmp.gt.f32.partialorder %v210, 20.0
  %vm787 = vcmp.gt.f32.partialorder %v211, 20.0
  %vm788 = vcmp.gt.f32.partialorder %v212, 20.0
  %vm789 = vcmp.gt.f32.partialorder %v213, 20.0
  %v790 = vmul.f32 %v150, %v662
  %v791 = vmul.f32 %v151, %v663
  %v792 = vmul.f32 %v152, %v664
  %v793 = vmul.f32 %v153, %v665
  %v794 = vmul.f32 %v154, %v666
  %v795 = vmul.f32 %v155, %v667
  %v796 = vmul.f32 %v156, %v668
  %v797 = vmul.f32 %v157, %v669
  %v798 = vmul.f32 %v158, %v670
  %v799 = vmul.f32 %v159, %v671
  %v800 = vmul.f32 %v160, %v672
  %v801 = vmul.f32 %v161, %v673
  %v802 = vmul.f32 %v162, %v674
  %v803 = vmul.f32 %v163, %v675
  %v804 = vmul.f32 %v164, %v676
  %v805 = vmul.f32 %v165, %v677
  %v806 = vmul.f32 %v166, %v678
  %v807 = vmul.f32 %v167, %v679
  %v808 = vmul.f32 %v168, %v680
  %v809 = vmul.f32 %v169, %v681
  %v810 = vmul.f32 %v170, %v682
  %v811 = vmul.f32 %v171, %v683
  %v812 = vmul.f32 %v172, %v684
  %v813 = vmul.f32 %v173, %v685
  %v814 = vmul.f32 %v174, %v686
  %v815 = vmul.f32 %v175, %v687
  %v816 = vmul.f32 %v176, %v688
  %v817 = vmul.f32 %v177, %v689
  %v818 = vmul.f32 %v178, %v690
  %v819 = vmul.f32 %v179, %v691
  %v820 = vmul.f32 %v180, %v692
  %v821 = vmul.f32 %v181, %v693
  %v822 = vmul.f32 %v182, %v694
  %v823 = vmul.f32 %v183, %v695
  %v824 = vmul.f32 %v184, %v696
  %v825 = vmul.f32 %v185, %v697
  %v826 = vmul.f32 %v186, %v698
  %v827 = vmul.f32 %v187, %v699
  %v828 = vmul.f32 %v188, %v700
  %v829 = vmul.f32 %v189, %v701
  %v830 = vmul.f32 %v190, %v702
  %v831 = vmul.f32 %v191, %v703
  %v832 = vmul.f32 %v192, %v704
  %v833 = vmul.f32 %v193, %v705
  %v834 = vmul.f32 %v194, %v706
  %v835 = vmul.f32 %v195, %v707
  %v836 = vmul.f32 %v196, %v708
  %v837 = vmul.f32 %v197, %v709
  %v838 = vmul.f32 %v198, %v710
  %v839 = vmul.f32 %v199, %v711
  %v840 = vmul.f32 %v200, %v712
  %v841 = vmul.f32 %v201, %v713
  %v842 = vmul.f32 %v202, %v714
  %v843 = vmul.f32 %v203, %v715
  %v844 = vmul.f32 %v204, %v716
  %v845 = vmul.f32 %v205, %v717
  %v846 = vmul.f32 %v206, %v718
  %v847 = vmul.f32 %v207, %v719
  %v848 = vmul.f32 %v208, %v720
  %v849 = vmul.f32 %v209, %v721
  %v850 = vmul.f32 %v210, %v722
  %v851 = vmul.f32 %v211, %v723
  %v852 = vmul.f32 %v212, %v724
  %v853 = vmul.f32 %v213, %v725
  %v854 = vsel %vm726, %v150, %v790
  %v855 = vsel %vm727, %v151, %v791
  %v856 = vsel %vm728, %v152, %v792
  %v857 = vsel %vm729, %v153, %v793
  %v858 = vsel %vm730, %v154, %v794
  %v859 = vsel %vm731, %v155, %v795
  %v860 = vsel %vm732, %v156, %v796
  %v861 = vsel %vm733, %v157, %v797
  %v862 = vsel %vm734, %v158, %v798
  %v863 = vsel %vm735, %v159, %v799
  %v864 = vsel %vm736, %v160, %v800
  %v865 = vsel %vm737, %v161, %v801
  %v866 = vsel %vm738, %v162, %v802
  %v867 = vsel %vm739, %v163, %v803
  %v868 = vsel %vm740, %v164, %v804
  %v869 = vsel %vm741, %v165, %v805
  %v870 = vsel %vm742, %v166, %v806
  %v871 = vsel %vm743, %v167, %v807
  %v872 = vsel %vm744, %v168, %v808
  %v873 = vsel %vm745, %v169, %v809
  %v874 = vsel %vm746, %v170, %v810
  %v875 = vsel %vm747, %v171, %v811
  %v876 = vsel %vm748, %v172, %v812
  %v877 = vsel %vm749, %v173, %v813
  %v878 = vsel %vm750, %v174, %v814
  %v879 = vsel %vm751, %v175, %v815
  %v880 = vsel %vm752, %v176, %v816
  %v881 = vsel %vm753, %v177, %v817
  %v882 = vsel %vm754, %v178, %v818
  %v883 = vsel %vm755, %v179, %v819
  %v884 = vsel %vm756, %v180, %v820
  %v885 = vsel %vm757, %v181, %v821
  %v886 = vsel %vm758, %v182, %v822
  %v887 = vsel %vm759, %v183, %v823
  %v888 = vsel %vm760, %v184, %v824
  %v889 = vsel %vm761, %v185, %v825
  %v890 = vsel %vm762, %v186, %v826
  %v891 = vsel %vm763, %v187, %v827
  %v892 = vsel %vm764, %v188, %v828
  %v893 = vsel %vm765, %v189, %v829
  %v894 = vsel %vm766, %v190, %v830
  %v895 = vsel %vm767, %v191, %v831
  %v896 = vsel %vm768, %v192, %v832
  %v897 = vsel %vm769, %v193, %v833
  %v898 = vsel %vm770, %v194, %v834
  %v899 = vsel %vm771, %v195, %v835
  %v900 = vsel %vm772, %v196, %v836
  %v901 = vsel %vm773, %v197, %v837
  %v902 = vsel %vm774, %v198, %v838
  %v903 = vsel %vm775, %v199, %v839
  %v904 = vsel %vm776, %v200, %v840
  %v905 = vsel %vm777, %v201, %v841
  %v906 = vsel %vm778, %v202, %v842
  %v907 = vsel %vm779, %v203, %v843
  %v908 = vsel %vm780, %v204, %v844
  %v909 = vsel %vm781, %v205, %v845
  %v910 = vsel %vm782, %v206, %v846
  %v911 = vsel %vm783, %v207, %v847
  %v912 = vsel %vm784, %v208, %v848
  %v913 = vsel %vm785, %v209, %v849
  %v914 = vsel %vm786, %v210, %v850
  %v915 = vsel %vm787, %v211, %v851
  %v916 = vsel %vm788, %v212, %v852
  %v917 = vsel %vm789, %v213, %v853
  %918 = vst [vmem:[%s3] sm:$0xff] %v854
  %919 = vst [vmem:[%s3 + $0x8] sm:$0xff] %v855
  %920 = vst [vmem:[%s3 + $0x10] sm:$0xff] %v856
  %921 = vst [vmem:[%s3 + $0x18] sm:$0xff] %v857
  %922 = vst [vmem:[%s3 + $0x20] sm:$0xff] %v858
  %923 = vst [vmem:[%s3 + $0x28] sm:$0xff] %v859
  %924 = vst [vmem:[%s3 + $0x30] sm:$0xff] %v860
  %925 = vst [vmem:[%s3 + $0x38] sm:$0xff] %v861
  %926 = vst [vmem:[%s3 + $0x40] sm:$0xff] %v862
  %927 = vst [vmem:[%s3 + $0x48] sm:$0xff] %v863
  %928 = vst [vmem:[%s3 + $0x50] sm:$0xff] %v864
  %929 = vst [vmem:[%s3 + $0x58] sm:$0xff] %v865
  %930 = vst [vmem:[%s3 + $0x60] sm:$0xff] %v866
  %931 = vst [vmem:[%s3 + $0x68] sm:$0xff] %v867
  %932 = vst [vmem:[%s3 + $0x70] sm:$0xff] %v868
  %933 = vst [vmem:[%s3 + $0x78] sm:$0xff] %v869
  %934 = vst [vmem:[%s3 + $0x80] sm:$0xff] %v870
  %935 = vst [vmem:[%s3 + $0x88] sm:$0xff] %v871
  %936 = vst [vmem:[%s3 + $0x90] sm:$0xff] %v872
  %937 = vst [vmem:[%s3 + $0x98] sm:$0xff] %v873
  %938 = vst [vmem:[%s3 + $0xa0] sm:$0xff] %v874
  %939 = vst [vmem:[%s3 + $0xa8] sm:$0xff] %v875
  %940 = vst [vmem:[%s3 + $0xb0] sm:$0xff] %v876
  %941 = vst [vmem:[%s3 + $0xb8] sm:$0xff] %v877
  %942 = vst [vmem:[%s3 + $0xc0] sm:$0xff] %v878
  %943 = vst [vmem:[%s3 + $0xc8] sm:$0xff] %v879
  %944 = vst [vmem:[%s3 + $0xd0] sm:$0xff] %v880
  %945 = vst [vmem:[%s3 + $0xd8] sm:$0xff] %v881
  %946 = vst [vmem:[%s3 + $0xe0] sm:$0xff] %v882
  %947 = vst [vmem:[%s3 + $0xe8] sm:$0xff] %v883
  %948 = vst [vmem:[%s3 + $0xf0] sm:$0xff] %v884
  %949 = vst [vmem:[%s3 + $0xf8] sm:$0xff] %v885
  %950 = vst [vmem:[%s3 + $0x100] sm:$0xff] %v886
  %951 = vst [vmem:[%s3 + $0x108] sm:$0xff] %v887
  %952 = vst [vmem:[%s3 + $0x110] sm:$0xff] %v888
  %953 = vst [vmem:[%s3 + $0x118] sm:$0xff] %v889
  %954 = vst [vmem:[%s3 + $0x120] sm:$0xff] %v890
  %955 = vst [vmem:[%s3 + $0x128] sm:$0xff] %v891
  %956 = vst [vmem:[%s3 + $0x130] sm:$0xff] %v892
  %957 = vst [vmem:[%s3 + $0x138] sm:$0xff] %v893
  %958 = vst [vmem:[%s3 + $0x140] sm:$0xff] %v894
  %959 = vst [vmem:[%s3 + $0x148] sm:$0xff] %v895
  %960 = vst [vmem:[%s3 + $0x150] sm:$0xff] %v896
  %961 = vst [vmem:[%s3 + $0x158] sm:$0xff] %v897
  %962 = vst [vmem:[%s3 + $0x160] sm:$0xff] %v898
  %963 = vst [vmem:[%s3 + $0x168] sm:$0xff] %v899
  %964 = vst [vmem:[%s3 + $0x170] sm:$0xff] %v900
  %965 = vst [vmem:[%s3 + $0x178] sm:$0xff] %v901
  %966 = vst [vmem:[%s3 + $0x180] sm:$0xff] %v902
  %967 = vst [vmem:[%s3 + $0x188] sm:$0xff] %v903
  %968 = vst [vmem:[%s3 + $0x190] sm:$0xff] %v904
  %969 = vst [vmem:[%s3 + $0x198] sm:$0xff] %v905
  %970 = vst [vmem:[%s3 + $0x1a0] sm:$0xff] %v906
  %971 = vst [vmem:[%s3 + $0x1a8] sm:$0xff] %v907
  %972 = vst [vmem:[%s3 + $0x1b0] sm:$0xff] %v908
  %973 = vst [vmem:[%s3 + $0x1b8] sm:$0xff] %v909
  %974 = vst [vmem:[%s3 + $0x1c0] sm:$0xff] %v910
  %975 = vst [vmem:[%s3 + $0x1c8] sm:$0xff] %v911
  %976 = vst [vmem:[%s3 + $0x1d0] sm:$0xff] %v912
  %977 = vst [vmem:[%s3 + $0x1d8] sm:$0xff] %v913
  %978 = vst [vmem:[%s3 + $0x1e0] sm:$0xff] %v914
  %979 = vst [vmem:[%s3 + $0x1e8] sm:$0xff] %v915
  %980 = vst [vmem:[%s3 + $0x1f0] sm:$0xff] %v916
  %981 = vst [vmem:[%s3 + $0x1f8] sm:$0xff] %v917
  // Predicated region
  $region14: #{conv_block.3} parent=0 // pred_check
    _
  $region15: #{conv_block.3} parent=0 // pred_check_branch
    %983 = sbr.rel (0) target = $region17
  $region16: #{conv_block.3} parent=0 // pred_region
    _
  $region17: #{conv_block.3} parent=0 // pred_fallthru
    _
  // Predicated region
  $region18: #{conv_block.3} parent=0 // pred_check
    _
  $region19: #{conv_block.3} parent=0 // pred_check_branch
    %985 = sbr.rel (0) target = $region21
  $region20: #{conv_block.3} parent=0 // pred_region
    _
  $region21: #{conv_block.3} parent=0 // pred_fallthru
    _

// kernel: conv_block.2
$region0: #{conv_block.2}
  #allocation0 [shape = 'u32[]', space=smem, size = 0x4, offset = 0x4, fixed_abs, tag = 'smem constant byte address 0x4 - core index']
  #allocation1 [shape = 'u32[72,128]{1,0:T(1,128)}', space=vmem, size = 0x9000, scoped, tag = 'internal scratch']
  %s0 = inlined_call_operand.vmem [shape: bf16[2,18,18,4], index: 0, kind: input, shape index: {}]
  %s1 = inlined_call_operand.vmem [shape: bf16[9,4,128], index: 1, kind: input, shape index: {}]
  %s2 = inlined_call_operand.vmem [shape: f32[2,16,16,128], index: 2, kind: output, shape index: {0}]
  %s3 = inlined_call_operand.vmem [shape: f32[2,1,2,128], index: 3, kind: output, shape index: {1}]
  %4 = xla_tuple %s2, %s3
  %s5 = sld [smem:[#allocation0]]
  $region49: #{conv_block.2} parent=0
    _
  %s7 = ssub.s32 1, %s5
  %s8 = scalar_select 0, %s7, %s5
  loop: start=0, step=1, limit=4
  $region2: #{conv_block.2} parent=0 // loop_pre_header
    _
  $region3: #{conv_block.2} parent=0 // loop_header
    %s10 = sphi 0, %s14
    %p11 = scmp.ge.s32.totalorder %s10, 4
    %s17 = sphi 0, %s29
    %s18 = sphi 0, %s25
    %s19 = sphi 0, %s17
    %s20 = sphi 0, %s18
    %s21 = sphi 0, %s19
    %s22 = sphi 0, %s20
    %s32 = sphi 0, %s34
    %s35 = sphi 0, %s32
    %s36 = sphi 0, %s35
    %s52 = sphi 0, %s36
    %s56 = sphi 0, %s56
    %s58 = sphi 0, %s56
    %s59 = sphi 0, %s58
    %s73 = sphi 0, %s59
    %s81 = sphi 0, %s83
    %s84 = sphi 0, %s81
    %s85 = sphi 0, %s84
    %s101 = sphi 0, %s85
    %s109 = sphi 0, %s111
    %s112 = sphi 0, %s109
    %s113 = sphi 0, %s112
    %s129 = sphi 0, %s113
  $region4: #{conv_block.2} parent=0 // loop_header_branch
    %13 = sbr.rel (%p11) target = $region8
  $region5: #{conv_block.2} parent=0 // loop_body
    %s15 = ssub.s32 %s10, 1
    %s16 = ssub.s32 %s10, 2
    %s23 = sadd.s32 1, %s18
    %p24 = scmp.ge.s32.totalorder %s23, 1
    %s25 = scalar_select %p24, 0, %s23
    %s26 = sadd.s32 1, %s17
    %s27 = scalar_select %p24, %s26, %s17
    %p28 = scmp.ge.s32.totalorder %s27, 2
    %s29 = scalar_select %p28, 0, %s27
    %s30 = ssub.s32 %s17, %s29
    %p31 = scmp.eq.s32.totalorder %s30, 0
    %s33 = sadd.s32 %s32, 1
    %s34 = scalar_select %p31, %s32, %s33
    %p37 = pneg %p31
    %p38 = scmp.eq.s32.totalorder %s10, 1
    %p39 = por %p37, %p38
    %p40 = scmp.ne.s32.totalorder %s32, %s35
    %p41 = scmp.eq.s32.totalorder %s10, 0
    %p42 = por %p40, %p41
    %p43 = scmp.ne.s32.totalorder %s32, %s35
    %p44 = scmp.eq.s32.totalorder %s15, 1
    %p45 = por %p43, %p44
    %p46 = scmp.ne.s32.totalorder %s35, %s36
    %p47 = scmp.eq.s32.totalorder %s15, 0
    %p48 = por %p46, %p47
    %p49 = scmp.ne.s32.totalorder %s35, %s36
    %p50 = scmp.eq.s32.totalorder %s16, 1
    %p51 = por %p49, %p50
    %p53 = scmp.ne.s32.totalorder %s36, %s52
    %p54 = scmp.eq.s32.totalorder %s16, 0
    %p55 = por %p53, %p54
    %s57 = sadd.s32 %s56, 1
    %p60 = scmp.eq.s32.totalorder %s10, 1
    %p61 = scmp.ne.s32.totalorder %s56, %s58
    %p62 = scmp.eq.s32.totalorder %s10, 0
    %p63 = por %p61, %p62
    %p64 = scmp.ne.s32.totalorder %s56, %s58
    %p65 = scmp.eq.s32.totalorder %s15, 1
    %p66 = por %p64, %p65
    %p67 = scmp.ne.s32.totalorder %s58, %s59
    %p68 = scmp.eq.s32.totalorder %s15, 0
    %p69 = por %p67, %p68
    %p70 = scmp.ne.s32.totalorder %s58, %s59
    %p71 = scmp.eq.s32.totalorder %s16, 1
    %p72 = por %p70, %p71
    %p74 = scmp.ne.s32.totalorder %s59, %s73
    %p75 = scmp.eq.s32.totalorder %s16, 0
    %p76 = por %p74, %p75
    %s77 = ssub.s32 %s17, %s29
    %s78 = ssub.s32 %s18, %s25
    %s79 = sor.u32 %s77, %s78
    %p80 = scmp.eq.s32.totalorder %s79, 0
    %s82 = sadd.s32 %s81, 1
    %s83 = scalar_select %p80, %s81, %s82
    %p86 = pneg %p80
    %p87 = scmp.eq.s32.totalorder %s10, 1
    %p88 = por %p86, %p87
    %p89 = scmp.ne.s32.totalorder %s81, %s84
    %p90 = scmp.eq.s32.totalorder %s10, 0
    %p91 = por %p89, %p90
    %p92 = scmp.ne.s32.totalorder %s81, %s84
    %p93 = scmp.eq.s32.totalorder %s15, 1
    %p94 = por %p92, %p93
    %p95 = scmp.ne.s32.totalorder %s84, %s85
    %p96 = scmp.eq.s32.totalorder %s15, 0
    %p97 = por %p95, %p96
    %p98 = scmp.ne.s32.totalorder %s84, %s85
    %p99 = scmp.eq.s32.totalorder %s16, 1
    %p100 = por %p98, %p99
    %p102 = scmp.ne.s32.totalorder %s85, %s101
    %p103 = scmp.eq.s32.totalorder %s16, 0
    %p104 = por %p102, %p103
    %s105 = ssub.s32 %s17, %s29
    %s106 = ssub.s32 %s18, %s25
    %s107 = sor.u32 %s105, %s106
    %p108 = scmp.eq.s32.totalorder %s107, 0
    %s110 = sadd.s32 %s109, 1
    %s111 = scalar_select %p108, %s109, %s110
    %p114 = pneg %p108
    %p115 = scmp.eq.s32.totalorder %s10, 1
    %p116 = por %p114, %p115
    %p117 = scmp.ne.s32.totalorder %s109, %s112
    %p118 = scmp.eq.s32.totalorder %s10, 0
    %p119 = por %p117, %p118
    %p120 = scmp.ne.s32.totalorder %s109, %s112
    %p121 = scmp.eq.s32.totalorder %s15, 1
    %p122 = por %p120, %p121
    %p123 = scmp.ne.s32.totalorder %s112, %s113
    %p124 = scmp.eq.s32.totalorder %s15, 0
    %p125 = por %p123, %p124
    %p126 = scmp.ne.s32.totalorder %s112, %s113
    %p127 = scmp.eq.s32.totalorder %s16, 1
    %p128 = por %p126, %p127
    %p130 = scmp.ne.s32.totalorder %s113, %s129
    %p131 = scmp.eq.s32.totalorder %s16, 0
    %p132 = por %p130, %p131
    %p133 = scmp.le.s32.totalorder 1, %s10
    %p134 = scmp.lt.s32.totalorder %s10, 3
    %p135 = pnand %p133, %p134
    %p136 = pneg %p135
    // Predicated region
    $region9: #{conv_block.2} parent=5 // pred_check
      _
    $region10: #{conv_block.2} parent=5 // pred_check_branch
      %138 = sbr.rel (%p135) target = $region12
    $region11: #{conv_block.2} parent=5 // pred_region
      %s139 = ssub.s32 %s10, 1
      // Predicated region
      $region13: #{conv_block.2} parent=11 // pred_check
        %p140 = pneg %p69
      $region14: #{conv_block.2} parent=11 // pred_check_branch
        %142 = sbr.rel (%p140) target = $region16
      $region15: #{conv_block.2} parent=11 // pred_region
        _
      $region16: #{conv_block.2} parent=11 // pred_fallthru
        _
    $region12: #{conv_block.2} parent=5 // pred_fallthru
      _
    %p143 = scmp.lt.s32.totalorder %s10, 2
    // Predicated region
    $region17: #{conv_block.2} parent=5 // pred_check
      %p144 = pneg %p143
    $region18: #{conv_block.2} parent=5 // pred_check_branch
      %146 = sbr.rel (%p144) target = $region20
    $region19: #{conv_block.2} parent=5 // pred_region
      // Predicated region
      $region21: #{conv_block.2} parent=19 // pred_check
        %p147 = pneg %p42
      $region22: #{conv_block.2} parent=19 // pred_check_branch
        %149 = sbr.rel (%p147) target = $region24
      $region23: #{conv_block.2} parent=19 // pred_region
        %p150 = scmp.lt.s32.totalorder %s17, 1
        %s151 = scalar_select %p150, %s17, 1
        %s152 = smul.addr %s151, 54
        %s153 = smul.addr %s152, 4
        %s154 = scalar_lea.vmem %s0, %s153
      $region24: #{conv_block.2} parent=19 // pred_fallthru
        _
    $region20: #{conv_block.2} parent=5 // pred_fallthru
      _
    %p155 = scmp.le.s32.totalorder 1, %s10
    %p156 = scmp.lt.s32.totalorder %s10, 3
    %p157 = pnand %p155, %p156
    %p158 = pneg %p157
    // Predicated region
    $region25: #{conv_block.2} parent=5 // pred_check
      _
    $region26: #{conv_block.2} parent=5 // pred_check_branch
      %160 = sbr.rel (%p157) target = $region28
    $region27: #{conv_block.2} parent=5 // pred_region
      %s161 = ssub.s32 %s10, 1
      %p162 = scmp.lt.s32.totalorder %s19, 1
      %s163 = scalar_select %p162, %s19, 1
      %s164 = smul.addr %s163, 54
      %s165 = smul.addr %s164, 4
      %s166 = scalar_lea.vmem %s0, %s165
      %p167 = pneg %p48
      %p168 = pneg %p45
      %p169 = pneg %p69
      %p170 = pneg %p66
      %p171 = pneg %p97
      %p172 = pneg %p94
      %s173 = smul.u32 16, %s20
      %p174 = scmp.lt.s32.totalorder %s19, 1
      %s175 = scalar_select %p174, %s19, 1
      %p176 = scmp.lt.s32.totalorder %s173, 15
      %s177 = scalar_select %p176, %s173, 15
      %s178 = smul.addr %s177, 2
      %s179 = smul.addr %s175, 32
      %s180 = sadd.s32 %s178, %s179
      %s181 = smul.addr %s180, 8
      %s182 = scalar_lea.vmem %s2, %s181
      %p183 = pneg %p125
      %p184 = pneg %p122
      %p185 = scmp.lt.s32.totalorder %s19, 1
      %s186 = scalar_select %p185, %s19, 1
      %p187 = scmp.lt.s32.totalorder %s20, 0
      %s188 = scalar_select %p187, %s20, 0
      %s189 = sadd.s32 %s188, %s186
      %s190 = smul.addr %s189, 2
      %s191 = scalar_lea.vmem %s3, %s190
      %p192 = scmp.lt.s32.totalorder %s19, 1
      %s193 = scalar_select %p192, %s19, 1
      %s194 = smul.addr %s193, 54
      %s195 = smul.addr %s194, 4
      %s196 = scalar_lea.vmem %s0, %s195
      %s197 = smul.u32 16, %s20
      %p198 = scmp.lt.s32.totalorder %s19, 1
      %s199 = scalar_select %p198, %s19, 1
      %p200 = scmp.lt.s32.totalorder %s197, 15
      %s201 = scalar_select %p200, %s197, 15
      %s202 = smul.addr %s201, 2
      %s203 = smul.addr %s199, 32
      %s204 = sadd.s32 %s202, %s203
      %s205 = smul.addr %s204, 8
      %s206 = scalar_lea.vmem %s2, %s205
      %s207 = smul.u32 16, %s20
      %p208 = scmp.lt.s32.totalorder %s19, 1
      %s209 = scalar_select %p208, %s19, 1
      %p210 = scmp.lt.s32.totalorder %s20, 0
      %s211 = scalar_select %p210, %s20, 0
      %s212 = sadd.s32 %s211, %s209
      %s213 = smul.addr %s212, 2
      %s214 = scalar_lea.vmem %s3, %s213
      %s216 = smul.u32 %s20, 16
      %217 = vst [vmem:[%s206] sm:$0xff] 0.0
      %218 = vst [vmem:[%s206 + $0x8] sm:$0xff] 0.0
      %219 = vst [vmem:[%s206 + $0x10] sm:$0xff] 0.0
      %220 = vst [vmem:[%s206 + $0x18] sm:$0xff] 0.0
      %221 = vst [vmem:[%s206 + $0x20] sm:$0xff] 0.0
      %222 = vst [vmem:[%s206 + $0x28] sm:$0xff] 0.0
      %223 = vst [vmem:[%s206 + $0x30] sm:$0xff] 0.0
      %224 = vst [vmem:[%s206 + $0x38] sm:$0xff] 0.0
      %225 = vst [vmem:[%s206 + $0x40] sm:$0xff] 0.0
      %226 = vst [vmem:[%s206 + $0x48] sm:$0xff] 0.0
      %227 = vst [vmem:[%s206 + $0x50] sm:$0xff] 0.0
      %228 = vst [vmem:[%s206 + $0x58] sm:$0xff] 0.0
      %229 = vst [vmem:[%s206 + $0x60] sm:$0xff] 0.0
      %230 = vst [vmem:[%s206 + $0x68] sm:$0xff] 0.0
      %231 = vst [vmem:[%s206 + $0x70] sm:$0xff] 0.0
      %232 = vst [vmem:[%s206 + $0x78] sm:$0xff] 0.0
      %233 = vst [vmem:[%s206 + $0x80] sm:$0xff] 0.0
      %234 = vst [vmem:[%s206 + $0x88] sm:$0xff] 0.0
      %235 = vst [vmem:[%s206 + $0x90] sm:$0xff] 0.0
      %236 = vst [vmem:[%s206 + $0x98] sm:$0xff] 0.0
      %237 = vst [vmem:[%s206 + $0xa0] sm:$0xff] 0.0
      %238 = vst [vmem:[%s206 + $0xa8] sm:$0xff] 0.0
      %239 = vst [vmem:[%s206 + $0xb0] sm:$0xff] 0.0
      %240 = vst [vmem:[%s206 + $0xb8] sm:$0xff] 0.0
      %241 = vst [vmem:[%s206 + $0xc0] sm:$0xff] 0.0
      %242 = vst [vmem:[%s206 + $0xc8] sm:$0xff] 0.0
      %243 = vst [vmem:[%s206 + $0xd0] sm:$0xff] 0.0
      %244 = vst [vmem:[%s206 + $0xd8] sm:$0xff] 0.0
      %245 = vst [vmem:[%s206 + $0xe0] sm:$0xff] 0.0
      %246 = vst [vmem:[%s206 + $0xe8] sm:$0xff] 0.0
      %247 = vst [vmem:[%s206 + $0xf0] sm:$0xff] 0.0
      %248 = vst [vmem:[%s206 + $0xf8] sm:$0xff] 0.0
      %s249 = smul.u32 %s216, 3
      %s250 = smul.addr %s249, 4
      %s251 = scalar_lea.vmem %s196, %s250
      %v252 = vld [vmem:[%s251] sm:$0xf]
      %v253 = vld [vmem:[%s251 + $0x4] sm:$0xf]
      %v254 = vld [vmem:[%s251 + $0x8] sm:$0x1]
      %v255 = vld [vmem:[%s251 + $0xc] sm:$0xf]
      %v256 = vld [vmem:[%s251 + $0x10] sm:$0xf]
      %v257 = vld [vmem:[%s251 + $0x14] sm:$0x1]
      %v258 = vld [vmem:[%s251 + $0x18] sm:$0xf]
      %v259 = vld [vmem:[%s251 + $0x1c] sm:$0xf]
      %v260 = vld [vmem:[%s251 + $0x20] sm:$0x1]
      %v261 = vld [vmem:[%s251 + $0x24] sm:$0xf]
      %v262 = vld [vmem:[%s251 + $0x28] sm:$0xf]
      %v263 = vld [vmem:[%s251 + $0x2c] sm:$0x1]
      %v264 = vld [vmem:[%s251 + $0x30] sm:$0xf]
      %v265 = vld [vmem:[%s251 + $0x34] sm:$0xf]
      %v266 = vld [vmem:[%s251 + $0x38] sm:$0x1]
      %v267 = vld [vmem:[%s251 + $0x3c] sm:$0xf]
      %v268 = vld [vmem:[%s251 + $0x40] sm:$0xf]
      %v269 = vld [vmem:[%s251 + $0x44] sm:$0x1]
      %v270 = vld [vmem:[%s251 + $0x48] sm:$0xf]
      %v271 = vld [vmem:[%s251 + $0x4c] sm:$0xf]
      %v272 = vld [vmem:[%s251 + $0x50] sm:$0x1]
      %v273 = vld [vmem:[%s251 + $0x54] sm:$0xf]
      %v274 = vld [vmem:[%s251 + $0x58] sm:$0xf]
      %v275 = vld [vmem:[%s251 + $0x5c] sm:$0x1]
      %v276 = vld [vmem:[%s251 + $0x60] sm:$0xf]
      %v277 = vld [vmem:[%s251 + $0x64] sm:$0xf]
      %v278 = vld [vmem:[%s251 + $0x68] sm:$0x1]
      %v279 = vld [vmem:[%s251 + $0x6c] sm:$0xf]
      %v280 = vld [vmem:[%s251 + $0x70] sm:$0xf]
      %v281 = vld [vmem:[%s251 + $0x74] sm:$0x1]
      %v282 = vld [vmem:[%s251 + $0x78] sm:$0xf]
      %v283 = vld [vmem:[%s251 + $0x7c] sm:$0xf]
      %v284 = vld [vmem:[%s251 + $0x80] sm:$0x1]
      %v285 = vld [vmem:[%s251 + $0x84] sm:$0xf]
      %v286 = vld [vmem:[%s251 + $0x88] sm:$0xf]
      %v287 = vld [vmem:[%s251 + $0x8c] sm:$0x1]
      %v288 = vld [vmem:[%s251 + $0x90] sm:$0xf]
      %v289 = vld [vmem:[%s251 + $0x94] sm:$0xf]
      %v290 = vld [vmem:[%s251 + $0x98] sm:$0x1]
      %v291 = vld [vmem:[%s251 + $0x9c] sm:$0xf]
      %v292 = vld [vmem:[%s251 + $0xa0] sm:$0xf]
      %v293 = vld [vmem:[%s251 + $0xa4] sm:$0x1]
      %v294 = vld [vmem:[%s251 + $0xa8] sm:$0xf]
      %v295 = vld [vmem:[%s251 + $0xac] sm:$0xf]
      %v296 = vld [vmem:[%s251 + $0xb0] sm:$0x1]
      %v297 = vld [vmem:[%s251 + $0xb4] sm:$0xf]
      %v298 = vld [vmem:[%s251 + $0xb8] sm:$0xf]
      %v299 = vld [vmem:[%s251 + $0xbc] sm:$0x1]
      %v300 = vld [vmem:[%s1] sm:$0x3]
      %v301 = vld [vmem:[%s206] sm:$0xff]
      %v302 = vld [vmem:[%s206 + $0x8] sm:$0xff]
      %v303 = vld [vmem:[%s206 + $0x10] sm:$0xff]
      %v304 = vld [vmem:[%s206 + $0x18] sm:$0xff]
      %v305 = vld [vmem:[%s206 + $0x20] sm:$0xff]
      %v306 = vld [vmem:[%s206 + $0x28] sm:$0xff]
      %v307 = vld [vmem:[%s206 + $0x30] sm:$0xff]
      %v308 = vld [vmem:[%s206 + $0x38] sm:$0xff]
      %v309 = vld [vmem:[%s206 + $0x40] sm:$0xff]
      %v310 = vld [vmem:[%s206 + $0x48] sm:$0xff]
      %v311 = vld [vmem:[%s206 + $0x50] sm:$0xff]
      %v312 = vld [vmem:[%s206 + $0x58] sm:$0xff]
      %v313 = vld [vmem:[%s206 + $0x60] sm:$0xff]
      %v314 = vld [vmem:[%s206 + $0x68] sm:$0xff]
      %v315 = vld [vmem:[%s206 + $0x70] sm:$0xff]
      %v316 = vld [vmem:[%s206 + $0x78] sm:$0xff]
      %v317 = vld [vmem:[%s206 + $0x80] sm:$0xff]
      %v318 = vld [vmem:[%s206 + $0x88] sm:$0xff]
      %v319 = vld [vmem:[%s206 + $0x90] sm:$0xff]
      %v320 = vld [vmem:[%s206 + $0x98] sm:$0xff]
      %v321 = vld [vmem:[%s206 + $0xa0] sm:$0xff]
      %v322 = vld [vmem:[%s206 + $0xa8] sm:$0xff]
      %v323 = vld [vmem:[%s206 + $0xb0] sm:$0xff]
      %v324 = vld [vmem:[%s206 + $0xb8] sm:$0xff]
      %v325 = vld [vmem:[%s206 + $0xc0] sm:$0xff]
      %v326 = vld [vmem:[%s206 + $0xc8] sm:$0xff]
      %v327 = vld [vmem:[%s206 + $0xd0] sm:$0xff]
      %v328 = vld [vmem:[%s206 + $0xd8] sm:$0xff]
      %v329 = vld [vmem:[%s206 + $0xe0] sm:$0xff]
      %v330 = vld [vmem:[%s206 + $0xe8] sm:$0xff]
      %v331 = vld [vmem:[%s206 + $0xf0] sm:$0xff]
      %v332 = vld [vmem:[%s206 + $0xf8] sm:$0xff]
      %v335 = vunpack.c.l.b16 %v252
      %v336 = vunpack.c.l.b16 %v253
      %v337 = vpack.c.b16 %v336, %v335
      %vm338 = vcmask 31744
      %v340 = vsel %vm338, %v337, 0
      %vm342 = vcmask 1041408
      %v344 = vsel %vm342, %v300, 0
      %346 = vmatpush.bf16.msra.mxu0 0
      %347 = vmatpush.bf16.msra.mxu0 0
      %348 = vmatpush.bf16.msra.mxu0 0
      %349 = vmatpush.bf16.msra.mxu0 0
      %350 = vmatpush.bf16.msra.mxu0 0
      %351 = vmatpush.bf16.msra.mxu0 0
      %352 = vmatpush.bf16.msra.mxu0 0
      %353 = vmatpush.bf16.msra.mxu0 %v344
      %354 = vmatmul.bf16.gmra.mxu0 %v340
      %v355 = vpop.f32.mrf.mxu0
      %v356 = vadd.f32 0.0, %v355
      %v357 = vpop.f32.mrf.mxu0
      %v358 = vadd.f32 0.0, %v357
      %359 = vdwg.mxu0
      %v362 = vunpack.c.l.b16 %v255
      %v363 = vunpack.c.l.b16 %v256
      %v364 = vpack.c.b16 %v363, %v362
      %v366 = vsel %vm338, %v364, 0
      %368 = vmatpush.bf16.msra.mxu0 0
      %369 = vmatpush.bf16.msra.mxu0 0
      %370 = vmatpush.bf16.msra.mxu0 0
      %371 = vmatpush.bf16.msra.mxu0 0
      %372 = vmatpush.bf16.msra.mxu0 0
      %373 = vmatpush.bf16.msra.mxu0 0
      %374 = vmatpush.bf16.msra.mxu0 0
      %375 = vmatpush.bf16.msra.mxu0 %v344
      %376 = vmatmul.bf16.gmra.mxu0 %v366
      %v377 = vpop.f32.mrf.mxu0
      %v378 = vadd.f32 0.0, %v377
      %v379 = vpop.f32.mrf.mxu0
      %v380 = vadd.f32 0.0, %v379
      %381 = vdwg.mxu0
      %v384 = vunpack.c.l.b16 %v258
      %v385 = vunpack.c.l.b16 %v259
      %v386 = vpack.c.b16 %v385, %v384
      %v388 = vsel %vm338, %v386, 0
      %390 = vmatpush.bf16.msra.mxu0 0
      %391 = vmatpush.bf16.msra.mxu0 0
      %392 = vmatpush.bf16.msra.mxu0 0
      %393 = vmatpush.bf16.msra.mxu0 0
      %394 = vmatpush.bf16.msra.mxu0 0
      %395 = vmatpush.bf16.msra.mxu0 0
      %396 = vmatpush.bf16.msra.mxu0 0
      %397 = vmatpush.bf16.msra.mxu0 %v344
      %398 = vmatmul.bf16.gmra.mxu0 %v388
      %v399 = vpop.f32.mrf.mxu0
      %v400 = vadd.f32 0.0, %v399
      %v401 = vpop.f32.mrf.mxu0
      %v402 = vadd.f32 0.0, %v401
      %403 = vdwg.mxu0
      %v406 = vunpack.c.l.b16 %v261
      %v407 = vunpack.c.l.b16 %v262
      %v408 = vpack.c.b16 %v407, %v406
      %v410 = vsel %vm338, %v408, 0
      %412 = vmatpush.bf16.msra.mxu0 0
      %413 = vmatpush.bf16.msra.mxu0 0
      %414 = vmatpush.bf16.msra.mxu0 0
      %415 = vmatpush.bf16.msra.mxu0 0
      %416 = vmatpush.bf16.msra.mxu0 0
      %417 = vmatpush.bf16.msra.mxu0 0
      %418 = vmatpush.bf16.msra.mxu0 0
      %419 = vmatpush.bf16.msra.mxu0 %v344
      %420 = vmatmul.bf16.gmra.mxu0 %v410
      %v421 = vpop.f32.mrf.mxu0
      %v422 = vadd.f32 0.0, %v421
      %v423 = vpop.f32.mrf.mxu0
      %v424 = vadd.f32 0.0, %v423
      %425 = vdwg.mxu0
      %v428 = vunpack.c.l.b16 %v264
      %v429 = vunpack.c.l.b16 %v265
      %v430 = vpack.c.b16 %v429, %v428
      %v432 = vsel %vm338, %v430, 0
      %434 = vmatpush.bf16.msra.mxu0 0
      %435 = vmatpush.bf16.msra.mxu0 0
      %436 = vmatpush.bf16.msra.mxu0 0
      %437 = vmatpush.bf16.msra.mxu0 0
      %438 = vmatpush.bf16.msra.mxu0 0
      %439 = vmatpush.bf16.msra.mxu0 0
      %440 = vmatpush.bf16.msra.mxu0 0
      %441 = vmatpush.bf16.msra.mxu0 %v344
      %442 = vmatmul.bf16.gmra.mxu0 %v432
      %v443 = vpop.f32.mrf.mxu0
      %v444 = vadd.f32 0.0, %v443
      %v445 = vpop.f32.mrf.mxu0
      %v446 = vadd.f32 0.0, %v445
      %447 = vdwg.mxu0
      %v450 = vunpack.c.l.b16 %v267
      %v451 = vunpack.c.l.b16 %v268
      %v452 = vpack.c.b16 %v451, %v450
      %v454 = vsel %vm338, %v452, 0
      %456 = vmatpush.bf16.msra.mxu0 0
      %457 = vmatpush.bf16.msra.mxu0 0
      %458 = vmatpush.bf16.msra.mxu0 0
      %459 = vmatpush.bf16.msra.mxu0 0
      %460 = vmatpush.bf16.msra.mxu0 0
      %461 = vmatpush.bf16.msra.mxu0 0
      %462 = vmatpush.bf16.msra.mxu0 0
      %463 = vmatpush.bf16.msra.mxu0 %v344
      %464 = vmatmul.bf16.gmra.mxu0 %v454
      %v465 = vpop.f32.mrf.mxu0
      %v466 = vadd.f32 0.0, %v465
      %v467 = vpop.f32.mrf.mxu0
      %v468 = vadd.f32 0.0, %v467
      %469 = vdwg.mxu0
      %v472 = vunpack.c.l.b16 %v270
      %v473 = vunpack.c.l.b16 %v271
      %v474 = vpack.c.b16 %v473, %v472
      %v476 = vsel %vm338, %v474, 0
      %478 = vmatpush.bf16.msra.mxu0 0
      %479 = vmatpush.bf16.msra.mxu0 0
      %480 = vmatpush.bf16.msra.mxu0 0
      %481 = vmatpush.bf16.msra.mxu0 0
      %482 = vmatpush.bf16.msra.mxu0 0
      %483 = vmatpush.bf16.msra.mxu0 0
      %484 = vmatpush.bf16.msra.mxu0 0
      %485 = vmatpush.bf16.msra.mxu0 %v344
      %486 = vmatmul.bf16.gmra.mxu0 %v476
      %v487 = vpop.f32.mrf.mxu0
      %v488 = vadd.f32 0.0, %v487
      %v489 = vpop.f32.mrf.mxu0
      %v490 = vadd.f32 0.0, %v489
      %491 = vdwg.mxu0
      %v494 = vunpack.c.l.b16 %v273
      %v495 = vunpack.c.l.b16 %v274
      %v496 = vpack.c.b16 %v495, %v494
      %v498 = vsel %vm338, %v496, 0
      %500 = vmatpush.bf16.msra.mxu0 0
      %501 = vmatpush.bf16.msra.mxu0 0
      %502 = vmatpush.bf16.msra.mxu0 0
      %503 = vmatpush.bf16.msra.mxu0 0
      %504 = vmatpush.bf16.msra.mxu0 0
      %505 = vmatpush.bf16.msra.mxu0 0
      %506 = vmatpush.bf16.msra.mxu0 0
      %507 = vmatpush.bf16.msra.mxu0 %v344
      %508 = vmatmul.bf16.gmra.mxu0 %v498
      %v509 = vpop.f32.mrf.mxu0
      %v510 = vadd.f32 0.0, %v509
      %v511 = vpop.f32.mrf.mxu0
      %v512 = vadd.f32 0.0, %v511
      %513 = vdwg.mxu0
      %v516 = vunpack.c.l.b16 %v276
      %v517 = vunpack.c.l.b16 %v277
      %v518 = vpack.c.b16 %v517, %v516
      %v520 = vsel %vm338, %v518, 0
      %522 = vmatpush.bf16.msra.mxu0 0
      %523 = vmatpush.bf16.msra.mxu0 0
      %524 = vmatpush.bf16.msra.mxu0 0
      %525 = vmatpush.bf16.msra.mxu0 0
      %526 = vmatpush.bf16.msra.mxu0 0
      %527 = vmatpush.bf16.msra.mxu0 0
      %528 = vmatpush.bf16.msra.mxu0 0
      %529 = vmatpush.bf16.msra.mxu0 %v344
      %530 = vmatmul.bf16.gmra.mxu0 %v520
      %v531 = vpop.f32.mrf.mxu0
      %v532 = vadd.f32 0.0, %v531
      %v533 = vpop.f32.mrf.mxu0
      %v534 = vadd.f32 0.0, %v533
      %535 = vdwg.mxu0
      %v538 = vunpack.c.l.b16 %v279
      %v539 = vunpack.c.l.b16 %v280
      %v540 = vpack.c.b16 %v539, %v538
      %v542 = vsel %vm338, %v540, 0
      %544 = vmatpush.bf16.msra.mxu0 0
      %545 = vmatpush.bf16.msra.mxu0 0
      %546 = vmatpush.bf16.msra.mxu0 0
      %547 = vmatpush.bf16.msra.mxu0 0
      %548 = vmatpush.bf16.msra.mxu0 0
      %549 = vmatpush.bf16.msra.mxu0 0
      %550 = vmatpush.bf16.msra.mxu0 0
      %551 = vmatpush.bf16.msra.mxu0 %v344
      %552 = vmatmul.bf16.gmra.mxu0 %v542
      %v553 = vpop.f32.mrf.mxu0
      %v554 = vadd.f32 0.0, %v553
      %v555 = vpop.f32.mrf.mxu0
      %v556 = vadd.f32 0.0, %v555
      %557 = vdwg.mxu0
      %v560 = vunpack.c.l.b16 %v282
      %v561 = vunpack.c.l.b16 %v283
      %v562 = vpack.c.b16 %v561, %v560
      %v564 = vsel %vm338, %v562, 0
      %566 = vmatpush.bf16.msra.mxu0 0
      %567 = vmatpush.bf16.msra.mxu0 0
      %568 = vmatpush.bf16.msra.mxu0 0
      %569 = vmatpush.bf16.msra.mxu0 0
      %570 = vmatpush.bf16.msra.mxu0 0
      %571 = vmatpush.bf16.msra.mxu0 0
      %572 = vmatpush.bf16.msra.mxu0 0
      %573 = vmatpush.bf16.msra.mxu0 %v344
      %574 = vmatmul.bf16.gmra.mxu0 %v564
      %v575 = vpop.f32.mrf.mxu0
      %v576 = vadd.f32 0.0, %v575
      %v577 = vpop.f32.mrf.mxu0
      %v578 = vadd.f32 0.0, %v577
      %579 = vdwg.mxu0
      %v582 = vunpack.c.l.b16 %v285
      %v583 = vunpack.c.l.b16 %v286
      %v584 = vpack.c.b16 %v583, %v582
      %v586 = vsel %vm338, %v584, 0
      %588 = vmatpush.bf16.msra.mxu0 0
      %589 = vmatpush.bf16.msra.mxu0 0
      %590 = vmatpush.bf16.msra.mxu0 0
      %591 = vmatpush.bf16.msra.mxu0 0
      %592 = vmatpush.bf16.msra.mxu0 0
      %593 = vmatpush.bf16.msra.mxu0 0
      %594 = vmatpush.bf16.msra.mxu0 0
      %595 = vmatpush.bf16.msra.mxu0 %v344
      %596 = vmatmul.bf16.gmra.mxu0 %v586
      %v597 = vpop.f32.mrf.mxu0
      %v598 = vadd.f32 0.0, %v597
      %v599 = vpop.f32.mrf.mxu0
      %v600 = vadd.f32 0.0, %v599
      %601 = vdwg.mxu0
      %v604 = vunpack.c.l.b16 %v288
      %v605 = vunpack.c.l.b16 %v289
      %v606 = vpack.c.b16 %v605, %v604
      %v608 = vsel %vm338, %v606, 0
      %610 = vmatpush.bf16.msra.mxu0 0
      %611 = vmatpush.bf16.msra.mxu0 0
      %612 = vmatpush.bf16.msra.mxu0 0
      %613 = vmatpush.bf16.msra.mxu0 0
      %614 = vmatpush.bf16.msra.mxu0 0
      %615 = vmatpush.bf16.msra.mxu0 0
      %616 = vmatpush.bf16.msra.mxu0 0
      %617 = vmatpush.bf16.msra.mxu0 %v344
      %618 = vmatmul.bf16.gmra.mxu0 %v608
      %v619 = vpop.f32.mrf.mxu0
      %v620 = vadd.f32 0.0, %v619
      %v621 = vpop.f32.mrf.mxu0
      %v622 = vadd.f32 0.0, %v621
      %623 = vdwg.mxu0
      %v626 = vunpack.c.l.b16 %v291
      %v627 = vunpack.c.l.b16 %v292
      %v628 = vpack.c.b16 %v627, %v626
      %v630 = vsel %vm338, %v628, 0
      %632 = vmatpush.bf16.msra.mxu0 0
      %633 = vmatpush.bf16.msra.mxu0 0
      %634 = vmatpush.bf16.msra.mxu0 0
      %635 = vmatpush.bf16.msra.mxu0 0
      %636 = vmatpush.bf16.msra.mxu0 0
      %637 = vmatpush.bf16.msra.mxu0 0
      %638 = vmatpush.bf16.msra.mxu0 0
      %639 = vmatpush.bf16.msra.mxu0 %v344
      %640 = vmatmul.bf16.gmra.mxu0 %v630
      %v641 = vpop.f32.mrf.mxu0
      %v642 = vadd.f32 0.0, %v641
      %v643 = vpop.f32.mrf.mxu0
      %v644 = vadd.f32 0.0, %v643
      %645 = vdwg.mxu0
      %v648 = vunpack.c.l.b16 %v294
      %v649 = vunpack.c.l.b16 %v295
      %v650 = vpack.c.b16 %v649, %v648
      %v652 = vsel %vm338, %v650, 0
      %654 = vmatpush.bf16.msra.mxu0 0
      %655 = vmatpush.bf16.msra.mxu0 0
      %656 = vmatpush.bf16.msra.mxu0 0
      %657 = vmatpush.bf16.msra.mxu0 0
      %658 = vmatpush.bf16.msra.mxu0 0
      %659 = vmatpush.bf16.msra.mxu0 0
      %660 = vmatpush.bf16.msra.mxu0 0
      %661 = vmatpush.bf16.msra.mxu0 %v344
      %662 = vmatmul.bf16.gmra.mxu0 %v652
      %v663 = vpop.f32.mrf.mxu0
      %v664 = vadd.f32 0.0, %v663
      %v665 = vpop.f32.mrf.mxu0
      %v666 = vadd.f32 0.0, %v665
      %667 = vdwg.mxu0
      %v670 = vunpack.c.l.b16 %v297
      %v671 = vunpack.c.l.b16 %v298
      %v672 = vpack.c.b16 %v671, %v670
      %v674 = vsel %vm338, %v672, 0
      %676 = vmatpush.bf16.msra.mxu0 0
      %677 = vmatpush.bf16.msra.mxu0 0
      %678 = vmatpush.bf16.msra.mxu0 0
      %679 = vmatpush.bf16.msra.mxu0 0
      %680 = vmatpush.bf16.msra.mxu0 0
      %681 = vmatpush.bf16.msra.mxu0 0
      %682 = vmatpush.bf16.msra.mxu0 0
      %683 = vmatpush.bf16.msra.mxu0 %v344
      %684 = vmatmul.bf16.gmra.mxu0 %v674
      %v685 = vpop.f32.mrf.mxu0
      %v686 = vadd.f32 0.0, %v685
      %v687 = vpop.f32.mrf.mxu0
      %v688 = vadd.f32 0.0, %v687
      %689 = vdwg.mxu0
      %v690 = vadd.f32 %v301, %v356
      %v691 = vadd.f32 %v302, %v358
      %v692 = vadd.f32 %v303, %v378
      %v693 = vadd.f32 %v304, %v380
      %v694 = vadd.f32 %v305, %v400
      %v695 = vadd.f32 %v306, %v402
      %v696 = vadd.f32 %v307, %v422
      %v697 = vadd.f32 %v308, %v424
      %v698 = vadd.f32 %v309, %v444
      %v699 = vadd.f32 %v310, %v446
      %v700 = vadd.f32 %v311, %v466
      %v701 = vadd.f32 %v312, %v468
      %v702 = vadd.f32 %v313, %v488
      %v703 = vadd.f32 %v314, %v490
      %v704 = vadd.f32 %v315, %v510
      %v705 = vadd.f32 %v316, %v512
      %v706 = vadd.f32 %v317, %v532
      %v707 = vadd.f32 %v318, %v534
      %v708 = vadd.f32 %v319, %v554
      %v709 = vadd.f32 %v320, %v556
      %v710 = vadd.f32 %v321, %v576
      %v711 = vadd.f32 %v322, %v578
      %v712 = vadd.f32 %v323, %v598
      %v713 = vadd.f32 %v324, %v600
      %v714 = vadd.f32 %v325, %v620
      %v715 = vadd.f32 %v326, %v622
      %v716 = vadd.f32 %v327, %v642
      %v717 = vadd.f32 %v328, %v644
      %v718 = vadd.f32 %v329, %v664
      %v719 = vadd.f32 %v330, %v666
      %v720 = vadd.f32 %v331, %v686
      %v721 = vadd.f32 %v332, %v688
      %722 = vst [vmem:[%s206] sm:$0xff] %v690
      %723 = vst [vmem:[%s206 + $0x8] sm:$0xff] %v691
      %724 = vst [vmem:[%s206 + $0x10] sm:$0xff] %v692
      %725 = vst [vmem:[%s206 + $0x18] sm:$0xff] %v693
      %726 = vst [vmem:[%s206 + $0x20] sm:$0xff] %v694
      %727 = vst [vmem:[%s206 + $0x28] sm:$0xff] %v695
      %728 = vst [vmem:[%s206 + $0x30] sm:$0xff] %v696
      %729 = vst [vmem:[%s206 + $0x38] sm:$0xff] %v697
      %730 = vst [vmem:[%s206 + $0x40] sm:$0xff] %v698
      %731 = vst [vmem:[%s206 + $0x48] sm:$0xff] %v699
      %732 = vst [vmem:[%s206 + $0x50] sm:$0xff] %v700
      %733 = vst [vmem:[%s206 + $0x58] sm:$0xff] %v701
      %734 = vst [vmem:[%s206 + $0x60] sm:$0xff] %v702
      %735 = vst [vmem:[%s206 + $0x68] sm:$0xff] %v703
      %736 = vst [vmem:[%s206 + $0x70] sm:$0xff] %v704
      %737 = vst [vmem:[%s206 + $0x78] sm:$0xff] %v705
      %738 = vst [vmem:[%s206 + $0x80] sm:$0xff] %v706
      %739 = vst [vmem:[%s206 + $0x88] sm:$0xff] %v707
      %740 = vst [vmem:[%s206 + $0x90] sm:$0xff] %v708
      %741 = vst [vmem:[%s206 + $0x98] sm:$0xff] %v709
      %742 = vst [vmem:[%s206 + $0xa0] sm:$0xff] %v710
      %743 = vst [vmem:[%s206 + $0xa8] sm:$0xff] %v711
      %744 = vst [vmem:[%s206 + $0xb0] sm:$0xff] %v712
      %745 = vst [vmem:[%s206 + $0xb8] sm:$0xff] %v713
      %746 = vst [vmem:[%s206 + $0xc0] sm:$0xff] %v714
      %747 = vst [vmem:[%s206 + $0xc8] sm:$0xff] %v715
      %748 = vst [vmem:[%s206 + $0xd0] sm:$0xff] %v716
      %749 = vst [vmem:[%s206 + $0xd8] sm:$0xff] %v717
      %750 = vst [vmem:[%s206 + $0xe0] sm:$0xff] %v718
      %751 = vst [vmem:[%s206 + $0xe8] sm:$0xff] %v719
      %752 = vst [vmem:[%s206 + $0xf0] sm:$0xff] %v720
      %753 = vst [vmem:[%s206 + $0xf8] sm:$0xff] %v721
      %s754 = scalar_lea.vmem %s1, 2
      %v755 = vld [vmem:[%s754] sm:$0x3]
      %v756 = vld [vmem:[%s206] sm:$0xff]
      %v757 = vld [vmem:[%s206 + $0x8] sm:$0xff]
      %v758 = vld [vmem:[%s206 + $0x10] sm:$0xff]
      %v759 = vld [vmem:[%s206 + $0x18] sm:$0xff]
      %v760 = vld [vmem:[%s206 + $0x20] sm:$0xff]
      %v761 = vld [vmem:[%s206 + $0x28] sm:$0xff]
      %v762 = vld [vmem:[%s206 + $0x30] sm:$0xff]
      %v763 = vld [vmem:[%s206 + $0x38] sm:$0xff]
      %v764 = vld [vmem:[%s206 + $0x40] sm:$0xff]
      %v765 = vld [vmem:[%s206 + $0x48] sm:$0xff]
      %v766 = vld [vmem:[%s206 + $0x50] sm:$0xff]
      %v767 = vld [vmem:[%s206 + $0x58] sm:$0xff]
      %v768 = vld [vmem:[%s206 + $0x60] sm:$0xff]
      %v769 = vld [vmem:[%s206 + $0x68] sm:$0xff]
      %v770 = vld [vmem:[%s206 + $0x70] sm:$0xff]
      %v771 = vld [vmem:[%s206 + $0x78] sm:$0xff]
      %v772 = vld [vmem:[%s206 + $0x80] sm:$0xff]
      %v773 = vld [vmem:[%s206 + $0x88] sm:$0xff]
      %v774 = vld [vmem:[%s206 + $0x90] sm:$0xff]
      %v775 = vld [vmem:[%s206 + $0x98] sm:$0xff]
      %v776 = vld [vmem:[%s206 + $0xa0] sm:$0xff]
      %v777 = vld [vmem:[%s206 + $0xa8] sm:$0xff]
      %v778 = vld [vmem:[%s206 + $0xb0] sm:$0xff]
      %v779 = vld [vmem:[%s206 + $0xb8] sm:$0xff]
      %v780 = vld [vmem:[%s206 + $0xc0] sm:$0xff]
      %v781 = vld [vmem:[%s206 + $0xc8] sm:$0xff]
      %v782 = vld [vmem:[%s206 + $0xd0] sm:$0xff]
      %v783 = vld [vmem:[%s206 + $0xd8] sm:$0xff]
      %v784 = vld [vmem:[%s206 + $0xe0] sm:$0xff]
      %v785 = vld [vmem:[%s206 + $0xe8] sm:$0xff]
      %v786 = vld [vmem:[%s206 + $0xf0] sm:$0xff]
      %v787 = vld [vmem:[%s206 + $0xf8] sm:$0xff]
      %v789 = vunpack.c.l.b16 %v254
      %v790 = vpack.c.b16 %v789, %v789
      %vm791 = vsmask.f32 7424
      %v792 = vshrl.u32 %v337, 16
      %v794 = vshll.u32 %v337, 16
      %v796 = vrot.slane %v794, 1
      %v797 = vor.u32 %v792, %v796
      %v799 = vshll.u32 %v790, 16
      %v801 = vrot.slane %v799, 1
      %v802 = vsel %vm791, %v797, %v801
      %v804 = vsel %vm338, %v802, 0
      %v807 = vsel %vm342, %v755, 0
      %809 = vmatpush.bf16.msra.mxu0 0
      %810 = vmatpush.bf16.msra.mxu0 0
      %811 = vmatpush.bf16.msra.mxu0 0
      %812 = vmatpush.bf16.msra.mxu0 0
      %813 = vmatpush.bf16.msra.mxu0 0
      %814 = vmatpush.bf16.msra.mxu0 0
      %815 = vmatpush.bf16.msra.mxu0 0
      %816 = vmatpush.bf16.msra.mxu0 %v807
      %817 = vmatmul.bf16.gmra.mxu0 %v804
      %v818 = vpop.f32.mrf.mxu0
      %v819 = vadd.f32 0.0, %v818
      %v820 = vpop.f32.mrf.mxu0
      %v821 = vadd.f32 0.0, %v820
      %822 = vdwg.mxu0
      %v824 = vunpack.c.l.b16 %v257
      %v825 = vpack.c.b16 %v824, %v824
      %v826 = vshrl.u32 %v364, 16
      %v828 = vshll.u32 %v364, 16
      %v830 = vrot.slane %v828, 1
      %v831 = vor.u32 %v826, %v830
      %v833 = vshll.u32 %v825, 16
      %v835 = vrot.slane %v833, 1
      %v836 = vsel %vm791, %v831, %v835
      %v838 = vsel %vm338, %v836, 0
      %840 = vmatpush.bf16.msra.mxu0 0
      %841 = vmatpush.bf16.msra.mxu0 0
      %842 = vmatpush.bf16.msra.mxu0 0
      %843 = vmatpush.bf16.msra.mxu0 0
      %844 = vmatpush.bf16.msra.mxu0 0
      %845 = vmatpush.bf16.msra.mxu0 0
      %846 = vmatpush.bf16.msra.mxu0 0
      %847 = vmatpush.bf16.msra.mxu0 %v807
      %848 = vmatmul.bf16.gmra.mxu0 %v838
      %v849 = vpop.f32.mrf.mxu0
      %v850 = vadd.f32 0.0, %v849
      %v851 = vpop.f32.mrf.mxu0
      %v852 = vadd.f32 0.0, %v851
      %853 = vdwg.mxu0
      %v855 = vunpack.c.l.b16 %v260
      %v856 = vpack.c.b16 %v855, %v855
      %v857 = vshrl.u32 %v386, 16
      %v859 = vshll.u32 %v386, 16
      %v861 = vrot.slane %v859, 1
      %v862 = vor.u32 %v857, %v861
      %v864 = vshll.u32 %v856, 16
      %v866 = vrot.slane %v864, 1
      %v867 = vsel %vm791, %v862, %v866
      %v869 = vsel %vm338, %v867, 0
      %871 = vmatpush.bf16.msra.mxu0 0
      %872 = vmatpush.bf16.msra.mxu0 0
      %873 = vmatpush.bf16.msra.mxu0 0
      %874 = vmatpush.bf16.msra.mxu0 0
      %875 = vmatpush.bf16.msra.mxu0 0
      %876 = vmatpush.bf16.msra.mxu0 0
      %877 = vmatpush.bf16.msra.mxu0 0
      %878 = vmatpush.bf16.msra.mxu0 %v807
      %879 = vmatmul.bf16.gmra.mxu0 %v869
      %v880 = vpop.f32.mrf.mxu0
      %v881 = vadd.f32 0.0, %v880
      %v882 = vpop.f32.mrf.mxu0
      %v883 = vadd.f32 0.0, %v882
      %884 = vdwg.mxu0
      %v886 = vunpack.c.l.b16 %v263
      %v887 = vpack.c.b16 %v886, %v886
      %v888 = vshrl.u32 %v408, 16
      %v890 = vshll.u32 %v408, 16
      %v892 = vrot.slane %v890, 1
      %v893 = vor.u32 %v888, %v892
      %v895 = vshll.u32 %v887, 16
      %v897 = vrot.slane %v895, 1
      %v898 = vsel %vm791, %v893, %v897
      %v900 = vsel %vm338, %v898, 0
      %902 = vmatpush.bf16.msra.mxu0 0
      %903 = vmatpush.bf16.msra.mxu0 0
      %904 = vmatpush.bf16.msra.mxu0 0
      %905 = vmatpush.bf16.msra.mxu0 0
      %906 = vmatpush.bf16.msra.mxu0 0
      %907 = vmatpush.bf16.msra.mxu0 0
      %908 = vmatpush.bf16.msra.mxu0 0
      %909 = vmatpush.bf16.msra.mxu0 %v807
      %910 = vmatmul.bf16.gmra.mxu0 %v900
      %v911 = vpop.f32.mrf.mxu0
      %v912 = vadd.f32 0.0, %v911
      %v913 = vpop.f32.mrf.mxu0
      %v914 = vadd.f32 0.0, %v913
      %915 = vdwg.mxu0
      %v917 = vunpack.c.l.b16 %v266
      %v918 = vpack.c.b16 %v917, %v917
      %v919 = vshrl.u32 %v430, 16
      %v921 = vshll.u32 %v430, 16
      %v923 = vrot.slane %v921, 1
      %v924 = vor.u32 %v919, %v923
      %v926 = vshll.u32 %v918, 16
      %v928 = vrot.slane %v926, 1
      %v929 = vsel %vm791, %v924, %v928
      %v931 = vsel %vm338, %v929, 0
      %933 = vmatpush.bf16.msra.mxu0 0
      %934 = vmatpush.bf16.msra.mxu0 0
      %935 = vmatpush.bf16.msra.mxu0 0
      %936 = vmatpush.bf16.msra.mxu0 0
      %937 = vmatpush.bf16.msra.mxu0 0
      %938 = vmatpush.bf16.msra.mxu0 0
      %939 = vmatpush.bf16.msra.mxu0 0
      %940 = vmatpush.bf16.msra.mxu0 %v807
      %941 = vmatmul.bf16.gmra.mxu0 %v931
      %v942 = vpop.f32.mrf.mxu0
      %v943 = vadd.f32 0.0, %v942
      %v944 = vpop.f32.mrf.mxu0
      %v945 = vadd.f32 0.0, %v944
      %946 = vdwg.mxu0
      %v948 = vunpack.c.l.b16 %v269
      %v949 = vpack.c.b16 %v948, %v948
      %v950 = vshrl.u32 %v452, 16
      %v952 = vshll.u32 %v452, 16
      %v954 = vrot.slane %v952, 1
      %v955 = vor.u32 %v950, %v954
      %v957 = vshll.u32 %v949, 16
      %v959 = vrot.slane %v957, 1
      %v960 = vsel %vm791, %v955, %v959
      %v962 = vsel %vm338, %v960, 0
      %964 = vmatpush.bf16.msra.mxu0 0
      %965 = vmatpush.bf16.msra.mxu0 0
      %966 = vmatpush.bf16.msra.mxu0 0
      %967 = vmatpush.bf16.msra.mxu0 0
      %968 = vmatpush.bf16.msra.mxu0 0
      %969 = vmatpush.bf16.msra.mxu0 0
      %970 = vmatpush.bf16.msra.mxu0 0
      %971 = vmatpush.bf16.msra.mxu0 %v807
      %972 = vmatmul.bf16.gmra.mxu0 %v962
      %v973 = vpop.f32.mrf.mxu0
      %v974 = vadd.f32 0.0, %v973
      %v975 = vpop.f32.mrf.mxu0
      %v976 = vadd.f32 0.0, %v975
      %977 = vdwg.mxu0
      %v979 = vunpack.c.l.b16 %v272
      %v980 = vpack.c.b16 %v979, %v979
      %v981 = vshrl.u32 %v474, 16
      %v983 = vshll.u32 %v474, 16
      %v985 = vrot.slane %v983, 1
      %v986 = vor.u32 %v981, %v985
      %v988 = vshll.u32 %v980, 16
      %v990 = vrot.slane %v988, 1
      %v991 = vsel %vm791, %v986, %v990
      %v993 = vsel %vm338, %v991, 0
      %995 = vmatpush.bf16.msra.mxu0 0
      %996 = vmatpush.bf16.msra.mxu0 0
      %997 = vmatpush.bf16.msra.mxu0 0
      %998 = vmatpush.bf16.msra.mxu0 0
      %999 = vmatpush.bf16.msra.mxu0 0
      %1000 = vmatpush.bf16.msra.mxu0 0
      %1001 = vmatpush.bf16.msra.mxu0 0
      %1002 = vmatpush.bf16.msra.mxu0 %v807
      %1003 = vmatmul.bf16.gmra.mxu0 %v993
      %v1004 = vpop.f32.mrf.mxu0
      %v1005 = vadd.f32 0.0, %v1004
      %v1006 = vpop.f32.mrf.mxu0
      %v1007 = vadd.f32 0.0, %v1006
      %1008 = vdwg.mxu0
      %v1010 = vunpack.c.l.b16 %v275
      %v1011 = vpack.c.b16 %v1010, %v1010
      %v1012 = vshrl.u32 %v496, 16
      %v1014 = vshll.u32 %v496, 16
      %v1016 = vrot.slane %v1014, 1
      %v1017 = vor.u32 %v1012, %v1016
      %v1019 = vshll.u32 %v1011, 16
      %v1021 = vrot.slane %v1019, 1
      %v1022 = vsel %vm791, %v1017, %v1021
      %v1024 = vsel %vm338, %v1022, 0
      %1026 = vmatpush.bf16.msra.mxu0 0
      %1027 = vmatpush.bf16.msra.mxu0 0
      %1028 = vmatpush.bf16.msra.mxu0 0
      %1029 = vmatpush.bf16.msra.mxu0 0
      %1030 = vmatpush.bf16.msra.mxu0 0
      %1031 = vmatpush.bf16.msra.mxu0 0
      %1032 = vmatpush.bf16.msra.mxu0 0
      %1033 = vmatpush.bf16.msra.mxu0 %v807
      %1034 = vmatmul.bf16.gmra.mxu0 %v1024
      %v1035 = vpop.f32.mrf.mxu0
      %v1036 = vadd.f32 0.0, %v1035
      %v1037 = vpop.f32.mrf.mxu0
      %v1038 = vadd.f32 0.0, %v1037
      %1039 = vdwg.mxu0
      %v1041 = vunpack.c.l.b16 %v278
      %v1042 = vpack.c.b16 %v1041, %v1041
      %v1043 = vshrl.u32 %v518, 16
      %v1045 = vshll.u32 %v518, 16
      %v1047 = vrot.slane %v1045, 1
      %v1048 = vor.u32 %v1043, %v1047
      %v1050 = vshll.u32 %v1042, 16
      %v1052 = vrot.slane %v1050, 1
      %v1053 = vsel %vm791, %v1048, %v1052
      %v1055 = vsel %vm338, %v1053, 0
      %1057 = vmatpush.bf16.msra.mxu0 0
      %1058 = vmatpush.bf16.msra.mxu0 0
      %1059 = vmatpush.bf16.msra.mxu0 0
      %1060 = vmatpush.bf16.msra.mxu0 0
      %1061 = vmatpush.bf16.msra.mxu0 0
      %1062 = vmatpush.bf16.msra.mxu0 0
      %1063 = vmatpush.bf16.msra.mxu0 0
      %1064 = vmatpush.bf16.msra.mxu0 %v807
      %1065 = vmatmul.bf16.gmra.mxu0 %v1055
      %v1066 = vpop.f32.mrf.mxu0
      %v1067 = vadd.f32 0.0, %v1066
      %v1068 = vpop.f32.mrf.mxu0
      %v1069 = vadd.f32 0.0, %v1068
      %1070 = vdwg.mxu0
      %v1072 = vunpack.c.l.b16 %v281
      %v1073 = vpack.c.b16 %v1072, %v1072
      %v1074 = vshrl.u32 %v540, 16
      %v1076 = vshll.u32 %v540, 16
      %v1078 = vrot.slane %v1076, 1
      %v1079 = vor.u32 %v1074, %v1078
      %v1081 = vshll.u32 %v1073, 16
      %v1083 = vrot.slane %v1081, 1
      %v1084 = vsel %vm791, %v1079, %v1083
      %v1086 = vsel %vm338, %v1084, 0
      %1088 = vmatpush.bf16.msra.mxu0 0
      %1089 = vmatpush.bf16.msra.mxu0 0
      %1090 = vmatpush.bf16.msra.mxu0 0
      %1091 = vmatpush.bf16.msra.mxu0 0
      %1092 = vmatpush.bf16.msra.mxu0 0
      %1093 = vmatpush.bf16.msra.mxu0 0
      %1094 = vmatpush.bf16.msra.mxu0 0
      %1095 = vmatpush.bf16.msra.mxu0 %v807
      %1096 = vmatmul.bf16.gmra.mxu0 %v1086
      %v1097 = vpop.f32.mrf.mxu0
      %v1098 = vadd.f32 0.0, %v1097
      %v1099 = vpop.f32.mrf.mxu0
      %v1100 = vadd.f32 0.0, %v1099
      %1101 = vdwg.mxu0
      %v1103 = vunpack.c.l.b16 %v284
      %v1104 = vpack.c.b16 %v1103, %v1103
      %v1105 = vshrl.u32 %v562, 16
      %v1107 = vshll.u32 %v562, 16
      %v1109 = vrot.slane %v1107, 1
      %v1110 = vor.u32 %v1105, %v1109
      %v1112 = vshll.u32 %v1104, 16
      %v1114 = vrot.slane %v1112, 1
      %v1115 = vsel %vm791, %v1110, %v1114
      %v1117 = vsel %vm338, %v1115, 0
      %1119 = vmatpush.bf16.msra.mxu0 0
      %1120 = vmatpush.bf16.msra.mxu0 0
      %1121 = vmatpush.bf16.msra.mxu0 0
      %1122 = vmatpush.bf16.msra.mxu0 0
      %1123 = vmatpush.bf16.msra.mxu0 0
      %1124 = vmatpush.bf16.msra.mxu0 0
      %1125 = vmatpush.bf16.msra.mxu0 0
      %1126 = vmatpush.bf16.msra.mxu0 %v807
      %1127 = vmatmul.bf16.gmra.mxu0 %v1117
      %v1128 = vpop.f32.mrf.mxu0
      %v1129 = vadd.f32 0.0, %v1128
      %v1130 = vpop.f32.mrf.mxu0
      %v1131 = vadd.f32 0.0, %v1130
      %1132 = vdwg.mxu0
      %v1134 = vunpack.c.l.b16 %v287
      %v1135 = vpack.c.b16 %v1134, %v1134
      %v1136 = vshrl.u32 %v584, 16
      %v1138 = vshll.u32 %v584, 16
      %v1140 = vrot.slane %v1138, 1
      %v1141 = vor.u32 %v1136, %v1140
      %v1143 = vshll.u32 %v1135, 16
      %v1145 = vrot.slane %v1143, 1
      %v1146 = vsel %vm791, %v1141, %v1145
      %v1148 = vsel %vm338, %v1146, 0
      %1150 = vmatpush.bf16.msra.mxu0 0
      %1151 = vmatpush.bf16.msra.mxu0 0
      %1152 = vmatpush.bf16.msra.mxu0 0
      %1153 = vmatpush.bf16.msra.mxu0 0
      %1154 = vmatpush.bf16.msra.mxu0 0
      %1155 = vmatpush.bf16.msra.mxu0 0
      %1156 = vmatpush.bf16.msra.mxu0 0
      %1157 = vmatpush.bf16.msra.mxu0 %v807
      %1158 = vmatmul.bf16.gmra.mxu0 %v1148
      %v1159 = vpop.f32.mrf.mxu0
      %v1160 = vadd.f32 0.0, %v1159
      %v1161 = vpop.f32.mrf.mxu0
      %v1162 = vadd.f32 0.0, %v1161
      %1163 = vdwg.mxu0
      %v1165 = vunpack.c.l.b16 %v290
      %v1166 = vpack.c.b16 %v1165, %v1165
      %v1167 = vshrl.u32 %v606, 16
      %v1169 = vshll.u32 %v606, 16
      %v1171 = vrot.slane %v1169, 1
      %v1172 = vor.u32 %v1167, %v1171
      %v1174 = vshll.u32 %v1166, 16
      %v1176 = vrot.slane %v1174, 1
      %v1177 = vsel %vm791, %v1172, %v1176
      %v1179 = vsel %vm338, %v1177, 0
      %1181 = vmatpush.bf16.msra.mxu0 0
      %1182 = vmatpush.bf16.msra.mxu0 0
      %1183 = vmatpush.bf16.msra.mxu0 0
      %1184 = vmatpush.bf16.msra.mxu0 0
      %1185 = vmatpush.bf16.msra.mxu0 0
      %1186 = vmatpush.bf16.msra.mxu0 0
      %1187 = vmatpush.bf16.msra.mxu0 0
      %1188 = vmatpush.bf16.msra.mxu0 %v807
      %1189 = vmatmul.bf16.gmra.mxu0 %v1179
      %v1190 = vpop.f32.mrf.mxu0
      %v1191 = vadd.f32 0.0, %v1190
      %v1192 = vpop.f32.mrf.mxu0
      %v1193 = vadd.f32 0.0, %v1192
      %1194 = vdwg.mxu0
      %v1196 = vunpack.c.l.b16 %v293
      %v1197 = vpack.c.b16 %v1196, %v1196
      %v1198 = vshrl.u32 %v628, 16
      %v1200 = vshll.u32 %v628, 16
      %v1202 = vrot.slane %v1200, 1
      %v1203 = vor.u32 %v1198, %v1202
      %v1205 = vshll.u32 %v1197, 16
      %v1207 = vrot.slane %v1205, 1
      %v1208 = vsel %vm791, %v1203, %v1207
      %v1210 = vsel %vm338, %v1208, 0
      %1212 = vmatpush.bf16.msra.mxu0 0
      %1213 = vmatpush.bf16.msra.mxu0 0
      %1214 = vmatpush.bf16.msra.mxu0 0
      %1215 = vmatpush.bf16.msra.mxu0 0
      %1216 = vmatpush.bf16.msra.mxu0 0
      %1217 = vmatpush.bf16.msra.mxu0 0
      %1218 = vmatpush.bf16.msra.mxu0 0
      %1219 = vmatpush.bf16.msra.mxu0 %v807
      %1220 = vmatmul.bf16.gmra.mxu0 %v1210
      %v1221 = vpop.f32.mrf.mxu0
      %v1222 = vadd.f32 0.0, %v1221
      %v1223 = vpop.f32.mrf.mxu0
      %v1224 = vadd.f32 0.0, %v1223
      %1225 = vdwg.mxu0
      %v1227 = vunpack.c.l.b16 %v296
      %v1228 = vpack.c.b16 %v1227, %v1227
      %v1229 = vshrl.u32 %v650, 16
      %v1231 = vshll.u32 %v650, 16
      %v1233 = vrot.slane %v1231, 1
      %v1234 = vor.u32 %v1229, %v1233
      %v1236 = vshll.u32 %v1228, 16
      %v1238 = vrot.slane %v1236, 1
      %v1239 = vsel %vm791, %v1234, %v1238
      %v1241 = vsel %vm338, %v1239, 0
      %1243 = vmatpush.bf16.msra.mxu0 0
      %1244 = vmatpush.bf16.msra.mxu0 0
      %1245 = vmatpush.bf16.msra.mxu0 0
      %1246 = vmatpush.bf16.msra.mxu0 0
      %1247 = vmatpush.bf16.msra.mxu0 0
      %1248 = vmatpush.bf16.msra.mxu0 0
      %1249 = vmatpush.bf16.msra.mxu0 0
      %1250 = vmatpush.bf16.msra.mxu0 %v807
      %1251 = vmatmul.bf16.gmra.mxu0 %v1241
      %v1252 = vpop.f32.mrf.mxu0
      %v1253 = vadd.f32 0.0, %v1252
      %v1254 = vpop.f32.mrf.mxu0
      %v1255 = vadd.f32 0.0, %v1254
      %1256 = vdwg.mxu0
      %v1258 = vunpack.c.l.b16 %v299
      %v1259 = vpack.c.b16 %v1258, %v1258
      %v1260 = vshrl.u32 %v672, 16
      %v1262 = vshll.u32 %v672, 16
      %v1264 = vrot.slane %v1262, 1
      %v1265 = vor.u32 %v1260, %v1264
      %v1267 = vshll.u32 %v1259, 16
      %v1269 = vrot.slane %v1267, 1
      %v1270 = vsel %vm791, %v1265, %v1269
      %v1272 = vsel %vm338, %v1270, 0
      %1274 = vmatpush.bf16.msra.mxu0 0
      %1275 = vmatpush.bf16.msra.mxu0 0
      %1276 = vmatpush.bf16.msra.mxu0 0
      %1277 = vmatpush.bf16.msra.mxu0 0
      %1278 = vmatpush.bf16.msra.mxu0 0
      %1279 = vmatpush.bf16.msra.mxu0 0
      %1280 = vmatpush.bf16.msra.mxu0 0
      %1281 = vmatpush.bf16.msra.mxu0 %v807
      %1282 = vmatmul.bf16.gmra.mxu0 %v1272
      %v1283 = vpop.f32.mrf.mxu0
      %v1284 = vadd.f32 0.0, %v1283
      %v1285 = vpop.f32.mrf.mxu0
      %v1286 = vadd.f32 0.0, %v1285
      %1287 = vdwg.mxu0
      %v1288 = vadd.f32 %v756, %v819
      %v1289 = vadd.f32 %v757, %v821
      %v1290 = vadd.f32 %v758, %v850
      %v1291 = vadd.f32 %v759, %v852
      %v1292 = vadd.f32 %v760, %v881
      %v1293 = vadd.f32 %v761, %v883
      %v1294 = vadd.f32 %v762, %v912
      %v1295 = vadd.f32 %v763, %v914
      %v1296 = vadd.f32 %v764, %v943
      %v1297 = vadd.f32 %v765, %v945
      %v1298 = vadd.f32 %v766, %v974
      %v1299 = vadd.f32 %v767, %v976
      %v1300 = vadd.f32 %v768, %v1005
      %v1301 = vadd.f32 %v769, %v1007
      %v1302 = vadd.f32 %v770, %v1036
      %v1303 = vadd.f32 %v771, %v1038
      %v1304 = vadd.f32 %v772, %v1067
      %v1305 = vadd.f32 %v773, %v1069
      %v1306 = vadd.f32 %v774, %v1098
      %v1307 = vadd.f32 %v775, %v1100
      %v1308 = vadd.f32 %v776, %v1129
      %v1309 = vadd.f32 %v777, %v1131
      %v1310 = vadd.f32 %v778, %v1160
      %v1311 = vadd.f32 %v779, %v1162
      %v1312 = vadd.f32 %v780, %v1191
      %v1313 = vadd.f32 %v781, %v1193
      %v1314 = vadd.f32 %v782, %v1222
      %v1315 = vadd.f32 %v783, %v1224
      %v1316 = vadd.f32 %v784, %v1253
      %v1317 = vadd.f32 %v785, %v1255
      %v1318 = vadd.f32 %v786, %v1284
      %v1319 = vadd.f32 %v787, %v1286
      %1320 = vst [vmem:[%s206] sm:$0xff] %v1288
      %1321 = vst [vmem:[%s206 + $0x8] sm:$0xff] %v1289
      %1322 = vst [vmem:[%s206 + $0x10] sm:$0xff] %v1290
      %1323 = vst [vmem:[%s206 + $0x18] sm:$0xff] %v1291
      %1324 = vst [vmem:[%s206 + $0x20] sm:$0xff] %v1292
      %1325 = vst [vmem:[%s206 + $0x28] sm:$0xff] %v1293
      %1326 = vst [vmem:[%s206 + $0x30] sm:$0xff] %v1294
      %1327 = vst [vmem:[%s206 + $0x38] sm:$0xff] %v1295
      %1328 = vst [vmem:[%s206 + $0x40] sm:$0xff] %v1296
      %1329 = vst [vmem:[%s206 + $0x48] sm:$0xff] %v1297
      %1330 = vst [vmem:[%s206 + $0x50] sm:$0xff] %v1298
      %1331 = vst [vmem:[%s206 + $0x58] sm:$0xff] %v1299
      %1332 = vst [vmem:[%s206 + $0x60] sm:$0xff] %v1300
      %1333 = vst [vmem:[%s206 + $0x68] sm:$0xff] %v1301
      %1334 = vst [vmem:[%s206 + $0x70] sm:$0xff] %v1302
      %1335 = vst [vmem:[%s206 + $0x78] sm:$0xff] %v1303
      %1336 = vst [vmem:[%s206 + $0x80] sm:$0xff] %v1304
      %1337 = vst [vmem:[%s206 + $0x88] sm:$0xff] %v1305
      %1338 = vst [vmem:[%s206 + $0x90] sm:$0xff] %v1306
      %1339 = vst [vmem:[%s206 + $0x98] sm:$0xff] %v1307
      %1340 = vst [vmem:[%s206 + $0xa0] sm:$0xff] %v1308
      %1341 = vst [vmem:[%s206 + $0xa8] sm:$0xff] %v1309
      %1342 = vst [vmem:[%s206 + $0xb0] sm:$0xff] %v1310
      %1343 = vst [vmem:[%s206 + $0xb8] sm:$0xff] %v1311
      %1344 = vst [vmem:[%s206 + $0xc0] sm:$0xff] %v1312
      %1345 = vst [vmem:[%s206 + $0xc8] sm:$0xff] %v1313
      %1346 = vst [vmem:[%s206 + $0xd0] sm:$0xff] %v1314
      %1347 = vst [vmem:[%s206 + $0xd8] sm:$0xff] %v1315
      %1348 = vst [vmem:[%s206 + $0xe0] sm:$0xff] %v1316
      %1349 = vst [vmem:[%s206 + $0xe8] sm:$0xff] %v1317
      %1350 = vst [vmem:[%s206 + $0xf0] sm:$0xff] %v1318
      %1351 = vst [vmem:[%s206 + $0xf8] sm:$0xff] %v1319
      %s1352 = scalar_lea.vmem %s1, 4
      %v1353 = vld [vmem:[%s1352] sm:$0x3]
      %v1354 = vld [vmem:[%s206] sm:$0xff]
      %v1355 = vld [vmem:[%s206 + $0x8] sm:$0xff]
      %v1356 = vld [vmem:[%s206 + $0x10] sm:$0xff]
      %v1357 = vld [vmem:[%s206 + $0x18] sm:$0xff]
      %v1358 = vld [vmem:[%s206 + $0x20] sm:$0xff]
      %v1359 = vld [vmem:[%s206 + $0x28] sm:$0xff]
      %v1360 = vld [vmem:[%s206 + $0x30] sm:$0xff]
      %v1361 = vld [vmem:[%s206 + $0x38] sm:$0xff]
      %v1362 = vld [vmem:[%s206 + $0x40] sm:$0xff]
      %v1363 = vld [vmem:[%s206 + $0x48] sm:$0xff]
      %v1364 = vld [vmem:[%s206 + $0x50] sm:$0xff]
      %v1365 = vld [vmem:[%s206 + $0x58] sm:$0xff]
      %v1366 = vld [vmem:[%s206 + $0x60] sm:$0xff]
      %v1367 = vld [vmem:[%s206 + $0x68] sm:$0xff]
      %v1368 = vld [vmem:[%s206 + $0x70] sm:$0xff]
      %v1369 = vld [vmem:[%s206 + $0x78] sm:$0xff]
      %v1370 = vld [vmem:[%s206 + $0x80] sm:$0xff]
      %v1371 = vld [vmem:[%s206 + $0x88] sm:$0xff]
      %v1372 = vld [vmem:[%s206 + $0x90] sm:$0xff]
      %v1373 = vld [vmem:[%s206 + $0x98] sm:$0xff]
      %v1374 = vld [vmem:[%s206 + $0xa0] sm:$0xff]
      %v1375 = vld [vmem:[%s206 + $0xa8] sm:$0xff]
      %v1376 = vld [vmem:[%s206 + $0xb0] sm:$0xff]
      %v1377 = vld [vmem:[%s206 + $0xb8] sm:$0xff]
      %v1378 = vld [vmem:[%s206 + $0xc0] sm:$0xff]
      %v1379 = vld [vmem:[%s206 + $0xc8] sm:$0xff]
      %v1380 = vld [vmem:[%s206 + $0xd0] sm:$0xff]
      %v1381 = vld [vmem:[%s206 + $0xd8] sm:$0xff]
      %v1382 = vld [vmem:[%s206 + $0xe0] sm:$0xff]
      %v1383 = vld [vmem:[%s206 + $0xe8] sm:$0xff]
      %v1384 = vld [vmem:[%s206 + $0xf0] sm:$0xff]
      %v1385 = vld [vmem:[%s206 + $0xf8] sm:$0xff]
      %vm1386 = vcmask 1046528
      %v1387 = vrot.slane %v337, 1
      %v1388 = vrot.slane %v790, 1
      %v1389 = vsel %vm1386, %v1387, %v1388
      %v1391 = vsel %vm338, %v1389, 0
      %v1394 = vsel %vm342, %v1353, 0
      %1396 = vmatpush.bf16.msra.mxu0 0
      %1397 = vmatpush.bf16.msra.mxu0 0
      %1398 = vmatpush.bf16.msra.mxu0 0
      %1399 = vmatpush.bf16.msra.mxu0 0
      %1400 = vmatpush.bf16.msra.mxu0 0
      %1401 = vmatpush.bf16.msra.mxu0 0
      %1402 = vmatpush.bf16.msra.mxu0 0
      %1403 = vmatpush.bf16.msra.mxu0 %v1394
      %1404 = vmatmul.bf16.gmra.mxu0 %v1391
      %v1405 = vpop.f32.mrf.mxu0
      %v1406 = vadd.f32 0.0, %v1405
      %v1407 = vpop.f32.mrf.mxu0
      %v1408 = vadd.f32 0.0, %v1407
      %1409 = vdwg.mxu0
      %v1410 = vrot.slane %v364, 1
      %v1411 = vrot.slane %v825, 1
      %v1412 = vsel %vm1386, %v1410, %v1411
      %v1414 = vsel %vm338, %v1412, 0
      %1416 = vmatpush.bf16.msra.mxu0 0
      %1417 = vmatpush.bf16.msra.mxu0 0
      %1418 = vmatpush.bf16.msra.mxu0 0
      %1419 = vmatpush.bf16.msra.mxu0 0
      %1420 = vmatpush.bf16.msra.mxu0 0
      %1421 = vmatpush.bf16.msra.mxu0 0
      %1422 = vmatpush.bf16.msra.mxu0 0
      %1423 = vmatpush.bf16.msra.mxu0 %v1394
      %1424 = vmatmul.bf16.gmra.mxu0 %v1414
      %v1425 = vpop.f32.mrf.mxu0
      %v1426 = vadd.f32 0.0, %v1425
      %v1427 = vpop.f32.mrf.mxu0
      %v1428 = vadd.f32 0.0, %v1427
      %1429 = vdwg.mxu0
      %v1430 = vrot.slane %v386, 1
      %v1431 = vrot.slane %v856, 1
      %v1432 = vsel %vm1386, %v1430, %v1431
      %v1434 = vsel %vm338, %v1432, 0
      %1436 = vmatpush.bf16.msra.mxu0 0
      %1437 = vmatpush.bf16.msra.mxu0 0
      %1438 = vmatpush.bf16.msra.mxu0 0
      %1439 = vmatpush.bf16.msra.mxu0 0
      %1440 = vmatpush.bf16.msra.mxu0 0
      %1441 = vmatpush.bf16.msra.mxu0 0
      %1442 = vmatpush.bf16.msra.mxu0 0
      %1443 = vmatpush.bf16.msra.mxu0 %v1394
      %1444 = vmatmul.bf16.gmra.mxu0 %v1434
      %v1445 = vpop.f32.mrf.mxu0
      %v1446 = vadd.f32 0.0, %v1445
      %v1447 = vpop.f32.mrf.mxu0
      %v1448 = vadd.f32 0.0, %v1447
      %1449 = vdwg.mxu0
      %v1450 = vrot.slane %v408, 1
      %v1451 = vrot.slane %v887, 1
      %v1452 = vsel %vm1386, %v1450, %v1451
      %v1454 = vsel %vm338, %v1452, 0
      %1456 = vmatpush.bf16.msra.mxu0 0
      %1457 = vmatpush.bf16.msra.mxu0 0
      %1458 = vmatpush.bf16.msra.mxu0 0
      %1459 = vmatpush.bf16.msra.mxu0 0
      %1460 = vmatpush.bf16.msra.mxu0 0
      %1461 = vmatpush.bf16.msra.mxu0 0
      %1462 = vmatpush.bf16.msra.mxu0 0
      %1463 = vmatpush.bf16.msra.mxu0 %v1394
      %1464 = vmatmul.bf16.gmra.mxu0 %v1454
      %v1465 = vpop.f32.mrf.mxu0
      %v1466 = vadd.f32 0.0, %v1465
      %v1467 = vpop.f32.mrf.mxu0
      %v1468 = vadd.f32 0.0, %v1467
      %1469 = vdwg.mxu0
      %v1470 = vrot.slane %v430, 1
      %v1471 = vrot.slane %v918, 1
      %v1472 = vsel %vm1386, %v1470, %v1471
      %v1474 = vsel %vm338, %v1472, 0
      %1476 = vmatpush.bf16.msra.mxu0 0
      %1477 = vmatpush.bf16.msra.mxu0 0
      %1478 = vmatpush.bf16.msra.mxu0 0
      %1479 = vmatpush.bf16.msra.mxu0 0
      %1480 = vmatpush.bf16.msra.mxu0 0
      %1481 = vmatpush.bf16.msra.mxu0 0
      %1482 = vmatpush.bf16.msra.mxu0 0
      %1483 = vmatpush.bf16.msra.mxu0 %v1394
      %1484 = vmatmul.bf16.gmra.mxu0 %v1474
      %v1485 = vpop.f32.mrf.mxu0
      %v1486 = vadd.f32 0.0, %v1485
      %v1487 = vpop.f32.mrf.mxu0
      %v1488 = vadd.f32 0.0, %v1487
      %1489 = vdwg.mxu0
      %v1490 = vrot.slane %v452, 1
      %v1491 = vrot.slane %v949, 1
      %v1492 = vsel %vm1386, %v1490, %v1491
      %v1494 = vsel %vm338, %v1492, 0
      %1496 = vmatpush.bf16.msra.mxu0 0
      %1497 = vmatpush.bf16.msra.mxu0 0
      %1498 = vmatpush.bf16.msra.mxu0 0
      %1499 = vmatpush.bf16.msra.mxu0 0
      %1500 = vmatpush.bf16.msra.mxu0 0
      %1501 = vmatpush.bf16.msra.mxu0 0
      %1502 = vmatpush.bf16.msra.mxu0 0
      %1503 = vmatpush.bf16.msra.mxu0 %v1394
      %1504 = vmatmul.bf16.gmra.mxu0 %v1494
      %v1505 = vpop.f32.mrf.mxu0
      %v1506 = vadd.f32 0.0, %v1505
      %v1507 = vpop.f32.mrf.mxu0
      %v1508 = vadd.f32 0.0, %v1507
      %1509 = vdwg.mxu0
      %v1510 = vrot.slane %v474, 1
      %v1511 = vrot.slane %v980, 1
      %v1512 = vsel %vm1386, %v1510, %v1511
      %v1514 = vsel %vm338, %v1512, 0
      %1516 = vmatpush.bf16.msra.mxu0 0
      %1517 = vmatpush.bf16.msra.mxu0 0
      %1518 = vmatpush.bf16.msra.mxu0 0
      %1519 = vmatpush.bf16.msra.mxu0 0
      %1520 = vmatpush.bf16.msra.mxu0 0
      %1521 = vmatpush.bf16.msra.mxu0 0
      %1522 = vmatpush.bf16.msra.mxu0 0
      %1523 = vmatpush.bf16.msra.mxu0 %v1394
      %1524 = vmatmul.bf16.gmra.mxu0 %v1514
      %v1525 = vpop.f32.mrf.mxu0
      %v1526 = vadd.f32 0.0, %v1525
      %v1527 = vpop.f32.mrf.mxu0
      %v1528 = vadd.f32 0.0, %v1527
      %1529 = vdwg.mxu0
      %v1530 = vrot.slane %v496, 1
      %v1531 = vrot.slane %v1011, 1
      %v1532 = vsel %vm1386, %v1530, %v1531
      %v1534 = vsel %vm338, %v1532, 0
      %1536 = vmatpush.bf16.msra.mxu0 0
      %1537 = vmatpush.bf16.msra.mxu0 0
      %1538 = vmatpush.bf16.msra.mxu0 0
      %1539 = vmatpush.bf16.msra.mxu0 0
      %1540 = vmatpush.bf16.msra.mxu0 0
      %1541 = vmatpush.bf16.msra.mxu0 0
      %1542 = vmatpush.bf16.msra.mxu0 0
      %1543 = vmatpush.bf16.msra.mxu0 %v1394
      %1544 = vmatmul.bf16.gmra.mxu0 %v1534
      %v1545 = vpop.f32.mrf.mxu0
      %v1546 = vadd.f32 0.0, %v1545
      %v1547 = vpop.f32.mrf.mxu0
      %v1548 = vadd.f32 0.0, %v1547
      %1549 = vdwg.mxu0
      %v1550 = vrot.slane %v518, 1
      %v1551 = vrot.slane %v1042, 1
      %v1552 = vsel %vm1386, %v1550, %v1551
      %v1554 = vsel %vm338, %v1552, 0
      %1556 = vmatpush.bf16.msra.mxu0 0
      %1557 = vmatpush.bf16.msra.mxu0 0
      %1558 = vmatpush.bf16.msra.mxu0 0
      %1559 = vmatpush.bf16.msra.mxu0 0
      %1560 = vmatpush.bf16.msra.mxu0 0
      %1561 = vmatpush.bf16.msra.mxu0 0
      %1562 = vmatpush.bf16.msra.mxu0 0
      %1563 = vmatpush.bf16.msra.mxu0 %v1394
      %1564 = vmatmul.bf16.gmra.mxu0 %v1554
      %v1565 = vpop.f32.mrf.mxu0
      %v1566 = vadd.f32 0.0, %v1565
      %v1567 = vpop.f32.mrf.mxu0
      %v1568 = vadd.f32 0.0, %v1567
      %1569 = vdwg.mxu0
      %v1570 = vrot.slane %v540, 1
      %v1571 = vrot.slane %v1073, 1
      %v1572 = vsel %vm1386, %v1570, %v1571
      %v1574 = vsel %vm338, %v1572, 0
      %1576 = vmatpush.bf16.msra.mxu0 0
      %1577 = vmatpush.bf16.msra.mxu0 0
      %1578 = vmatpush.bf16.msra.mxu0 0
      %1579 = vmatpush.bf16.msra.mxu0 0
      %1580 = vmatpush.bf16.msra.mxu0 0
      %1581 = vmatpush.bf16.msra.mxu0 0
      %1582 = vmatpush.bf16.msra.mxu0 0
      %1583 = vmatpush.bf16.msra.mxu0 %v1394
      %1584 = vmatmul.bf16.gmra.mxu0 %v1574
      %v1585 = vpop.f32.mrf.mxu0
      %v1586 = vadd.f32 0.0, %v1585
      %v1587 = vpop.f32.mrf.mxu0
      %v1588 = vadd.f32 0.0, %v1587
      %1589 = vdwg.mxu0
      %v1590 = vrot.slane %v562, 1
      %v1591 = vrot.slane %v1104, 1
      %v1592 = vsel %vm1386, %v1590, %v1591
      %v1594 = vsel %vm338, %v1592, 0
      %1596 = vmatpush.bf16.msra.mxu0 0
      %1597 = vmatpush.bf16.msra.mxu0 0
      %1598 = vmatpush.bf16.msra.mxu0 0
      %1599 = vmatpush.bf16.msra.mxu0 0
      %1600 = vmatpush.bf16.msra.mxu0 0
      %1601 = vmatpush.bf16.msra.mxu0 0
      %1602 = vmatpush.bf16.msra.mxu0 0
      %1603 = vmatpush.bf16.msra.mxu0 %v1394
      %1604 = vmatmul.bf16.gmra.mxu0 %v1594
      %v1605 = vpop.f32.mrf.mxu0
      %v1606 = vadd.f32 0.0, %v1605
      %v1607 = vpop.f32.mrf.mxu0
      %v1608 = vadd.f32 0.0, %v1607
      %1609 = vdwg.mxu0
      %v1610 = vrot.slane %v584, 1
      %v1611 = vrot.slane %v1135, 1
      %v1612 = vsel %vm1386, %v1610, %v1611
      %v1614 = vsel %vm338, %v1612, 0
      %1616 = vmatpush.bf16.msra.mxu0 0
      %1617 = vmatpush.bf16.msra.mxu0 0
      %1618 = vmatpush.bf16.msra.mxu0 0
      %1619 = vmatpush.bf16.msra.mxu0 0
      %1620 = vmatpush.bf16.msra.mxu0 0
      %1621 = vmatpush.bf16.msra.mxu0 0
      %1622 = vmatpush.bf16.msra.mxu0 0
      %1623 = vmatpush.bf16.msra.mxu0 %v1394
      %1624 = vmatmul.bf16.gmra.mxu0 %v1614
      %v1625 = vpop.f32.mrf.mxu0
      %v1626 = vadd.f32 0.0, %v1625
      %v1627 = vpop.f32.mrf.mxu0
      %v1628 = vadd.f32 0.0, %v1627
      %1629 = vdwg.mxu0
      %v1630 = vrot.slane %v606, 1
      %v1631 = vrot.slane %v1166, 1
      %v1632 = vsel %vm1386, %v1630, %v1631
      %v1634 = vsel %vm338, %v1632, 0
      %1636 = vmatpush.bf16.msra.mxu0 0
      %1637 = vmatpush.bf16.msra.mxu0 0
      %1638 = vmatpush.bf16.msra.mxu0 0
      %1639 = vmatpush.bf16.msra.mxu0 0
      %1640 = vmatpush.bf16.msra.mxu0 0
      %1641 = vmatpush.bf16.msra.mxu0 0
      %1642 = vmatpush.bf16.msra.mxu0 0
      %1643 = vmatpush.bf16.msra.mxu0 %v1394
      %1644 = vmatmul.bf16.gmra.mxu0 %v1634
      %v1645 = vpop.f32.mrf.mxu0
      %v1646 = vadd.f32 0.0, %v1645
      %v1647 = vpop.f32.mrf.mxu0
      %v1648 = vadd.f32 0.0, %v1647
      %1649 = vdwg.mxu0
      %v1650 = vrot.slane %v628, 1
      %v1651 = vrot.slane %v1197, 1
      %v1652 = vsel %vm1386, %v1650, %v1651
      %v1654 = vsel %vm338, %v1652, 0
      %1656 = vmatpush.bf16.msra.mxu0 0
      %1657 = vmatpush.bf16.msra.mxu0 0
      %1658 = vmatpush.bf16.msra.mxu0 0
      %1659 = vmatpush.bf16.msra.mxu0 0
      %1660 = vmatpush.bf16.msra.mxu0 0
      %1661 = vmatpush.bf16.msra.mxu0 0
      %1662 = vmatpush.bf16.msra.mxu0 0
      %1663 = vmatpush.bf16.msra.mxu0 %v1394
      %1664 = vmatmul.bf16.gmra.mxu0 %v1654
      %v1665 = vpop.f32.mrf.mxu0
      %v1666 = vadd.f32 0.0, %v1665
      %v1667 = vpop.f32.mrf.mxu0
      %v1668 = vadd.f32 0.0, %v1667
      %1669 = vdwg.mxu0
      %v1670 = vrot.slane %v650, 1
      %v1671 = vrot.slane %v1228, 1
      %v1672 = vsel %vm1386, %v1670, %v1671
      %v1674 = vsel %vm338, %v1672, 0
      %1676 = vmatpush.bf16.msra.mxu0 0
      %1677 = vmatpush.bf16.msra.mxu0 0
      %1678 = vmatpush.bf16.msra.mxu0 0
      %1679 = vmatpush.bf16.msra.mxu0 0
      %1680 = vmatpush.bf16.msra.mxu0 0
      %1681 = vmatpush.bf16.msra.mxu0 0
      %1682 = vmatpush.bf16.msra.mxu0 0
      %1683 = vmatpush.bf16.msra.mxu0 %v1394
      %1684 = vmatmul.bf16.gmra.mxu0 %v1674
      %v1685 = vpop.f32.mrf.mxu0
      %v1686 = vadd.f32 0.0, %v1685
      %v1687 = vpop.f32.mrf.mxu0
      %v1688 = vadd.f32 0.0, %v1687
      %1689 = vdwg.mxu0
      %v1690 = vrot.slane %v672, 1
      %v1691 = vrot.slane %v1259, 1
      %v1692 = vsel %vm1386, %v1690, %v1691
      %v1694 = vsel %vm338, %v1692, 0
      %1696 = vmatpush.bf16.msra.mxu0 0
      %1697 = vmatpush.bf16.msra.mxu0 0
      %1698 = vmatpush.bf16.msra.mxu0 0
      %1699 = vmatpush.bf16.msra.mxu0 0
      %1700 = vmatpush.bf16.msra.mxu0 0
      %1701 = vmatpush.bf16.msra.mxu0 0
      %1702 = vmatpush.bf16.msra.mxu0 0
      %1703 = vmatpush.bf16.msra.mxu0 %v1394
      %1704 = vmatmul.bf16.gmra.mxu0 %v1694
      %v1705 = vpop.f32.mrf.mxu0
      %v1706 = vadd.f32 0.0, %v1705
      %v1707 = vpop.f32.mrf.mxu0
      %v1708 = vadd.f32 0.0, %v1707
      %1709 = vdwg.mxu0
      %v1710 = vadd.f32 %v1354, %v1406
      %v1711 = vadd.f32 %v1355, %v1408
      %v1712 = vadd.f32 %v1356, %v1426
      %v1713 = vadd.f32 %v1357, %v1428
      %v1714 = vadd.f32 %v1358, %v1446
      %v1715 = vadd.f32 %v1359, %v1448
      %v1716 = vadd.f32 %v1360, %v1466
      %v1717 = vadd.f32 %v1361, %v1468
      %v1718 = vadd.f32 %v1362, %v1486
      %v1719 = vadd.f32 %v1363, %v1488
      %v1720 = vadd.f32 %v1364, %v1506
      %v1721 = vadd.f32 %v1365, %v1508
      %v1722 = vadd.f32 %v1366, %v1526
      %v1723 = vadd.f32 %v1367, %v1528
      %v1724 = vadd.f32 %v1368, %v1546
      %v1725 = vadd.f32 %v1369, %v1548
      %v1726 = vadd.f32 %v1370, %v1566
      %v1727 = vadd.f32 %v1371, %v1568
      %v1728 = vadd.f32 %v1372, %v1586
      %v1729 = vadd.f32 %v1373, %v1588
      %v1730 = vadd.f32 %v1374, %v1606
      %v1731 = vadd.f32 %v1375, %v1608
      %v1732 = vadd.f32 %v1376, %v1626
      %v1733 = vadd.f32 %v1377, %v1628
      %v1734 = vadd.f32 %v1378, %v1646
      %v1735 = vadd.f32 %v1379, %v1648
      %v1736 = vadd.f32 %v1380, %v1666
      %v1737 = vadd.f32 %v1381, %v1668
      %v1738 = vadd.f32 %v1382, %v1686
      %v1739 = vadd.f32 %v1383, %v1688
      %v1740 = vadd.f32 %v1384, %v1706
      %v1741 = vadd.f32 %v1385, %v1708
      %1742 = vst [vmem:[%s206] sm:$0xff] %v1710
      %1743 = vst [vmem:[%s206 + $0x8] sm:$0xff] %v1711
      %1744 = vst [vmem:[%s206 + $0x10] sm:$0xff] %v1712
      %1745 = vst [vmem:[%s206 + $0x18] sm:$0xff] %v1713
      %1746 = vst [vmem:[%s206 + $0x20] sm:$0xff] %v1714
      %1747 = vst [vmem:[%s206 + $0x28] sm:$0xff] %v1715
      %1748 = vst [vmem:[%s206 + $0x30] sm:$0xff] %v1716
      %1749 = vst [vmem:[%s206 + $0x38] sm:$0xff] %v1717
      %1750 = vst [vmem:[%s206 + $0x40] sm:$0xff] %v1718
      %1751 = vst [vmem:[%s206 + $0x48] sm:$0xff] %v1719
      %1752 = vst [vmem:[%s206 + $0x50] sm:$0xff] %v1720
      %1753 = vst [vmem:[%s206 + $0x58] sm:$0xff] %v1721
      %1754 = vst [vmem:[%s206 + $0x60] sm:$0xff] %v1722
      %1755 = vst [vmem:[%s206 + $0x68] sm:$0xff] %v1723
      %1756 = vst [vmem:[%s206 + $0x70] sm:$0xff] %v1724
      %1757 = vst [vmem:[%s206 + $0x78] sm:$0xff] %v1725
      %1758 = vst [vmem:[%s206 + $0x80] sm:$0xff] %v1726
      %1759 = vst [vmem:[%s206 + $0x88] sm:$0xff] %v1727
      %1760 = vst [vmem:[%s206 + $0x90] sm:$0xff] %v1728
      %1761 = vst [vmem:[%s206 + $0x98] sm:$0xff] %v1729
      %1762 = vst [vmem:[%s206 + $0xa0] sm:$0xff] %v1730
      %1763 = vst [vmem:[%s206 + $0xa8] sm:$0xff] %v1731
      %1764 = vst [vmem:[%s206 + $0xb0] sm:$0xff] %v1732
      %1765 = vst [vmem:[%s206 + $0xb8] sm:$0xff] %v1733
      %1766 = vst [vmem:[%s206 + $0xc0] sm:$0xff] %v1734
      %1767 = vst [vmem:[%s206 + $0xc8] sm:$0xff] %v1735
      %1768 = vst [vmem:[%s206 + $0xd0] sm:$0xff] %v1736
      %1769 = vst [vmem:[%s206 + $0xd8] sm:$0xff] %v1737
      %1770 = vst [vmem:[%s206 + $0xe0] sm:$0xff] %v1738
      %1771 = vst [vmem:[%s206 + $0xe8] sm:$0xff] %v1739
      %1772 = vst [vmem:[%s206 + $0xf0] sm:$0xff] %v1740
      %1773 = vst [vmem:[%s206 + $0xf8] sm:$0xff] %v1741
      %s1774 = sadd.s32 %s216, 1
      %s1775 = smul.u32 %s1774, 3
      %s1776 = smul.addr %s1775, 4
      %s1777 = scalar_lea.vmem %s196, %s1776
      %v1778 = vld [vmem:[%s1777] sm:$0xf]
      %v1779 = vld [vmem:[%s1777 + $0x4] sm:$0xf]
      %v1780 = vld [vmem:[%s1777 + $0x8] sm:$0x1]
      %v1781 = vld [vmem:[%s1777 + $0xc] sm:$0xf]
      %v1782 = vld [vmem:[%s1777 + $0x10] sm:$0xf]
      %v1783 = vld [vmem:[%s1777 + $0x14] sm:$0x1]
      %v1784 = vld [vmem:[%s1777 + $0x18] sm:$0xf]
      %v1785 = vld [vmem:[%s1777 + $0x1c] sm:$0xf]
      %v1786 = vld [vmem:[%s1777 + $0x20] sm:$0x1]
      %v1787 = vld [vmem:[%s1777 + $0x24] sm:$0xf]
      %v1788 = vld [vmem:[%s1777 + $0x28] sm:$0xf]
      %v1789 = vld [vmem:[%s1777 + $0x2c] sm:$0x1]
      %v1790 = vld [vmem:[%s1777 + $0x30] sm:$0xf]
      %v1791 = vld [vmem:[%s1777 + $0x34] sm:$0xf]
      %v1792 = vld [vmem:[%s1777 + $0x38] sm:$0x1]
      %v1793 = vld [vmem:[%s1777 + $0x3c] sm:$0xf]
      %v1794 = vld [vmem:[%s1777 + $0x40] sm:$0xf]
      %v1795 = vld [vmem:[%s1777 + $0x44] sm:$0x1]
      %v1796 = vld [vmem:[%s1777 + $0x48] sm:$0xf]
      %v1797 = vld [vmem:[%s1777 + $0x4c] sm:$0xf]
      %v1798 = vld [vmem:[%s1777 + $0x50] sm:$0x1]
      %v1799 = vld [vmem:[%s1777 + $0x54] sm:$0xf]
      %v1800 = vld [vmem:[%s1777 + $0x58] sm:$0xf]
      %v1801 = vld [vmem:[%s1777 + $0x5c] sm:$0x1]
      %v1802 = vld [vmem:[%s1777 + $0x60] sm:$0xf]
      %v1803 = vld [vmem:[%s1777 + $0x64] sm:$0xf]
      %v1804 = vld [vmem:[%s1777 + $0x68] sm:$0x1]
      %v1805 = vld [vmem:[%s1777 + $0x6c] sm:$0xf]
      %v1806 = vld [vmem:[%s1777 + $0x70] sm:$0xf]
      %v1807 = vld [vmem:[%s1777 + $0x74] sm:$0x1]
      %v1808 = vld [vmem:[%s1777 + $0x78] sm:$0xf]
      %v1809 = vld [vmem:[%s1777 + $0x7c] sm:$0xf]
      %v1810 = vld [vmem:[%s1777 + $0x80] sm:$0x1]
      %v1811 = vld [vmem:[%s1777 + $0x84] sm:$0xf]
      %v1812 = vld [vmem:[%s1777 + $0x88] sm:$0xf]
      %v1813 = vld [vmem:[%s1777 + $0x8c] sm:$0x1]
      %v1814 = vld [vmem:[%s1777 + $0x90] sm:$0xf]
      %v1815 = vld [vmem:[%s1777 + $0x94] sm:$0xf]
      %v1816 = vld [vmem:[%s1777 + $0x98] sm:$0x1]
      %v1817 = vld [vmem:[%s1777 + $0x9c] sm:$0xf]
      %v1818 = vld [vmem:[%s1777 + $0xa0] sm:$0xf]
      %v1819 = vld [vmem:[%s1777 + $0xa4] sm:$0x1]
      %v1820 = vld [vmem:[%s1777 + $0xa8] sm:$0xf]
      %v1821 = vld [vmem:[%s1777 + $0xac] sm:$0xf]
      %v1822 = vld [vmem:[%s1777 + $0xb0] sm:$0x1]
      %v1823 = vld [vmem:[%s1777 + $0xb4] sm:$0xf]
      %v1824 = vld [vmem:[%s1777 + $0xb8] sm:$0xf]
      %v1825 = vld [vmem:[%s1777 + $0xbc] sm:$0x1]
      %s1826 = scalar_lea.vmem %s1, 6
      %v1827 = vld [vmem:[%s1826] sm:$0x3]
      %v1828 = vld [vmem:[%s206] sm:$0xff]
      %v1829 = vld [vmem:[%s206 + $0x8] sm:$0xff]
      %v1830 = vld [vmem:[%s206 + $0x10] sm:$0xff]
      %v1831 = vld [vmem:[%s206 + $0x18] sm:$0xff]
      %v1832 = vld [vmem:[%s206 + $0x20] sm:$0xff]
      %v1833 = vld [vmem:[%s206 + $0x28] sm:$0xff]
      %v1834 = vld [vmem:[%s206 + $0x30] sm:$0xff]
      %v1835 = vld [vmem:[%s206 + $0x38] sm:$0xff]
      %v1836 = vld [vmem:[%s206 + $0x40] sm:$0xff]
      %v1837 = vld [vmem:[%s206 + $0x48] sm:$0xff]
      %v1838 = vld [vmem:[%s206 + $0x50] sm:$0xff]
      %v1839 = vld [vmem:[%s206 + $0x58] sm:$0xff]
      %v1840 = vld [vmem:[%s206 + $0x60] sm:$0xff]
      %v1841 = vld [vmem:[%s206 + $0x68] sm:$0xff]
      %v1842 = vld [vmem:[%s206 + $0x70] sm:$0xff]
      %v1843 = vld [vmem:[%s206 + $0x78] sm:$0xff]
      %v1844 = vld [vmem:[%s206 + $0x80] sm:$0xff]
      %v1845 = vld [vmem:[%s206 + $0x88] sm:$0xff]
      %v1846 = vld [vmem:[%s206 + $0x90] sm:$0xff]
      %v1847 = vld [vmem:[%s206 + $0x98] sm:$0xff]
      %v1848 = vld [vmem:[%s206 + $0xa0] sm:$0xff]
      %v1849 = vld [vmem:[%s206 + $0xa8] sm:$0xff]
      %v1850 = vld [vmem:[%s206 + $0xb0] sm:$0xff]
      %v1851 = vld [vmem:[%s206 + $0xb8] sm:$0xff]
      %v1852 = vld [vmem:[%s206 + $0xc0] sm:$0xff]
      %v1853 = vld [vmem:[%s206 + $0xc8] sm:$0xff]
      %v1854 = vld [vmem:[%s206 + $0xd0] sm:$0xff]
      %v1855 = vld [vmem:[%s206 + $0xd8] sm:$0xff]
      %v1856 = vld [vmem:[%s206 + $0xe0] sm:$0xff]
      %v1857 = vld [vmem:[%s206 + $0xe8] sm:$0xff]
      %v1858 = vld [vmem:[%s206 + $0xf0] sm:$0xff]
      %v1859 = vld [vmem:[%s206 + $0xf8] sm:$0xff]
      %v1862 = vunpack.c.l.b16 %v1778
      %v1863 = vunpack.c.l.b16 %v1779
      %v1864 = vpack.c.b16 %v1863, %v1862
      %v1866 = vsel %vm338, %v1864, 0
      %v1869 = vsel %vm342, %v1827, 0
      %1871 = vmatpush.bf16.msra.mxu0 0
      %1872 = vmatpush.bf16.msra.mxu0 0
      %1873 = vmatpush.bf16.msra.mxu0 0
      %1874 = vmatpush.bf16.msra.mxu0 0
      %1875 = vmatpush.bf16.msra.mxu0 0
      %1876 = vmatpush.bf16.msra.mxu0 0
      %1877 = vmatpush.bf16.msra.mxu0 0
      %1878 = vmatpush.bf16.msra.mxu0 %v1869
      %1879 = vmatmul.bf16.gmra.mxu0 %v1866
      %v1880 = vpop.f32.mrf.mxu0
      %v1881 = vadd.f32 0.0, %v1880
      %v1882 = vpop.f32.mrf.mxu0
      %v1883 = vadd.f32 0.0, %v1882
      %1884 = vdwg.mxu0
      %v1887 = vunpack.c.l.b16 %v1781
      %v1888 = vunpack.c.l.b16 %v1782
      %v1889 = vpack.c.b16 %v1888, %v1887
      %v1891 = vsel %vm338, %v1889, 0
      %1893 = vmatpush.bf16.msra.mxu0 0
      %1894 = vmatpush.bf16.msra.mxu0 0
      %1895 = vmatpush.bf16.msra.mxu0 0
      %1896 = vmatpush.bf16.msra.mxu0 0
      %1897 = vmatpush.bf16.msra.mxu0 0
      %1898 = vmatpush.bf16.msra.mxu0 0
      %1899 = vmatpush.bf16.msra.mxu0 0
      %1900 = vmatpush.bf16.msra.mxu0 %v1869
      %1901 = vmatmul.bf16.gmra.mxu0 %v1891
      %v1902 = vpop.f32.mrf.mxu0
      %v1903 = vadd.f32 0.0, %v1902
      %v1904 = vpop.f32.mrf.mxu0
      %v1905 = vadd.f32 0.0, %v1904
      %1906 = vdwg.mxu0
      %v1909 = vunpack.c.l.b16 %v1784
      %v1910 = vunpack.c.l.b16 %v1785
      %v1911 = vpack.c.b16 %v1910, %v1909
      %v1913 = vsel %vm338, %v1911, 0
      %1915 = vmatpush.bf16.msra.mxu0 0
      %1916 = vmatpush.bf16.msra.mxu0 0
      %1917 = vmatpush.bf16.msra.mxu0 0
      %1918 = vmatpush.bf16.msra.mxu0 0
      %1919 = vmatpush.bf16.msra.mxu0 0
      %1920 = vmatpush.bf16.msra.mxu0 0
      %1921 = vmatpush.bf16.msra.mxu0 0
      %1922 = vmatpush.bf16.msra.mxu0 %v1869
      %1923 = vmatmul.bf16.gmra.mxu0 %v1913
      %v1924 = vpop.f32.mrf.mxu0
      %v1925 = vadd.f32 0.0, %v1924
      %v1926 = vpop.f32.mrf.mxu0
      %v1927 = vadd.f32 0.0, %v1926
      %1928 = vdwg.mxu0
      %v1931 = vunpack.c.l.b16 %v1787
      %v1932 = vunpack.c.l.b16 %v1788
      %v1933 = vpack.c.b16 %v1932, %v1931
      %v1935 = vsel %vm338, %v1933, 0
      %1937 = vmatpush.bf16.msra.mxu0 0
      %1938 = vmatpush.bf16.msra.mxu0 0
      %1939 = vmatpush.bf16.msra.mxu0 0
      %1940 = vmatpush.bf16.msra.mxu0 0
      %1941 = vmatpush.bf16.msra.mxu0 0
      %1942 = vmatpush.bf16.msra.mxu0 0
      %1943 = vmatpush.bf16.msra.mxu0 0
      %1944 = vmatpush.bf16.msra.mxu0 %v1869
      %1945 = vmatmul.bf16.gmra.mxu0 %v1935
      %v1946 = vpop.f32.mrf.mxu0
      %v1947 = vadd.f32 0.0, %v1946
      %v1948 = vpop.f32.mrf.mxu0
      %v1949 = vadd.f32 0.0, %v1948
      %1950 = vdwg.mxu0
      %v1953 = vunpack.c.l.b16 %v1790
      %v1954 = vunpack.c.l.b16 %v1791
      %v1955 = vpack.c.b16 %v1954, %v1953
      %v1957 = vsel %vm338, %v1955, 0
      %1959 = vmatpush.bf16.msra.mxu0 0
      %1960 = vmatpush.bf16.msra.mxu0 0
      %1961 = vmatpush.bf16.msra.mxu0 0
      %1962 = vmatpush.bf16.msra.mxu0 0
      %1963 = vmatpush.bf16.msra.mxu0 0
      %1964 = vmatpush.bf16.msra.mxu0 0
      %1965 = vmatpush.bf16.msra.mxu0 0
      %1966 = vmatpush.bf16.msra.mxu0 %v1869
      %1967 = vmatmul.bf16.gmra.mxu0 %v1957
      %v1968 = vpop.f32.mrf.mxu0
      %v1969 = vadd.f32 0.0, %v1968
      %v1970 = vpop.f32.mrf.mxu0
      %v1971 = vadd.f32 0.0, %v1970
      %1972 = vdwg.mxu0
      %v1975 = vunpack.c.l.b16 %v1793
      %v1976 = vunpack.c.l.b16 %v1794
      %v1977 = vpack.c.b16 %v1976, %v1975
      %v1979 = vsel %vm338, %v1977, 0
      %1981 = vmatpush.bf16.msra.mxu0 0
      %1982 = vmatpush.bf16.msra.mxu0 0
      %1983 = vmatpush.bf16.msra.mxu0 0
      %1984 = vmatpush.bf16.msra.mxu0 0
      %1985 = vmatpush.bf16.msra.mxu0 0
      %1986 = vmatpush.bf16.msra.mxu0 0
      %1987 = vmatpush.bf16.msra.mxu0 0
      %1988 = vmatpush.bf16.msra.mxu0 %v1869
      %1989 = vmatmul.bf16.gmra.mxu0 %v1979
      %v1990 = vpop.f32.mrf.mxu0
      %v1991 = vadd.f32 0.0, %v1990
      %v1992 = vpop.f32.mrf.mxu0
      %v1993 = vadd.f32 0.0, %v1992
      %1994 = vdwg.mxu0
      %v1997 = vunpack.c.l.b16 %v1796
      %v1998 = vunpack.c.l.b16 %v1797
      %v1999 = vpack.c.b16 %v1998, %v1997
      %v2001 = vsel %vm338, %v1999, 0
      %2003 = vmatpush.bf16.msra.mxu0 0
      %2004 = vmatpush.bf16.msra.mxu0 0
      %2005 = vmatpush.bf16.msra.mxu0 0
      %2006 = vmatpush.bf16.msra.mxu0 0
      %2007 = vmatpush.bf16.msra.mxu0 0
      %2008 = vmatpush.bf16.msra.mxu0 0
      %2009 = vmatpush.bf16.msra.mxu0 0
      %2010 = vmatpush.bf16.msra.mxu0 %v1869
      %2011 = vmatmul.bf16.gmra.mxu0 %v2001
      %v2012 = vpop.f32.mrf.mxu0
      %v2013 = vadd.f32 0.0, %v2012
      %v2014 = vpop.f32.mrf.mxu0
      %v2015 = vadd.f32 0.0, %v2014
      %2016 = vdwg.mxu0
      %v2019 = vunpack.c.l.b16 %v1799
      %v2020 = vunpack.c.l.b16 %v1800
      %v2021 = vpack.c.b16 %v2020, %v2019
      %v2023 = vsel %vm338, %v2021, 0
      %2025 = vmatpush.bf16.msra.mxu0 0
      %2026 = vmatpush.bf16.msra.mxu0 0
      %2027 = vmatpush.bf16.msra.mxu0 0
      %2028 = vmatpush.bf16.msra.mxu0 0
      %2029 = vmatpush.bf16.msra.mxu0 0
      %2030 = vmatpush.bf16.msra.mxu0 0
      %2031 = vmatpush.bf16.msra.mxu0 0
      %2032 = vmatpush.bf16.msra.mxu0 %v1869
      %2033 = vmatmul.bf16.gmra.mxu0 %v2023
      %v2034 = vpop.f32.mrf.mxu0
      %v2035 = vadd.f32 0.0, %v2034
      %v2036 = vpop.f32.mrf.mxu0
      %v2037 = vadd.f32 0.0, %v2036
      %2038 = vdwg.mxu0
      %v2041 = vunpack.c.l.b16 %v1802
      %v2042 = vunpack.c.l.b16 %v1803
      %v2043 = vpack.c.b16 %v2042, %v2041
      %v2045 = vsel %vm338, %v2043, 0
      %2047 = vmatpush.bf16.msra.mxu0 0
      %2048 = vmatpush.bf16.msra.mxu0 0
      %2049 = vmatpush.bf16.msra.mxu0 0
      %2050 = vmatpush.bf16.msra.mxu0 0
      %2051 = vmatpush.bf16.msra.mxu0 0
      %2052 = vmatpush.bf16.msra.mxu0 0
      %2053 = vmatpush.bf16.msra.mxu0 0
      %2054 = vmatpush.bf16.msra.mxu0 %v1869
      %2055 = vmatmul.bf16.gmra.mxu0 %v2045
      %v2056 = vpop.f32.mrf.mxu0
      %v2057 = vadd.f32 0.0, %v2056
      %v2058 = vpop.f32.mrf.mxu0
      %v2059 = vadd.f32 0.0, %v2058
      %2060 = vdwg.mxu0
      %v2063 = vunpack.c.l.b16 %v1805
      %v2064 = vunpack.c.l.b16 %v1806
      %v2065 = vpack.c.b16 %v2064, %v2063
      %v2067 = vsel %vm338, %v2065, 0
      %2069 = vmatpush.bf16.msra.mxu0 0
      %2070 = vmatpush.bf16.msra.mxu0 0
      %2071 = vmatpush.bf16.msra.mxu0 0
      %2072 = vmatpush.bf16.msra.mxu0 0
      %2073 = vmatpush.bf16.msra.mxu0 0
      %2074 = vmatpush.bf16.msra.mxu0 0
      %2075 = vmatpush.bf16.msra.mxu0 0
      %2076 = vmatpush.bf16.msra.mxu0 %v1869
      %2077 = vmatmul.bf16.gmra.mxu0 %v2067
      %v2078 = vpop.f32.mrf.mxu0
      %v2079 = vadd.f32 0.0, %v2078
      %v2080 = vpop.f32.mrf.mxu0
      %v2081 = vadd.f32 0.0, %v2080
      %2082 = vdwg.mxu0
      %v2085 = vunpack.c.l.b16 %v1808
      %v2086 = vunpack.c.l.b16 %v1809
      %v2087 = vpack.c.b16 %v2086, %v2085
      %v2089 = vsel %vm338, %v2087, 0
      %2091 = vmatpush.bf16.msra.mxu0 0
      %2092 = vmatpush.bf16.msra.mxu0 0
      %2093 = vmatpush.bf16.msra.mxu0 0
      %2094 = vmatpush.bf16.msra.mxu0 0
      %2095 = vmatpush.bf16.msra.mxu0 0
      %2096 = vmatpush.bf16.msra.mxu0 0
      %2097 = vmatpush.bf16.msra.mxu0 0
      %2098 = vmatpush.bf16.msra.mxu0 %v1869
      %2099 = vmatmul.bf16.gmra.mxu0 %v2089
      %v2100 = vpop.f32.mrf.mxu0
      %v2101 = vadd.f32 0.0, %v2100
      %v2102 = vpop.f32.mrf.mxu0
      %v2103 = vadd.f32 0.0, %v2102
      %2104 = vdwg.mxu0
      %v2107 = vunpack.c.l.b16 %v1811
      %v2108 = vunpack.c.l.b16 %v1812
      %v2109 = vpack.c.b16 %v2108, %v2107
      %v2111 = vsel %vm338, %v2109, 0
      %2113 = vmatpush.bf16.msra.mxu0 0
      %2114 = vmatpush.bf16.msra.mxu0 0
      %2115 = vmatpush.bf16.msra.mxu0 0
      %2116 = vmatpush.bf16.msra.mxu0 0
      %2117 = vmatpush.bf16.msra.mxu0 0
      %2118 = vmatpush.bf16.msra.mxu0 0
      %2119 = vmatpush.bf16.msra.mxu0 0
      %2120 = vmatpush.bf16.msra.mxu0 %v1869
      %2121 = vmatmul.bf16.gmra.mxu0 %v2111
      %v2122 = vpop.f32.mrf.mxu0
      %v2123 = vadd.f32 0.0, %v2122
      %v2124 = vpop.f32.mrf.mxu0
      %v2125 = vadd.f32 0.0, %v2124
      %2126 = vdwg.mxu0
      %v2129 = vunpack.c.l.b16 %v1814
      %v2130 = vunpack.c.l.b16 %v1815
      %v2131 = vpack.c.b16 %v2130, %v2129
      %v2133 = vsel %vm338, %v2131, 0
      %2135 = vmatpush.bf16.msra.mxu0 0
      %2136 = vmatpush.bf16.msra.mxu0 0
      %2137 = vmatpush.bf16.msra.mxu0 0
      %2138 = vmatpush.bf16.msra.mxu0 0
      %2139 = vmatpush.bf16.msra.mxu0 0
      %2140 = vmatpush.bf16.msra.mxu0 0
      %2141 = vmatpush.bf16.msra.mxu0 0
      %2142 = vmatpush.bf16.msra.mxu0 %v1869
      %2143 = vmatmul.bf16.gmra.mxu0 %v2133
      %v2144 = vpop.f32.mrf.mxu0
      %v2145 = vadd.f32 0.0, %v2144
      %v2146 = vpop.f32.mrf.mxu0
      %v2147 = vadd.f32 0.0, %v2146
      %2148 = vdwg.mxu0
      %v2151 = vunpack.c.l.b16 %v1817
      %v2152 = vunpack.c.l.b16 %v1818
      %v2153 = vpack.c.b16 %v2152, %v2151
      %v2155 = vsel %vm338, %v2153, 0
      %2157 = vmatpush.bf16.msra.mxu0 0
      %2158 = vmatpush.bf16.msra.mxu0 0
      %2159 = vmatpush.bf16.msra.mxu0 0
      %2160 = vmatpush.bf16.msra.mxu0 0
      %2161 = vmatpush.bf16.msra.mxu0 0
      %2162 = vmatpush.bf16.msra.mxu0 0
      %2163 = vmatpush.bf16.msra.mxu0 0
      %2164 = vmatpush.bf16.msra.mxu0 %v1869
      %2165 = vmatmul.bf16.gmra.mxu0 %v2155
      %v2166 = vpop.f32.mrf.mxu0
      %v2167 = vadd.f32 0.0, %v2166
      %v2168 = vpop.f32.mrf.mxu0
      %v2169 = vadd.f32 0.0, %v2168
      %2170 = vdwg.mxu0
      %v2173 = vunpack.c.l.b16 %v1820
      %v2174 = vunpack.c.l.b16 %v1821
      %v2175 = vpack.c.b16 %v2174, %v2173
      %v2177 = vsel %vm338, %v2175, 0
      %2179 = vmatpush.bf16.msra.mxu0 0
      %2180 = vmatpush.bf16.msra.mxu0 0
      %2181 = vmatpush.bf16.msra.mxu0 0
      %2182 = vmatpush.bf16.msra.mxu0 0
      %2183 = vmatpush.bf16.msra.mxu0 0
      %2184 = vmatpush.bf16.msra.mxu0 0
      %2185 = vmatpush.bf16.msra.mxu0 0
      %2186 = vmatpush.bf16.msra.mxu0 %v1869
      %2187 = vmatmul.bf16.gmra.mxu0 %v2177
      %v2188 = vpop.f32.mrf.mxu0
      %v2189 = vadd.f32 0.0, %v2188
      %v2190 = vpop.f32.mrf.mxu0
      %v2191 = vadd.f32 0.0, %v2190
      %2192 = vdwg.mxu0
      %v2195 = vunpack.c.l.b16 %v1823
      %v2196 = vunpack.c.l.b16 %v1824
      %v2197 = vpack.c.b16 %v2196, %v2195
      %v2199 = vsel %vm338, %v2197, 0
      %2201 = vmatpush.bf16.msra.mxu0 0
      %2202 = vmatpush.bf16.msra.mxu0 0
      %2203 = vmatpush.bf16.msra.mxu0 0
      %2204 = vmatpush.bf16.msra.mxu0 0
      %2205 = vmatpush.bf16.msra.mxu0 0
      %2206 = vmatpush.bf16.msra.mxu0 0
      %2207 = vmatpush.bf16.msra.mxu0 0
      %2208 = vmatpush.bf16.msra.mxu0 %v1869
      %2209 = vmatmul.bf16.gmra.mxu0 %v2199
      %v2210 = vpop.f32.mrf.mxu0
      %v2211 = vadd.f32 0.0, %v2210
      %v2212 = vpop.f32.mrf.mxu0
      %v2213 = vadd.f32 0.0, %v2212
      %2214 = vdwg.mxu0
      %v2215 = vadd.f32 %v1828, %v1881
      %v2216 = vadd.f32 %v1829, %v1883
      %v2217 = vadd.f32 %v1830, %v1903
      %v2218 = vadd.f32 %v1831, %v1905
      %v2219 = vadd.f32 %v1832, %v1925
      %v2220 = vadd.f32 %v1833, %v1927
      %v2221 = vadd.f32 %v1834, %v1947
      %v2222 = vadd.f32 %v1835, %v1949
      %v2223 = vadd.f32 %v1836, %v1969
      %v2224 = vadd.f32 %v1837, %v1971
      %v2225 = vadd.f32 %v1838, %v1991
      %v2226 = vadd.f32 %v1839, %v1993
      %v2227 = vadd.f32 %v1840, %v2013
      %v2228 = vadd.f32 %v1841, %v2015
      %v2229 = vadd.f32 %v1842, %v2035
      %v2230 = vadd.f32 %v1843, %v2037
      %v2231 = vadd.f32 %v1844, %v2057
      %v2232 = vadd.f32 %v1845, %v2059
      %v2233 = vadd.f32 %v1846, %v2079
      %v2234 = vadd.f32 %v1847, %v2081
      %v2235 = vadd.f32 %v1848, %v2101
      %v2236 = vadd.f32 %v1849, %v2103
      %v2237 = vadd.f32 %v1850, %v2123
      %v2238 = vadd.f32 %v1851, %v2125
      %v2239 = vadd.f32 %v1852, %v2145
      %v2240 = vadd.f32 %v1853, %v2147
      %v2241 = vadd.f32 %v1854, %v2167
      %v2242 = vadd.f32 %v1855, %v2169
      %v2243 = vadd.f32 %v1856, %v2189
      %v2244 = vadd.f32 %v1857, %v2191
      %v2245 = vadd.f32 %v1858, %v2211
      %v2246 = vadd.f32 %v1859, %v2213
      %2247 = vst [vmem:[%s206] sm:$0xff] %v2215
      %2248 = vst [vmem:[%s206 + $0x8] sm:$0xff] %v2216
      %2249 = vst [vmem:[%s206 + $0x10] sm:$0xff] %v2217
      %2250 = vst [vmem:[%s206 + $0x18] sm:$0xff] %v2218
      %2251 = vst [vmem:[%s206 + $0x20] sm:$0xff] %v2219
      %2252 = vst [vmem:[%s206 + $0x28] sm:$0xff] %v2220
      %2253 = vst [vmem:[%s206 + $0x30] sm:$0xff] %v2221
      %2254 = vst [vmem:[%s206 + $0x38] sm:$0xff] %v2222
      %2255 = vst [vmem:[%s206 + $0x40] sm:$0xff] %v2223
      %2256 = vst [vmem:[%s206 + $0x48] sm:$0xff] %v2224
      %2257 = vst [vmem:[%s206 + $0x50] sm:$0xff] %v2225
      %2258 = vst [vmem:[%s206 + $0x58] sm:$0xff] %v2226
      %2259 = vst [vmem:[%s206 + $0x60] sm:$0xff] %v2227
      %2260 = vst [vmem:[%s206 + $0x68] sm:$0xff] %v2228
      %2261 = vst [vmem:[%s206 + $0x70] sm:$0xff] %v2229
      %2262 = vst [vmem:[%s206 + $0x78] sm:$0xff] %v2230
      %2263 = vst [vmem:[%s206 + $0x80] sm:$0xff] %v2231
      %2264 = vst [vmem:[%s206 + $0x88] sm:$0xff] %v2232
      %2265 = vst [vmem:[%s206 + $0x90] sm:$0xff] %v2233
      %2266 = vst [vmem:[%s206 + $0x98] sm:$0xff] %v2234
      %2267 = vst [vmem:[%s206 + $0xa0] sm:$0xff] %v2235
      %2268 = vst [vmem:[%s206 + $0xa8] sm:$0xff] %v2236
      %2269 = vst [vmem:[%s206 + $0xb0] sm:$0xff] %v2237
      %2270 = vst [vmem:[%s206 + $0xb8] sm:$0xff] %v2238
      %2271 = vst [vmem:[%s206 + $0xc0] sm:$0xff] %v2239
      %2272 = vst [vmem:[%s206 + $0xc8] sm:$0xff] %v2240
      %2273 = vst [vmem:[%s206 + $0xd0] sm:$0xff] %v2241
      %2274 = vst [vmem:[%s206 + $0xd8] sm:$0xff] %v2242
      %2275 = vst [vmem:[%s206 + $0xe0] sm:$0xff] %v2243
      %2276 = vst [vmem:[%s206 + $0xe8] sm:$0xff] %v2244
      %2277 = vst [vmem:[%s206 + $0xf0] sm:$0xff] %v2245
      %2278 = vst [vmem:[%s206 + $0xf8] sm:$0xff] %v2246
      %s2279 = scalar_lea.vmem %s1, 8
      %v2280 = vld [vmem:[%s2279] sm:$0x3]
      %v2281 = vld [vmem:[%s206] sm:$0xff]
      %v2282 = vld [vmem:[%s206 + $0x8] sm:$0xff]
      %v2283 = vld [vmem:[%s206 + $0x10] sm:$0xff]
      %v2284 = vld [vmem:[%s206 + $0x18] sm:$0xff]
      %v2285 = vld [vmem:[%s206 + $0x20] sm:$0xff]
      %v2286 = vld [vmem:[%s206 + $0x28] sm:$0xff]
      %v2287 = vld [vmem:[%s206 + $0x30] sm:$0xff]
      %v2288 = vld [vmem:[%s206 + $0x38] sm:$0xff]
      %v2289 = vld [vmem:[%s206 + $0x40] sm:$0xff]
      %v2290 = vld [vmem:[%s206 + $0x48] sm:$0xff]
      %v2291 = vld [vmem:[%s206 + $0x50] sm:$0xff]
      %v2292 = vld [vmem:[%s206 + $0x58] sm:$0xff]
      %v2293 = vld [vmem:[%s206 + $0x60] sm:$0xff]
      %v2294 = vld [vmem:[%s206 + $0x68] sm:$0xff]
      %v2295 = vld [vmem:[%s206 + $0x70] sm:$0xff]
      %v2296 = vld [vmem:[%s206 + $0x78] sm:$0xff]
      %v2297 = vld [vmem:[%s206 + $0x80] sm:$0xff]
      %v2298 = vld [vmem:[%s206 + $0x88] sm:$0xff]
      %v2299 = vld [vmem:[%s206 + $0x90] sm:$0xff]
      %v2300 = vld [vmem:[%s206 + $0x98] sm:$0xff]
      %v2301 = vld [vmem:[%s206 + $0xa0] sm:$0xff]
      %v2302 = vld [vmem:[%s206 + $0xa8] sm:$0xff]
      %v2303 = vld [vmem:[%s206 + $0xb0] sm:$0xff]
      %v2304 = vld [vmem:[%s206 + $0xb8] sm:$0xff]
      %v2305 = vld [vmem:[%s206 + $0xc0] sm:$0xff]
      %v2306 = vld [vmem:[%s206 + $0xc8] sm:$0xff]
      %v2307 = vld [vmem:[%s206 + $0xd0] sm:$0xff]
      %v2308 = vld [vmem:[%s206 + $0xd8] sm:$0xff]
      %v2309 = vld [vmem:[%s206 + $0xe0] sm:$0xff]
      %v2310 = vld [vmem:[%s206 + $0xe8] sm:$0xff]
      %v2311 = vld [vmem:[%s206 + $0xf0] sm:$0xff]
      %v2312 = vld [vmem:[%s206 + $0xf8] sm:$0xff]
      %v2314 = vunpack.c.l.b16 %v1780
      %v2315 = vpack.c.b16 %v2314, %v2314
      %v2316 = vshrl.u32 %v1864, 16
      %v2318 = vshll.u32 %v1864, 16
      %v2320 = vrot.slane %v2318, 1
      %v2321 = vor.u32 %v2316, %v2320
      %v2323 = vshll.u32 %v2315, 16
      %v2325 = vrot.slane %v2323, 1
      %v2326 = vsel %vm791, %v2321, %v2325
      %v2328 = vsel %vm338, %v2326, 0
      %v2331 = vsel %vm342, %v2280, 0
      %2333 = vmatpush.bf16.msra.mxu0 0
      %2334 = vmatpush.bf16.msra.mxu0 0
      %2335 = vmatpush.bf16.msra.mxu0 0
      %2336 = vmatpush.bf16.msra.mxu0 0
      %2337 = vmatpush.bf16.msra.mxu0 0
      %2338 = vmatpush.bf16.msra.mxu0 0
      %2339 = vmatpush.bf16.msra.mxu0 0
      %2340 = vmatpush.bf16.msra.mxu0 %v2331
      %2341 = vmatmul.bf16.gmra.mxu0 %v2328
      %v2342 = vpop.f32.mrf.mxu0
      %v2343 = vadd.f32 0.0, %v2342
      %v2344 = vpop.f32.mrf.mxu0
      %v2345 = vadd.f32 0.0, %v2344
      %2346 = vdwg.mxu0
      %v2348 = vunpack.c.l.b16 %v1783
      %v2349 = vpack.c.b16 %v2348, %v2348
      %v2350 = vshrl.u32 %v1889, 16
      %v2352 = vshll.u32 %v1889, 16
      %v2354 = vrot.slane %v2352, 1
      %v2355 = vor.u32 %v2350, %v2354
      %v2357 = vshll.u32 %v2349, 16
      %v2359 = vrot.slane %v2357, 1
      %v2360 = vsel %vm791, %v2355, %v2359
      %v2362 = vsel %vm338, %v2360, 0
      %2364 = vmatpush.bf16.msra.mxu0 0
      %2365 = vmatpush.bf16.msra.mxu0 0
      %2366 = vmatpush.bf16.msra.mxu0 0
      %2367 = vmatpush.bf16.msra.mxu0 0
      %2368 = vmatpush.bf16.msra.mxu0 0
      %2369 = vmatpush.bf16.msra.mxu0 0
      %2370 = vmatpush.bf16.msra.mxu0 0
      %2371 = vmatpush.bf16.msra.mxu0 %v2331
      %2372 = vmatmul.bf16.gmra.mxu0 %v2362
      %v2373 = vpop.f32.mrf.mxu0
      %v2374 = vadd.f32 0.0, %v2373
      %v2375 = vpop.f32.mrf.mxu0
      %v2376 = vadd.f32 0.0, %v2375
      %2377 = vdwg.mxu0
      %v2379 = vunpack.c.l.b16 %v1786
      %v2380 = vpack.c.b16 %v2379, %v2379
      %v2381 = vshrl.u32 %v1911, 16
      %v2383 = vshll.u32 %v1911, 16
      %v2385 = vrot.slane %v2383, 1
      %v2386 = vor.u32 %v2381, %v2385
      %v2388 = vshll.u32 %v2380, 16
      %v2390 = vrot.slane %v2388, 1
      %v2391 = vsel %vm791, %v2386, %v2390
      %v2393 = vsel %vm338, %v2391, 0
      %2395 = vmatpush.bf16.msra.mxu0 0
      %2396 = vmatpush.bf16.msra.mxu0 0
      %2397 = vmatpush.bf16.msra.mxu0 0
      %2398 = vmatpush.bf16.msra.mxu0 0
      %2399 = vmatpush.bf16.msra.mxu0 0
      %2400 = vmatpush.bf16.msra.mxu0 0
      %2401 = vmatpush.bf16.msra.mxu0 0
      %2402 = vmatpush.bf16.msra.mxu0 %v2331
      %2403 = vmatmul.bf16.gmra.mxu0 %v2393
      %v2404 = vpop.f32.mrf.mxu0
      %v2405 = vadd.f32 0.0, %v2404
      %v2406 = vpop.f32.mrf.mxu0
      %v2407 = vadd.f32 0.0, %v2406
      %2408 = vdwg.mxu0
      %v2410 = vunpack.c.l.b16 %v1789
      %v2411 = vpack.c.b16 %v2410, %v2410
      %v2412 = vshrl.u32 %v1933, 16
      %v2414 = vshll.u32 %v1933, 16
      %v2416 = vrot.slane %v2414, 1
      %v2417 = vor.u32 %v2412, %v2416
      %v2419 = vshll.u32 %v2411, 16
      %v2421 = vrot.slane %v2419, 1
      %v2422 = vsel %vm791, %v2417, %v2421
      %v2424 = vsel %vm338, %v2422, 0
      %2426 = vmatpush.bf16.msra.mxu0 0
      %2427 = vmatpush.bf16.msra.mxu0 0
      %2428 = vmatpush.bf16.msra.mxu0 0
      %2429 = vmatpush.bf16.msra.mxu0 0
      %2430 = vmatpush.bf16.msra.mxu0 0
      %2431 = vmatpush.bf16.msra.mxu0 0
      %2432 = vmatpush.bf16.msra.mxu0 0
      %2433 = vmatpush.bf16.msra.mxu0 %v2331
      %2434 = vmatmul.bf16.gmra.mxu0 %v2424
      %v2435 = vpop.f32.mrf.mxu0
      %v2436 = vadd.f32 0.0, %v2435
      %v2437 = vpop.f32.mrf.mxu0
      %v2438 = vadd.f32 0.0, %v2437
      %2439 = vdwg.mxu0
      %v2441 = vunpack.c.l.b16 %v1792
      %v2442 = vpack.c.b16 %v2441, %v2441
      %v2443 = vshrl.u32 %v1955, 16
      %v2445 = vshll.u32 %v1955, 16
      %v2447 = vrot.slane %v2445, 1
      %v2448 = vor.u32 %v2443, %v2447
      %v2450 = vshll.u32 %v2442, 16
      %v2452 = vrot.slane %v2450, 1
      %v2453 = vsel %vm791, %v2448, %v2452
      %v2455 = vsel %vm338, %v2453, 0
      %2457 = vmatpush.bf16.msra.mxu0 0
      %2458 = vmatpush.bf16.msra.mxu0 0
      %2459 = vmatpush.bf16.msra.mxu0 0
      %2460 = vmatpush.bf16.msra.mxu0 0
      %2461 = vmatpush.bf16.msra.mxu0 0
      %2462 = vmatpush.bf16.msra.mxu0 0
      %2463 = vmatpush.bf16.msra.mxu0 0
      %2464 = vmatpush.bf16.msra.mxu0 %v2331
      %2465 = vmatmul.bf16.gmra.mxu0 %v2455
      %v2466 = vpop.f32.mrf.mxu0
      %v2467 = vadd.f32 0.0, %v2466
      %v2468 = vpop.f32.mrf.mxu0
      %v2469 = vadd.f32 0.0, %v2468
      %2470 = vdwg.mxu0
      %v2472 = vunpack.c.l.b16 %v1795
      %v2473 = vpack.c.b16 %v2472, %v2472
      %v2474 = vshrl.u32 %v1977, 16
      %v2476 = vshll.u32 %v1977, 16
      %v2478 = vrot.slane %v2476, 1
      %v2479 = vor.u32 %v2474, %v2478
      %v2481 = vshll.u32 %v2473, 16
      %v2483 = vrot.slane %v2481, 1
      %v2484 = vsel %vm791, %v2479, %v2483
      %v2486 = vsel %vm338, %v2484, 0
      %2488 = vmatpush.bf16.msra.mxu0 0
      %2489 = vmatpush.bf16.msra.mxu0 0
      %2490 = vmatpush.bf16.msra.mxu0 0
      %2491 = vmatpush.bf16.msra.mxu0 0
      %2492 = vmatpush.bf16.msra.mxu0 0
      %2493 = vmatpush.bf16.msra.mxu0 0
      %2494 = vmatpush.bf16.msra.mxu0 0
      %2495 = vmatpush.bf16.msra.mxu0 %v2331
      %2496 = vmatmul.bf16.gmra.mxu0 %v2486
      %v2497 = vpop.f32.mrf.mxu0
      %v2498 = vadd.f32 0.0, %v2497
      %v2499 = vpop.f32.mrf.mxu0
      %v2500 = vadd.f32 0.0, %v2499
      %2501 = vdwg.mxu0
      %v2503 = vunpack.c.l.b16 %v1798
      %v2504 = vpack.c.b16 %v2503, %v2503
      %v2505 = vshrl.u32 %v1999, 16
      %v2507 = vshll.u32 %v1999, 16
      %v2509 = vrot.slane %v2507, 1
      %v2510 = vor.u32 %v2505, %v2509
      %v2512 = vshll.u32 %v2504, 16
      %v2514 = vrot.slane %v2512, 1
      %v2515 = vsel %vm791, %v2510, %v2514
      %v2517 = vsel %vm338, %v2515, 0
      %2519 = vmatpush.bf16.msra.mxu0 0
      %2520 = vmatpush.bf16.msra.mxu0 0
      %2521 = vmatpush.bf16.msra.mxu0 0
      %2522 = vmatpush.bf16.msra.mxu0 0
      %2523 = vmatpush.bf16.msra.mxu0 0
      %2524 = vmatpush.bf16.msra.mxu0 0
      %2525 = vmatpush.bf16.msra.mxu0 0
      %2526 = vmatpush.bf16.msra.mxu0 %v2331
      %2527 = vmatmul.bf16.gmra.mxu0 %v2517
      %v2528 = vpop.f32.mrf.mxu0
      %v2529 = vadd.f32 0.0, %v2528
      %v2530 = vpop.f32.mrf.mxu0
      %v2531 = vadd.f32 0.0, %v2530
      %2532 = vdwg.mxu0
      %v2534 = vunpack.c.l.b16 %v1801
      %v2535 = vpack.c.b16 %v2534, %v2534
      %v2536 = vshrl.u32 %v2021, 16
      %v2538 = vshll.u32 %v2021, 16
      %v2540 = vrot.slane %v2538, 1
      %v2541 = vor.u32 %v2536, %v2540
      %v2543 = vshll.u32 %v2535, 16
      %v2545 = vrot.slane %v2543, 1
      %v2546 = vsel %vm791, %v2541, %v2545
      %v2548 = vsel %vm338, %v2546, 0
      %2550 = vmatpush.bf16.msra.mxu0 0
      %2551 = vmatpush.bf16.msra.mxu0 0
      %2552 = vmatpush.bf16.msra.mxu0 0
      %2553 = vmatpush.bf16.msra.mxu0 0
      %2554 = vmatpush.bf16.msra.mxu0 0
      %2555 = vmatpush.bf16.msra.mxu0 0
      %2556 = vmatpush.bf16.msra.mxu0 0
      %2557 = vmatpush.bf16.msra.mxu0 %v2331
      %2558 = vmatmul.bf16.gmra.mxu0 %v2548
      %v2559 = vpop.f32.mrf.mxu0
      %v2560 = vadd.f32 0.0, %v2559
      %v2561 = vpop.f32.mrf.mxu0
      %v2562 = vadd.f32 0.0, %v2561
      %2563 = vdwg.mxu0
      %v2565 = vunpack.c.l.b16 %v1804
      %v2566 = vpack.c.b16 %v2565, %v2565
      %v2567 = vshrl.u32 %v2043, 16
      %v2569 = vshll.u32 %v2043, 16
      %v2571 = vrot.slane %v2569, 1
      %v2572 = vor.u32 %v2567, %v2571
      %v2574 = vshll.u32 %v2566, 16
      %v2576 = vrot.slane %v2574, 1
      %v2577 = vsel %vm791, %v2572, %v2576
      %v2579 = vsel %vm338, %v2577, 0
      %2581 = vmatpush.bf16.msra.mxu0 0
      %2582 = vmatpush.bf16.msra.mxu0 0
      %2583 = vmatpush.bf16.msra.mxu0 0
      %2584 = vmatpush.bf16.msra.mxu0 0
      %2585 = vmatpush.bf16.msra.mxu0 0
      %2586 = vmatpush.bf16.msra.mxu0 0
      %2587 = vmatpush.bf16.msra.mxu0 0
      %2588 = vmatpush.bf16.msra.mxu0 %v2331
      %2589 = vmatmul.bf16.gmra.mxu0 %v2579
      %v2590 = vpop.f32.mrf.mxu0
      %v2591 = vadd.f32 0.0, %v2590
      %v2592 = vpop.f32.mrf.mxu0
      %v2593 = vadd.f32 0.0, %v2592
      %2594 = vdwg.mxu0
      %v2596 = vunpack.c.l.b16 %v1807
      %v2597 = vpack.c.b16 %v2596, %v2596
      %v2598 = vshrl.u32 %v2065, 16
      %v2600 = vshll.u32 %v2065, 16
      %v2602 = vrot.slane %v2600, 1
      %v2603 = vor.u32 %v2598, %v2602
      %v2605 = vshll.u32 %v2597, 16
      %v2607 = vrot.slane %v2605, 1
      %v2608 = vsel %vm791, %v2603, %v2607
      %v2610 = vsel %vm338, %v2608, 0
      %2612 = vmatpush.bf16.msra.mxu0 0
      %2613 = vmatpush.bf16.msra.mxu0 0
      %2614 = vmatpush.bf16.msra.mxu0 0
      %2615 = vmatpush.bf16.msra.mxu0 0
      %2616 = vmatpush.bf16.msra.mxu0 0
      %2617 = vmatpush.bf16.msra.mxu0 0
      %2618 = vmatpush.bf16.msra.mxu0 0
      %2619 = vmatpush.bf16.msra.mxu0 %v2331
      %2620 = vmatmul.bf16.gmra.mxu0 %v2610
      %v2621 = vpop.f32.mrf.mxu0
      %v2622 = vadd.f32 0.0, %v2621
      %v2623 = vpop.f32.mrf.mxu0
      %v2624 = vadd.f32 0.0, %v2623
      %2625 = vdwg.mxu0
      %v2627 = vunpack.c.l.b16 %v1810
      %v2628 = vpack.c.b16 %v2627, %v2627
      %v2629 = vshrl.u32 %v2087, 16
      %v2631 = vshll.u32 %v2087, 16
      %v2633 = vrot.slane %v2631, 1
      %v2634 = vor.u32 %v2629, %v2633
      %v2636 = vshll.u32 %v2628, 16
      %v2638 = vrot.slane %v2636, 1
      %v2639 = vsel %vm791, %v2634, %v2638
      %v2641 = vsel %vm338, %v2639, 0
      %2643 = vmatpush.bf16.msra.mxu0 0
      %2644 = vmatpush.bf16.msra.mxu0 0
      %2645 = vmatpush.bf16.msra.mxu0 0
      %2646 = vmatpush.bf16.msra.mxu0 0
      %2647 = vmatpush.bf16.msra.mxu0 0
      %2648 = vmatpush.bf16.msra.mxu0 0
      %2649 = vmatpush.bf16.msra.mxu0 0
      %2650 = vmatpush.bf16.msra.mxu0 %v2331
      %2651 = vmatmul.bf16.gmra.mxu0 %v2641
      %v2652 = vpop.f32.mrf.mxu0
      %v2653 = vadd.f32 0.0, %v2652
      %v2654 = vpop.f32.mrf.mxu0
      %v2655 = vadd.f32 0.0, %v2654
      %2656 = vdwg.mxu0
      %v2658 = vunpack.c.l.b16 %v1813
      %v2659 = vpack.c.b16 %v2658, %v2658
      %v2660 = vshrl.u32 %v2109, 16
      %v2662 = vshll.u32 %v2109, 16
      %v2664 = vrot.slane %v2662, 1
      %v2665 = vor.u32 %v2660, %v2664
      %v2667 = vshll.u32 %v2659, 16
      %v2669 = vrot.slane %v2667, 1
      %v2670 = vsel %vm791, %v2665, %v2669
      %v2672 = vsel %vm338, %v2670, 0
      %2674 = vmatpush.bf16.msra.mxu0 0
      %2675 = vmatpush.bf16.msra.mxu0 0
      %2676 = vmatpush.bf16.msra.mxu0 0
      %2677 = vmatpush.bf16.msra.mxu0 0
      %2678 = vmatpush.bf16.msra.mxu0 0
      %2679 = vmatpush.bf16.msra.mxu0 0
      %2680 = vmatpush.bf16.msra.mxu0 0
      %2681 = vmatpush.bf16.msra.mxu0 %v2331
      %2682 = vmatmul.bf16.gmra.mxu0 %v2672
      %v2683 = vpop.f32.mrf.mxu0
      %v2684 = vadd.f32 0.0, %v2683
      %v2685 = vpop.f32.mrf.mxu0
      %v2686 = vadd.f32 0.0, %v2685
      %2687 = vdwg.mxu0
      %v2689 = vunpack.c.l.b16 %v1816
      %v2690 = vpack.c.b16 %v2689, %v2689
      %v2691 = vshrl.u32 %v2131, 16
      %v2693 = vshll.u32 %v2131, 16
      %v2695 = vrot.slane %v2693, 1
      %v2696 = vor.u32 %v2691, %v2695
      %v2698 = vshll.u32 %v2690, 16
      %v2700 = vrot.slane %v2698, 1
      %v2701 = vsel %vm791, %v2696, %v2700
      %v2703 = vsel %vm338, %v2701, 0
      %2705 = vmatpush.bf16.msra.mxu0 0
      %2706 = vmatpush.bf16.msra.mxu0 0
      %2707 = vmatpush.bf16.msra.mxu0 0
      %2708 = vmatpush.bf16.msra.mxu0 0
      %2709 = vmatpush.bf16.msra.mxu0 0
      %2710 = vmatpush.bf16.msra.mxu0 0
      %2711 = vmatpush.bf16.msra.mxu0 0
      %2712 = vmatpush.bf16.msra.mxu0 %v2331
      %2713 = vmatmul.bf16.gmra.mxu0 %v2703
      %v2714 = vpop.f32.mrf.mxu0
      %v2715 = vadd.f32 0.0, %v2714
      %v2716 = vpop.f32.mrf.mxu0
      %v2717 = vadd.f32 0.0, %v2716
      %2718 = vdwg.mxu0
      %v2720 = vunpack.c.l.b16 %v1819
      %v2721 = vpack.c.b16 %v2720, %v2720
      %v2722 = vshrl.u32 %v2153, 16
      %v2724 = vshll.u32 %v2153, 16
      %v2726 = vrot.slane %v2724, 1
      %v2727 = vor.u32 %v2722, %v2726
      %v2729 = vshll.u32 %v2721, 16
      %v2731 = vrot.slane %v2729, 1
      %v2732 = vsel %vm791, %v2727, %v2731
      %v2734 = vsel %vm338, %v2732, 0
      %2736 = vmatpush.bf16.msra.mxu0 0
      %2737 = vmatpush.bf16.msra.mxu0 0
      %2738 = vmatpush.bf16.msra.mxu0 0
      %2739 = vmatpush.bf16.msra.mxu0 0
      %2740 = vmatpush.bf16.msra.mxu0 0
      %2741 = vmatpush.bf16.msra.mxu0 0
      %2742 = vmatpush.bf16.msra.mxu0 0
      %2743 = vmatpush.bf16.msra.mxu0 %v2331
      %2744 = vmatmul.bf16.gmra.mxu0 %v2734
      %v2745 = vpop.f32.mrf.mxu0
      %v2746 = vadd.f32 0.0, %v2745
      %v2747 = vpop.f32.mrf.mxu0
      %v2748 = vadd.f32 0.0, %v2747
      %2749 = vdwg.mxu0
      %v2751 = vunpack.c.l.b16 %v1822
      %v2752 = vpack.c.b16 %v2751, %v2751
      %v2753 = vshrl.u32 %v2175, 16
      %v2755 = vshll.u32 %v2175, 16
      %v2757 = vrot.slane %v2755, 1
      %v2758 = vor.u32 %v2753, %v2757
      %v2760 = vshll.u32 %v2752, 16
      %v2762 = vrot.slane %v2760, 1
      %v2763 = vsel %vm791, %v2758, %v2762
      %v2765 = vsel %vm338, %v2763, 0
      %2767 = vmatpush.bf16.msra.mxu0 0
      %2768 = vmatpush.bf16.msra.mxu0 0
      %2769 = vmatpush.bf16.msra.mxu0 0
      %2770 = vmatpush.bf16.msra.mxu0 0
      %2771 = vmatpush.bf16.msra.mxu0 0
      %2772 = vmatpush.bf16.msra.mxu0 0
      %2773 = vmatpush.bf16.msra.mxu0 0
      %2774 = vmatpush.bf16.msra.mxu0 %v2331
      %2775 = vmatmul.bf16.gmra.mxu0 %v2765
      %v2776 = vpop.f32.mrf.mxu0
      %v2777 = vadd.f32 0.0, %v2776
      %v2778 = vpop.f32.mrf.mxu0
      %v2779 = vadd.f32 0.0, %v2778
      %2780 = vdwg.mxu0
      %v2782 = vunpack.c.l.b16 %v1825
      %v2783 = vpack.c.b16 %v2782, %v2782
      %v2784 = vshrl.u32 %v2197, 16
      %v2786 = vshll.u32 %v2197, 16
      %v2788 = vrot.slane %v2786, 1
      %v2789 = vor.u32 %v2784, %v2788
      %v2791 = vshll.u32 %v2783, 16
      %v2793 = vrot.slane %v2791, 1
      %v2794 = vsel %vm791, %v2789, %v2793
      %v2796 = vsel %vm338, %v2794, 0
      %2798 = vmatpush.bf16.msra.mxu0 0
      %2799 = vmatpush.bf16.msra.mxu0 0
      %2800 = vmatpush.bf16.msra.mxu0 0
      %2801 = vmatpush.bf16.msra.mxu0 0
      %2802 = vmatpush.bf16.msra.mxu0 0
      %2803 = vmatpush.bf16.msra.mxu0 0
      %2804 = vmatpush.bf16.msra.mxu0 0
      %2805 = vmatpush.bf16.msra.mxu0 %v2331
      %2806 = vmatmul.bf16.gmra.mxu0 %v2796
      %v2807 = vpop.f32.mrf.mxu0
      %v2808 = vadd.f32 0.0, %v2807
      %v2809 = vpop.f32.mrf.mxu0
      %v2810 = vadd.f32 0.0, %v2809
      %2811 = vdwg.mxu0
      %v2812 = vadd.f32 %v2281, %v2343
      %v2813 = vadd.f32 %v2282, %v2345
      %v2814 = vadd.f32 %v2283, %v2374
      %v2815 = vadd.f32 %v2284, %v2376
      %v2816 = vadd.f32 %v2285, %v2405
      %v2817 = vadd.f32 %v2286, %v2407
      %v2818 = vadd.f32 %v2287, %v2436
      %v2819 = vadd.f32 %v2288, %v2438
      %v2820 = vadd.f32 %v2289, %v2467
      %v2821 = vadd.f32 %v2290, %v2469
      %v2822 = vadd.f32 %v2291, %v2498
      %v2823 = vadd.f32 %v2292, %v2500
      %v2824 = vadd.f32 %v2293, %v2529
      %v2825 = vadd.f32 %v2294, %v2531
      %v2826 = vadd.f32 %v2295, %v2560
      %v2827 = vadd.f32 %v2296, %v2562
      %v2828 = vadd.f32 %v2297, %v2591
      %v2829 = vadd.f32 %v2298, %v2593
      %v2830 = vadd.f32 %v2299, %v2622
      %v2831 = vadd.f32 %v2300, %v2624
      %v2832 = vadd.f32 %v2301, %v2653
      %v2833 = vadd.f32 %v2302, %v2655
      %v2834 = vadd.f32 %v2303, %v2684
      %v2835 = vadd.f32 %v2304, %v2686
      %v2836 = vadd.f32 %v2305, %v2715
      %v2837 = vadd.f32 %v2306, %v2717
      %v2838 = vadd.f32 %v2307, %v2746
      %v2839 = vadd.f32 %v2308, %v2748
      %v2840 = vadd.f32 %v2309, %v2777
      %v2841 = vadd.f32 %v2310, %v2779
      %v2842 = vadd.f32 %v2311, %v2808
      %v2843 = vadd.f32 %v2312, %v2810
      %2844 = vst [vmem:[%s206] sm:$0xff] %v2812
      %2845 = vst [vmem:[%s206 + $0x8] sm:$0xff] %v2813
      %2846 = vst [vmem:[%s206 + $0x10] sm:$0xff] %v2814
      %2847 = vst [vmem:[%s206 + $0x18] sm:$0xff] %v2815
      %2848 = vst [vmem:[%s206 + $0x20] sm:$0xff] %v2816
      %2849 = vst [vmem:[%s206 + $0x28] sm:$0xff] %v2817
      %2850 = vst [vmem:[%s206 + $0x30] sm:$0xff] %v2818
      %2851 = vst [vmem:[%s206 + $0x38] sm:$0xff] %v2819
      %2852 = vst [vmem:[%s206 + $0x40] sm:$0xff] %v2820
      %2853 = vst [vmem:[%s206 + $0x48] sm:$0xff] %v2821
      %2854 = vst [vmem:[%s206 + $0x50] sm:$0xff] %v2822
      %2855 = vst [vmem:[%s206 + $0x58] sm:$0xff] %v2823
      %2856 = vst [vmem:[%s206 + $0x60] sm:$0xff] %v2824
      %2857 = vst [vmem:[%s206 + $0x68] sm:$0xff] %v2825
      %2858 = vst [vmem:[%s206 + $0x70] sm:$0xff] %v2826
      %2859 = vst [vmem:[%s206 + $0x78] sm:$0xff] %v2827
      %2860 = vst [vmem:[%s206 + $0x80] sm:$0xff] %v2828
      %2861 = vst [vmem:[%s206 + $0x88] sm:$0xff] %v2829
      %2862 = vst [vmem:[%s206 + $0x90] sm:$0xff] %v2830
      %2863 = vst [vmem:[%s206 + $0x98] sm:$0xff] %v2831
      %2864 = vst [vmem:[%s206 + $0xa0] sm:$0xff] %v2832
      %2865 = vst [vmem:[%s206 + $0xa8] sm:$0xff] %v2833
      %2866 = vst [vmem:[%s206 + $0xb0] sm:$0xff] %v2834
      %2867 = vst [vmem:[%s206 + $0xb8] sm:$0xff] %v2835
      %2868 = vst [vmem:[%s206 + $0xc0] sm:$0xff] %v2836
      %2869 = vst [vmem:[%s206 + $0xc8] sm:$0xff] %v2837
      %2870 = vst [vmem:[%s206 + $0xd0] sm:$0xff] %v2838
      %2871 = vst [vmem:[%s206 + $0xd8] sm:$0xff] %v2839
      %2872 = vst [vmem:[%s206 + $0xe0] sm:$0xff] %v2840
      %2873 = vst [vmem:[%s206 + $0xe8] sm:$0xff] %v2841
      %2874 = vst [vmem:[%s206 + $0xf0] sm:$0xff] %v2842
      %2875 = vst [vmem:[%s206 + $0xf8] sm:$0xff] %v2843
      %s2876 = scalar_lea.vmem %s1, 10
      %v2877 = vld [vmem:[%s2876] sm:$0x3]
      %v2878 = vld [vmem:[%s206] sm:$0xff]
      %v2879 = vld [vmem:[%s206 + $0x8] sm:$0xff]
      %v2880 = vld [vmem:[%s206 + $0x10] sm:$0xff]
      %v2881 = vld [vmem:[%s206 + $0x18] sm:$0xff]
      %v2882 = vld [vmem:[%s206 + $0x20] sm:$0xff]
      %v2883 = vld [vmem:[%s206 + $0x28] sm:$0xff]
      %v2884 = vld [vmem:[%s206 + $0x30] sm:$0xff]
      %v2885 = vld [vmem:[%s206 + $0x38] sm:$0xff]
      %v2886 = vld [vmem:[%s206 + $0x40] sm:$0xff]
      %v2887 = vld [vmem:[%s206 + $0x48] sm:$0xff]
      %v2888 = vld [vmem:[%s206 + $0x50] sm:$0xff]
      %v2889 = vld [vmem:[%s206 + $0x58] sm:$0xff]
      %v2890 = vld [vmem:[%s206 + $0x60] sm:$0xff]
      %v2891 = vld [vmem:[%s206 + $0x68] sm:$0xff]
      %v2892 = vld [vmem:[%s206 + $0x70] sm:$0xff]
      %v2893 = vld [vmem:[%s206 + $0x78] sm:$0xff]
      %v2894 = vld [vmem:[%s206 + $0x80] sm:$0xff]
      %v2895 = vld [vmem:[%s206 + $0x88] sm:$0xff]
      %v2896 = vld [vmem:[%s206 + $0x90] sm:$0xff]
      %v2897 = vld [vmem:[%s206 + $0x98] sm:$0xff]
      %v2898 = vld [vmem:[%s206 + $0xa0] sm:$0xff]
      %v2899 = vld [vmem:[%s206 + $0xa8] sm:$0xff]
      %v2900 = vld [vmem:[%s206 + $0xb0] sm:$0xff]
      %v2901 = vld [vmem:[%s206 + $0xb8] sm:$0xff]
      %v2902 = vld [vmem:[%s206 + $0xc0] sm:$0xff]
      %v2903 = vld [vmem:[%s206 + $0xc8] sm:$0xff]
      %v2904 = vld [vmem:[%s206 + $0xd0] sm:$0xff]
      %v2905 = vld [vmem:[%s206 + $0xd8] sm:$0xff]
      %v2906 = vld [vmem:[%s206 + $0xe0] sm:$0xff]
      %v2907 = vld [vmem:[%s206 + $0xe8] sm:$0xff]
      %v2908 = vld [vmem:[%s206 + $0xf0] sm:$0xff]
      %v2909 = vld [vmem:[%s206 + $0xf8] sm:$0xff]
      %v2910 = vrot.slane %v1864, 1
      %v2911 = vrot.slane %v2315, 1
      %v2912 = vsel %vm1386, %v2910, %v2911
      %v2914 = vsel %vm338, %v2912, 0
      %v2917 = vsel %vm342, %v2877, 0
      %2919 = vmatpush.bf16.msra.mxu0 0
      %2920 = vmatpush.bf16.msra.mxu0 0
      %2921 = vmatpush.bf16.msra.mxu0 0
      %2922 = vmatpush.bf16.msra.mxu0 0
      %2923 = vmatpush.bf16.msra.mxu0 0
      %2924 = vmatpush.bf16.msra.mxu0 0
      %2925 = vmatpush.bf16.msra.mxu0 0
      %2926 = vmatpush.bf16.msra.mxu0 %v2917
      %2927 = vmatmul.bf16.gmra.mxu0 %v2914
      %v2928 = vpop.f32.mrf.mxu0
      %v2929 = vadd.f32 0.0, %v2928
      %v2930 = vpop.f32.mrf.mxu0
      %v2931 = vadd.f32 0.0, %v2930
      %2932 = vdwg.mxu0
      %v2933 = vrot.slane %v1889, 1
      %v2934 = vrot.slane %v2349, 1
      %v2935 = vsel %vm1386, %v2933, %v2934
      %v2937 = vsel %vm338, %v2935, 0
      %2939 = vmatpush.bf16.msra.mxu0 0
      %2940 = vmatpush.bf16.msra.mxu0 0
      %2941 = vmatpush.bf16.msra.mxu0 0
      %2942 = vmatpush.bf16.msra.mxu0 0
      %2943 = vmatpush.bf16.msra.mxu0 0
      %2944 = vmatpush.bf16.msra.mxu0 0
      %2945 = vmatpush.bf16.msra.mxu0 0
      %2946 = vmatpush.bf16.msra.mxu0 %v2917
      %2947 = vmatmul.bf16.gmra.mxu0 %v2937
      %v2948 = vpop.f32.mrf.mxu0
      %v2949 = vadd.f32 0.0, %v2948
      %v2950 = vpop.f32.mrf.mxu0
      %v2951 = vadd.f32 0.0, %v2950
      %2952 = vdwg.mxu0
      %v2953 = vrot.slane %v1911, 1
      %v2954 = vrot.slane %v2380, 1
      %v2955 = vsel %vm1386, %v2953, %v2954
      %v2957 = vsel %vm338, %v2955, 0
      %2959 = vmatpush.bf16.msra.mxu0 0
      %2960 = vmatpush.bf16.msra.mxu0 0
      %2961 = vmatpush.bf16.msra.mxu0 0
      %2962 = vmatpush.bf16.msra.mxu0 0
      %2963 = vmatpush.bf16.msra.mxu0 0
      %2964 = vmatpush.bf16.msra.mxu0 0
      %2965 = vmatpush.bf16.msra.mxu0 0
      %2966 = vmatpush.bf16.msra.mxu0 %v2917
      %2967 = vmatmul.bf16.gmra.mxu0 %v2957
      %v2968 = vpop.f32.mrf.mxu0
      %v2969 = vadd.f32 0.0, %v2968
      %v2970 = vpop.f32.mrf.mxu0
      %v2971 = vadd.f32 0.0, %v2970
      %2972 = vdwg.mxu0
      %v2973 = vrot.slane %v1933, 1
      %v2974 = vrot.slane %v2411, 1
      %v2975 = vsel %vm1386, %v2973, %v2974
      %v2977 = vsel %vm338, %v2975, 0
      %2979 = vmatpush.bf16.msra.mxu0 0
      %2980 = vmatpush.bf16.msra.mxu0 0
      %2981 = vmatpush.bf16.msra.mxu0 0
      %2982 = vmatpush.bf16.msra.mxu0 0
      %2983 = vmatpush.bf16.msra.mxu0 0
      %2984 = vmatpush.bf16.msra.mxu0 0
      %2985 = vmatpush.bf16.msra.mxu0 0
      %2986 = vmatpush.bf16.msra.mxu0 %v2917
      %2987 = vmatmul.bf16.gmra.mxu0 %v2977
      %v2988 = vpop.f32.mrf.mxu0
      %v2989 = vadd.f32 0.0, %v2988
      %v2990 = vpop.f32.mrf.mxu0
      %v2991 = vadd.f32 0.0, %v2990
      %2992 = vdwg.mxu0
      %v2993 = vrot.slane %v1955, 1
      %v2994 = vrot.slane %v2442, 1
      %v2995 = vsel %vm1386, %v2993, %v2994
      %v2997 = vsel %vm338, %v2995, 0
      %2999 = vmatpush.bf16.msra.mxu0 0
      %3000 = vmatpush.bf16.msra.mxu0 0
      %3001 = vmatpush.bf16.msra.mxu0 0
      %3002 = vmatpush.bf16.msra.mxu0 0
      %3003 = vmatpush.bf16.msra.mxu0 0
      %3004 = vmatpush.bf16.msra.mxu0 0
      %3005 = vmatpush.bf16.msra.mxu0 0
      %3006 = vmatpush.bf16.msra.mxu0 %v2917
      %3007 = vmatmul.bf16.gmra.mxu0 %v2997
      %v3008 = vpop.f32.mrf.mxu0
      %v3009 = vadd.f32 0.0, %v3008
      %v3010 = vpop.f32.mrf.mxu0
      %v3011 = vadd.f32 0.0, %v3010
      %3012 = vdwg.mxu0
      %v3013 = vrot.slane %v1977, 1
      %v3014 = vrot.slane %v2473, 1
      %v3015 = vsel %vm1386, %v3013, %v3014
      %v3017 = vsel %vm338, %v3015, 0
      %3019 = vmatpush.bf16.msra.mxu0 0
      %3020 = vmatpush.bf16.msra.mxu0 0
      %3021 = vmatpush.bf16.msra.mxu0 0
      %3022 = vmatpush.bf16.msra.mxu0 0
      %3023 = vmatpush.bf16.msra.mxu0 0
      %3024 = vmatpush.bf16.msra.mxu0 0
      %3025 = vmatpush.bf16.msra.mxu0 0
      %3026 = vmatpush.bf16.msra.mxu0 %v2917
      %3027 = vmatmul.bf16.gmra.mxu0 %v3017
      %v3028 = vpop.f32.mrf.mxu0
      %v3029 = vadd.f32 0.0, %v3028
      %v3030 = vpop.f32.mrf.mxu0
      %v3031 = vadd.f32 0.0, %v3030
      %3032 = vdwg.mxu0
      %v3033 = vrot.slane %v1999, 1
      %v3034 = vrot.slane %v2504, 1
      %v3035 = vsel %vm1386, %v3033, %v3034
      %v3037 = vsel %vm338, %v3035, 0
      %3039 = vmatpush.bf16.msra.mxu0 0
      %3040 = vmatpush.bf16.msra.mxu0 0
      %3041 = vmatpush.bf16.msra.mxu0 0
      %3042 = vmatpush.bf16.msra.mxu0 0
      %3043 = vmatpush.bf16.msra.mxu0 0
      %3044 = vmatpush.bf16.msra.mxu0 0
      %3045 = vmatpush.bf16.msra.mxu0 0
      %3046 = vmatpush.bf16.msra.mxu0 %v2917
      %3047 = vmatmul.bf16.gmra.mxu0 %v3037
      %v3048 = vpop.f32.mrf.mxu0
      %v3049 = vadd.f32 0.0, %v3048
      %v3050 = vpop.f32.mrf.mxu0
      %v3051 = vadd.f32 0.0, %v3050
      %3052 = vdwg.mxu0
      %v3053 = vrot.slane %v2021, 1
      %v3054 = vrot.slane %v2535, 1
      %v3055 = vsel %vm1386, %v3053, %v3054
      %v3057 = vsel %vm338, %v3055, 0
      %3059 = vmatpush.bf16.msra.mxu0 0
      %3060 = vmatpush.bf16.msra.mxu0 0
      %3061 = vmatpush.bf16.msra.mxu0 0
      %3062 = vmatpush.bf16.msra.mxu0 0
      %3063 = vmatpush.bf16.msra.mxu0 0
      %3064 = vmatpush.bf16.msra.mxu0 0
      %3065 = vmatpush.bf16.msra.mxu0 0
      %3066 = vmatpush.bf16.msra.mxu0 %v2917
      %3067 = vmatmul.bf16.gmra.mxu0 %v3057
      %v3068 = vpop.f32.mrf.mxu0
      %v3069 = vadd.f32 0.0, %v3068
      %v3070 = vpop.f32.mrf.mxu0
      %v3071 = vadd.f32 0.0, %v3070
      %3072 = vdwg.mxu0
      %v3073 = vrot.slane %v2043, 1
      %v3074 = vrot.slane %v2566, 1
      %v3075 = vsel %vm1386, %v3073, %v3074
      %v3077 = vsel %vm338, %v3075, 0
      %3079 = vmatpush.bf16.msra.mxu0 0
      %3080 = vmatpush.bf16.msra.mxu0 0
      %3081 = vmatpush.bf16.msra.mxu0 0
      %3082 = vmatpush.bf16.msra.mxu0 0
      %3083 = vmatpush.bf16.msra.mxu0 0
      %3084 = vmatpush.bf16.msra.mxu0 0
      %3085 = vmatpush.bf16.msra.mxu0 0
      %3086 = vmatpush.bf16.msra.mxu0 %v2917
      %3087 = vmatmul.bf16.gmra.mxu0 %v3077
      %v3088 = vpop.f32.mrf.mxu0
      %v3089 = vadd.f32 0.0, %v3088
      %v3090 = vpop.f32.mrf.mxu0
      %v3091 = vadd.f32 0.0, %v3090
      %3092 = vdwg.mxu0
      %v3093 = vrot.slane %v2065, 1
      %v3094 = vrot.slane %v2597, 1
      %v3095 = vsel %vm1386, %v3093, %v3094
      %v3097 = vsel %vm338, %v3095, 0
      %3099 = vmatpush.bf16.msra.mxu0 0
      %3100 = vmatpush.bf16.msra.mxu0 0
      %3101 = vmatpush.bf16.msra.mxu0 0
      %3102 = vmatpush.bf16.msra.mxu0 0
      %3103 = vmatpush.bf16.msra.mxu0 0
      %3104 = vmatpush.bf16.msra.mxu0 0
      %3105 = vmatpush.bf16.msra.mxu0 0
      %3106 = vmatpush.bf16.msra.mxu0 %v2917
      %3107 = vmatmul.bf16.gmra.mxu0 %v3097
      %v3108 = vpop.f32.mrf.mxu0
      %v3109 = vadd.f32 0.0, %v3108
      %v3110 = vpop.f32.mrf.mxu0
      %v3111 = vadd.f32 0.0, %v3110
      %3112 = vdwg.mxu0
      %v3113 = vrot.slane %v2087, 1
      %v3114 = vrot.slane %v2628, 1
      %v3115 = vsel %vm1386, %v3113, %v3114
      %v3117 = vsel %vm338, %v3115, 0
      %3119 = vmatpush.bf16.msra.mxu0 0
      %3120 = vmatpush.bf16.msra.mxu0 0
      %3121 = vmatpush.bf16.msra.mxu0 0
      %3122 = vmatpush.bf16.msra.mxu0 0
      %3123 = vmatpush.bf16.msra.mxu0 0
      %3124 = vmatpush.bf16.msra.mxu0 0
      %3125 = vmatpush.bf16.msra.mxu0 0
      %3126 = vmatpush.bf16.msra.mxu0 %v2917
      %3127 = vmatmul.bf16.gmra.mxu0 %v3117
      %v3128 = vpop.f32.mrf.mxu0
      %v3129 = vadd.f32 0.0, %v3128
      %v3130 = vpop.f32.mrf.mxu0
      %v3131 = vadd.f32 0.0, %v3130
      %3132 = vdwg.mxu0
      %v3133 = vrot.slane %v2109, 1
      %v3134 = vrot.slane %v2659, 1
      %v3135 = vsel %vm1386, %v3133, %v3134
      %v3137 = vsel %vm338, %v3135, 0
      %3139 = vmatpush.bf16.msra.mxu0 0
      %3140 = vmatpush.bf16.msra.mxu0 0
      %3141 = vmatpush.bf16.msra.mxu0 0
      %3142 = vmatpush.bf16.msra.mxu0 0
      %3143 = vmatpush.bf16.msra.mxu0 0
      %3144 = vmatpush.bf16.msra.mxu0 0
      %3145 = vmatpush.bf16.msra.mxu0 0
      %3146 = vmatpush.bf16.msra.mxu0 %v2917
      %3147 = vmatmul.bf16.gmra.mxu0 %v3137
      %v3148 = vpop.f32.mrf.mxu0
      %v3149 = vadd.f32 0.0, %v3148
      %v3150 = vpop.f32.mrf.mxu0
      %v3151 = vadd.f32 0.0, %v3150
      %3152 = vdwg.mxu0
      %v3153 = vrot.slane %v2131, 1
      %v3154 = vrot.slane %v2690, 1
      %v3155 = vsel %vm1386, %v3153, %v3154
      %v3157 = vsel %vm338, %v3155, 0
      %3159 = vmatpush.bf16.msra.mxu0 0
      %3160 = vmatpush.bf16.msra.mxu0 0
      %3161 = vmatpush.bf16.msra.mxu0 0
      %3162 = vmatpush.bf16.msra.mxu0 0
      %3163 = vmatpush.bf16.msra.mxu0 0
      %3164 = vmatpush.bf16.msra.mxu0 0
      %3165 = vmatpush.bf16.msra.mxu0 0
      %3166 = vmatpush.bf16.msra.mxu0 %v2917
      %3167 = vmatmul.bf16.gmra.mxu0 %v3157
      %v3168 = vpop.f32.mrf.mxu0
      %v3169 = vadd.f32 0.0, %v3168
      %v3170 = vpop.f32.mrf.mxu0
      %v3171 = vadd.f32 0.0, %v3170
      %3172 = vdwg.mxu0
      %v3173 = vrot.slane %v2153, 1
      %v3174 = vrot.slane %v2721, 1
      %v3175 = vsel %vm1386, %v3173, %v3174
      %v3177 = vsel %vm338, %v3175, 0
      %3179 = vmatpush.bf16.msra.mxu0 0
      %3180 = vmatpush.bf16.msra.mxu0 0
      %3181 = vmatpush.bf16.msra.mxu0 0
      %3182 = vmatpush.bf16.msra.mxu0 0
      %3183 = vmatpush.bf16.msra.mxu0 0
      %3184 = vmatpush.bf16.msra.mxu0 0
      %3185 = vmatpush.bf16.msra.mxu0 0
      %3186 = vmatpush.bf16.msra.mxu0 %v2917
      %3187 = vmatmul.bf16.gmra.mxu0 %v3177
      %v3188 = vpop.f32.mrf.mxu0
      %v3189 = vadd.f32 0.0, %v3188
      %v3190 = vpop.f32.mrf.mxu0
      %v3191 = vadd.f32 0.0, %v3190
      %3192 = vdwg.mxu0
      %v3193 = vrot.slane %v2175, 1
      %v3194 = vrot.slane %v2752, 1
      %v3195 = vsel %vm1386, %v3193, %v3194
      %v3197 = vsel %vm338, %v3195, 0
      %3199 = vmatpush.bf16.msra.mxu0 0
      %3200 = vmatpush.bf16.msra.mxu0 0
      %3201 = vmatpush.bf16.msra.mxu0 0
      %3202 = vmatpush.bf16.msra.mxu0 0
      %3203 = vmatpush.bf16.msra.mxu0 0
      %3204 = vmatpush.bf16.msra.mxu0 0
      %3205 = vmatpush.bf16.msra.mxu0 0
      %3206 = vmatpush.bf16.msra.mxu0 %v2917
      %3207 = vmatmul.bf16.gmra.mxu0 %v3197
      %v3208 = vpop.f32.mrf.mxu0
      %v3209 = vadd.f32 0.0, %v3208
      %v3210 = vpop.f32.mrf.mxu0
      %v3211 = vadd.f32 0.0, %v3210
      %3212 = vdwg.mxu0
      %v3213 = vrot.slane %v2197, 1
      %v3214 = vrot.slane %v2783, 1
      %v3215 = vsel %vm1386, %v3213, %v3214
      %v3217 = vsel %vm338, %v3215, 0
      %3219 = vmatpush.bf16.msra.mxu0 0
      %3220 = vmatpush.bf16.msra.mxu0 0
      %3221 = vmatpush.bf16.msra.mxu0 0
      %3222 = vmatpush.bf16.msra.mxu0 0
      %3223 = vmatpush.bf16.msra.mxu0 0
      %3224 = vmatpush.bf16.msra.mxu0 0
      %3225 = vmatpush.bf16.msra.mxu0 0
      %3226 = vmatpush.bf16.msra.mxu0 %v2917
      %3227 = vmatmul.bf16.gmra.mxu0 %v3217
      %v3228 = vpop.f32.mrf.mxu0
      %v3229 = vadd.f32 0.0, %v3228
      %v3230 = vpop.f32.mrf.mxu0
      %v3231 = vadd.f32 0.0, %v3230
      %3232 = vdwg.mxu0
      %v3233 = vadd.f32 %v2878, %v2929
      %v3234 = vadd.f32 %v2879, %v2931
      %v3235 = vadd.f32 %v2880, %v2949
      %v3236 = vadd.f32 %v2881, %v2951
      %v3237 = vadd.f32 %v2882, %v2969
      %v3238 = vadd.f32 %v2883, %v2971
      %v3239 = vadd.f32 %v2884, %v2989
      %v3240 = vadd.f32 %v2885, %v2991
      %v3241 = vadd.f32 %v2886, %v3009
      %v3242 = vadd.f32 %v2887, %v3011
      %v3243 = vadd.f32 %v2888, %v3029
      %v3244 = vadd.f32 %v2889, %v3031
      %v3245 = vadd.f32 %v2890, %v3049
      %v3246 = vadd.f32 %v2891, %v3051
      %v3247 = vadd.f32 %v2892, %v3069
      %v3248 = vadd.f32 %v2893, %v3071
      %v3249 = vadd.f32 %v2894, %v3089
      %v3250 = vadd.f32 %v2895, %v3091
      %v3251 = vadd.f32 %v2896, %v3109
      %v3252 = vadd.f32 %v2897, %v3111
      %v3253 = vadd.f32 %v2898, %v3129
      %v3254 = vadd.f32 %v2899, %v3131
      %v3255 = vadd.f32 %v2900, %v3149
      %v3256 = vadd.f32 %v2901, %v3151
      %v3257 = vadd.f32 %v2902, %v3169
      %v3258 = vadd.f32 %v2903, %v3171
      %v3259 = vadd.f32 %v2904, %v3189
      %v3260 = vadd.f32 %v2905, %v3191
      %v3261 = vadd.f32 %v2906, %v3209
      %v3262 = vadd.f32 %v2907, %v3211
      %v3263 = vadd.f32 %v2908, %v3229
      %v3264 = vadd.f32 %v2909, %v3231
      %3265 = vst [vmem:[%s206] sm:$0xff] %v3233
      %3266 = vst [vmem:[%s206 + $0x8] sm:$0xff] %v3234
      %3267 = vst [vmem:[%s206 + $0x10] sm:$0xff] %v3235
      %3268 = vst [vmem:[%s206 + $0x18] sm:$0xff] %v3236
      %3269 = vst [vmem:[%s206 + $0x20] sm:$0xff] %v3237
      %3270 = vst [vmem:[%s206 + $0x28] sm:$0xff] %v3238
      %3271 = vst [vmem:[%s206 + $0x30] sm:$0xff] %v3239
      %3272 = vst [vmem:[%s206 + $0x38] sm:$0xff] %v3240
      %3273 = vst [vmem:[%s206 + $0x40] sm:$0xff] %v3241
      %3274 = vst [vmem:[%s206 + $0x48] sm:$0xff] %v3242
      %3275 = vst [vmem:[%s206 + $0x50] sm:$0xff] %v3243
      %3276 = vst [vmem:[%s206 + $0x58] sm:$0xff] %v3244
      %3277 = vst [vmem:[%s206 + $0x60] sm:$0xff] %v3245
      %3278 = vst [vmem:[%s206 + $0x68] sm:$0xff] %v3246
      %3279 = vst [vmem:[%s206 + $0x70] sm:$0xff] %v3247
      %3280 = vst [vmem:[%s206 + $0x78] sm:$0xff] %v3248
      %3281 = vst [vmem:[%s206 + $0x80] sm:$0xff] %v3249
      %3282 = vst [vmem:[%s206 + $0x88] sm:$0xff] %v3250
      %3283 = vst [vmem:[%s206 + $0x90] sm:$0xff] %v3251
      %3284 = vst [vmem:[%s206 + $0x98] sm:$0xff] %v3252
      %3285 = vst [vmem:[%s206 + $0xa0] sm:$0xff] %v3253
      %3286 = vst [vmem:[%s206 + $0xa8] sm:$0xff] %v3254
      %3287 = vst [vmem:[%s206 + $0xb0] sm:$0xff] %v3255
      %3288 = vst [vmem:[%s206 + $0xb8] sm:$0xff] %v3256
      %3289 = vst [vmem:[%s206 + $0xc0] sm:$0xff] %v3257
      %3290 = vst [vmem:[%s206 + $0xc8] sm:$0xff] %v3258
      %3291 = vst [vmem:[%s206 + $0xd0] sm:$0xff] %v3259
      %3292 = vst [vmem:[%s206 + $0xd8] sm:$0xff] %v3260
      %3293 = vst [vmem:[%s206 + $0xe0] sm:$0xff] %v3261
      %3294 = vst [vmem:[%s206 + $0xe8] sm:$0xff] %v3262
      %3295 = vst [vmem:[%s206 + $0xf0] sm:$0xff] %v3263
      %3296 = vst [vmem:[%s206 + $0xf8] sm:$0xff] %v3264
      %s3297 = sadd.s32 %s216, 2
      %s3298 = smul.u32 %s3297, 3
      %s3299 = smul.addr %s3298, 4
      %s3300 = scalar_lea.vmem %s196, %s3299
      %v3301 = vld [vmem:[%s3300] sm:$0xf]
      %v3302 = vld [vmem:[%s3300 + $0x4] sm:$0xf]
      %v3303 = vld [vmem:[%s3300 + $0x8] sm:$0x1]
      %v3304 = vld [vmem:[%s3300 + $0xc] sm:$0xf]
      %v3305 = vld [vmem:[%s3300 + $0x10] sm:$0xf]
      %v3306 = vld [vmem:[%s3300 + $0x14] sm:$0x1]
      %v3307 = vld [vmem:[%s3300 + $0x18] sm:$0xf]
      %v3308 = vld [vmem:[%s3300 + $0x1c] sm:$0xf]
      %v3309 = vld [vmem:[%s3300 + $0x20] sm:$0x1]
      %v3310 = vld [vmem:[%s3300 + $0x24] sm:$0xf]
      %v3311 = vld [vmem:[%s3300 + $0x28] sm:$0xf]
      %v3312 = vld [vmem:[%s3300 + $0x2c] sm:$0x1]
      %v3313 = vld [vmem:[%s3300 + $0x30] sm:$0xf]
      %v3314 = vld [vmem:[%s3300 + $0x34] sm:$0xf]
      %v3315 = vld [vmem:[%s3300 + $0x38] sm:$0x1]
      %v3316 = vld [vmem:[%s3300 + $0x3c] sm:$0xf]
      %v3317 = vld [vmem:[%s3300 + $0x40] sm:$0xf]
      %v3318 = vld [vmem:[%s3300 + $0x44] sm:$0x1]
      %v3319 = vld [vmem:[%s3300 + $0x48] sm:$0xf]
      %v3320 = vld [vmem:[%s3300 + $0x4c] sm:$0xf]
      %v3321 = vld [vmem:[%s3300 + $0x50] sm:$0x1]
      %v3322 = vld [vmem:[%s3300 + $0x54] sm:$0xf]
      %v3323 = vld [vmem:[%s3300 + $0x58] sm:$0xf]
      %v3324 = vld [vmem:[%s3300 + $0x5c] sm:$0x1]
      %v3325 = vld [vmem:[%s3300 + $0x60] sm:$0xf]
      %v3326 = vld [vmem:[%s3300 + $0x64] sm:$0xf]
      %v3327 = vld [vmem:[%s3300 + $0x68] sm:$0x1]
      %v3328 = vld [vmem:[%s3300 + $0x6c] sm:$0xf]
      %v3329 = vld [vmem:[%s3300 + $0x70] sm:$0xf]
      %v3330 = vld [vmem:[%s3300 + $0x74] sm:$0x1]
      %v3331 = vld [vmem:[%s3300 + $0x78] sm:$0xf]
      %v3332 = vld [vmem:[%s3300 + $0x7c] sm:$0xf]
      %v3333 = vld [vmem:[%s3300 + $0x80] sm:$0x1]
      %v3334 = vld [vmem:[%s3300 + $0x84] sm:$0xf]
      %v3335 = vld [vmem:[%s3300 + $0x88] sm:$0xf]
      %v3336 = vld [vmem:[%s3300 + $0x8c] sm:$0x1]
      %v3337 = vld [vmem:[%s3300 + $0x90] sm:$0xf]
      %v3338 = vld [vmem:[%s3300 + $0x94] sm:$0xf]
      %v3339 = vld [vmem:[%s3300 + $0x98] sm:$0x1]
      %v3340 = vld [vmem:[%s3300 + $0x9c] sm:$0xf]
      %v3341 = vld [vmem:[%s3300 + $0xa0] sm:$0xf]
      %v3342 = vld [vmem:[%s3300 + $0xa4] sm:$0x1]
      %v3343 = vld [vmem:[%s3300 + $0xa8] sm:$0xf]
      %v3344 = vld [vmem:[%s3300 + $0xac] sm:$0xf]
      %v3345 = vld [vmem:[%s3300 + $0xb0] sm:$0x1]
      %v3346 = vld [vmem:[%s3300 + $0xb4] sm:$0xf]
      %v3347 = vld [vmem:[%s3300 + $0xb8] sm:$0xf]
      %v3348 = vld [vmem:[%s3300 + $0xbc] sm:$0x1]
      %s3349 = scalar_lea.vmem %s1, 12
      %v3350 = vld [vmem:[%s3349] sm:$0x3]
      %v3351 = vld [vmem:[%s206] sm:$0xff]
      %v3352 = vld [vmem:[%s206 + $0x8] sm:$0xff]
      %v3353 = vld [vmem:[%s206 + $0x10] sm:$0xff]
      %v3354 = vld [vmem:[%s206 + $0x18] sm:$0xff]
      %v3355 = vld [vmem:[%s206 + $0x20] sm:$0xff]
      %v3356 = vld [vmem:[%s206 + $0x28] sm:$0xff]
      %v3357 = vld [vmem:[%s206 + $0x30] sm:$0xff]
      %v3358 = vld [vmem:[%s206 + $0x38] sm:$0xff]
      %v3359 = vld [vmem:[%s206 + $0x40] sm:$0xff]
      %v3360 = vld [vmem:[%s206 + $0x48] sm:$0xff]
      %v3361 = vld [vmem:[%s206 + $0x50] sm:$0xff]
      %v3362 = vld [vmem:[%s206 + $0x58] sm:$0xff]
      %v3363 = vld [vmem:[%s206 + $0x60] sm:$0xff]
      %v3364 = vld [vmem:[%s206 + $0x68] sm:$0xff]
      %v3365 = vld [vmem:[%s206 + $0x70] sm:$0xff]
      %v3366 = vld [vmem:[%s206 + $0x78] sm:$0xff]
      %v3367 = vld [vmem:[%s206 + $0x80] sm:$0xff]
      %v3368 = vld [vmem:[%s206 + $0x88] sm:$0xff]
      %v3369 = vld [vmem:[%s206 + $0x90] sm:$0xff]
      %v3370 = vld [vmem:[%s206 + $0x98] sm:$0xff]
      %v3371 = vld [vmem:[%s206 + $0xa0] sm:$0xff]
      %v3372 = vld [vmem:[%s206 + $0xa8] sm:$0xff]
      %v3373 = vld [vmem:[%s206 + $0xb0] sm:$0xff]
      %v3374 = vld [vmem:[%s206 + $0xb8] sm:$0xff]
      %v3375 = vld [vmem:[%s206 + $0xc0] sm:$0xff]
      %v3376 = vld [vmem:[%s206 + $0xc8] sm:$0xff]
      %v3377 = vld [vmem:[%s206 + $0xd0] sm:$0xff]
      %v3378 = vld [vmem:[%s206 + $0xd8] sm:$0xff]
      %v3379 = vld [vmem:[%s206 + $0xe0] sm:$0xff]
      %v3380 = vld [vmem:[%s206 + $0xe8] sm:$0xff]
      %v3381 = vld [vmem:[%s206 + $0xf0] sm:$0xff]
      %v3382 = vld [vmem:[%s206 + $0xf8] sm:$0xff]
      %v3385 = vunpack.c.l.b16 %v3301
      %v3386 = vunpack.c.l.b16 %v3302
      %v3387 = vpack.c.b16 %v3386, %v3385
      %v3389 = vsel %vm338, %v3387, 0
      %v3392 = vsel %vm342, %v3350, 0
      %3394 = vmatpush.bf16.msra.mxu0 0
      %3395 = vmatpush.bf16.msra.mxu0 0
      %3396 = vmatpush.bf16.msra.mxu0 0
      %3397 = vmatpush.bf16.msra.mxu0 0
      %3398 = vmatpush.bf16.msra.mxu0 0
      %3399 = vmatpush.bf16.msra.mxu0 0
      %3400 = vmatpush.bf16.msra.mxu0 0
      %3401 = vmatpush.bf16.msra.mxu0 %v3392
      %3402 = vmatmul.bf16.gmra.mxu0 %v3389
      %v3403 = vpop.f32.mrf.mxu0
      %v3404 = vadd.f32 0.0, %v3403
      %v3405 = vpop.f32.mrf.mxu0
      %v3406 = vadd.f32 0.0, %v3405
      %3407 = vdwg.mxu0
      %v3410 = vunpack.c.l.b16 %v3304
      %v3411 = vunpack.c.l.b16 %v3305
      %v3412 = vpack.c.b16 %v3411, %v3410
      %v3414 = vsel %vm338, %v3412, 0
      %3416 = vmatpush.bf16.msra.mxu0 0
      %3417 = vmatpush.bf16.msra.mxu0 0
      %3418 = vmatpush.bf16.msra.mxu0 0
      %3419 = vmatpush.bf16.msra.mxu0 0
      %3420 = vmatpush.bf16.msra.mxu0 0
      %3421 = vmatpush.bf16.msra.mxu0 0
      %3422 = vmatpush.bf16.msra.mxu0 0
      %3423 = vmatpush.bf16.msra.mxu0 %v3392
      %3424 = vmatmul.bf16.gmra.mxu0 %v3414
      %v3425 = vpop.f32.mrf.mxu0
      %v3426 = vadd.f32 0.0, %v3425
      %v3427 = vpop.f32.mrf.mxu0
      %v3428 = vadd.f32 0.0, %v3427
      %3429 = vdwg.mxu0
      %v3432 = vunpack.c.l.b16 %v3307
      %v3433 = vunpack.c.l.b16 %v3308
      %v3434 = vpack.c.b16 %v3433, %v3432
      %v3436 = vsel %vm338, %v3434, 0
      %3438 = vmatpush.bf16.msra.mxu0 0
      %3439 = vmatpush.bf16.msra.mxu0 0
      %3440 = vmatpush.bf16.msra.mxu0 0
      %3441 = vmatpush.bf16.msra.mxu0 0
      %3442 = vmatpush.bf16.msra.mxu0 0
      %3443 = vmatpush.bf16.msra.mxu0 0
      %3444 = vmatpush.bf16.msra.mxu0 0
      %3445 = vmatpush.bf16.msra.mxu0 %v3392
      %3446 = vmatmul.bf16.gmra.mxu0 %v3436
      %v3447 = vpop.f32.mrf.mxu0
      %v3448 = vadd.f32 0.0, %v3447
      %v3449 = vpop.f32.mrf.mxu0
      %v3450 = vadd.f32 0.0, %v3449
      %3451 = vdwg.mxu0
      %v3454 = vunpack.c.l.b16 %v3310
      %v3455 = vunpack.c.l.b16 %v3311
      %v3456 = vpack.c.b16 %v3455, %v3454
      %v3458 = vsel %vm338, %v3456, 0
      %3460 = vmatpush.bf16.msra.mxu0 0
      %3461 = vmatpush.bf16.msra.mxu0 0
      %3462 = vmatpush.bf16.msra.mxu0 0
      %3463 = vmatpush.bf16.msra.mxu0 0
      %3464 = vmatpush.bf16.msra.mxu0 0
      %3465 = vmatpush.bf16.msra.mxu0 0
      %3466 = vmatpush.bf16.msra.mxu0 0
      %3467 = vmatpush.bf16.msra.mxu0 %v3392
      %3468 = vmatmul.bf16.gmra.mxu0 %v3458
      %v3469 = vpop.f32.mrf.mxu0
      %v3470 = vadd.f32 0.0, %v3469
      %v3471 = vpop.f32.mrf.mxu0
      %v3472 = vadd.f32 0.0, %v3471
      %3473 = vdwg.mxu0
      %v3476 = vunpack.c.l.b16 %v3313
      %v3477 = vunpack.c.l.b16 %v3314
      %v3478 = vpack.c.b16 %v3477, %v3476
      %v3480 = vsel %vm338, %v3478, 0
      %3482 = vmatpush.bf16.msra.mxu0 0
      %3483 = vmatpush.bf16.msra.mxu0 0
      %3484 = vmatpush.bf16.msra.mxu0 0
      %3485 = vmatpush.bf16.msra.mxu0 0
      %3486 = vmatpush.bf16.msra.mxu0 0
      %3487 = vmatpush.bf16.msra.mxu0 0
      %3488 = vmatpush.bf16.msra.mxu0 0
      %3489 = vmatpush.bf16.msra.mxu0 %v3392
      %3490 = vmatmul.bf16.gmra.mxu0 %v3480
      %v3491 = vpop.f32.mrf.mxu0
      %v3492 = vadd.f32 0.0, %v3491
      %v3493 = vpop.f32.mrf.mxu0
      %v3494 = vadd.f32 0.0, %v3493
      %3495 = vdwg.mxu0
      %v3498 = vunpack.c.l.b16 %v3316
      %v3499 = vunpack.c.l.b16 %v3317
      %v3500 = vpack.c.b16 %v3499, %v3498
      %v3502 = vsel %vm338, %v3500, 0
      %3504 = vmatpush.bf16.msra.mxu0 0
      %3505 = vmatpush.bf16.msra.mxu0 0
      %3506 = vmatpush.bf16.msra.mxu0 0
      %3507 = vmatpush.bf16.msra.mxu0 0
      %3508 = vmatpush.bf16.msra.mxu0 0
      %3509 = vmatpush.bf16.msra.mxu0 0
      %3510 = vmatpush.bf16.msra.mxu0 0
      %3511 = vmatpush.bf16.msra.mxu0 %v3392
      %3512 = vmatmul.bf16.gmra.mxu0 %v3502
      %v3513 = vpop.f32.mrf.mxu0
      %v3514 = vadd.f32 0.0, %v3513
      %v3515 = vpop.f32.mrf.mxu0
      %v3516 = vadd.f32 0.0, %v3515
      %3517 = vdwg.mxu0
      %v3520 = vunpack.c.l.b16 %v3319
      %v3521 = vunpack.c.l.b16 %v3320
      %v3522 = vpack.c.b16 %v3521, %v3520
      %v3524 = vsel %vm338, %v3522, 0
      %3526 = vmatpush.bf16.msra.mxu0 0
      %3527 = vmatpush.bf16.msra.mxu0 0
      %3528 = vmatpush.bf16.msra.mxu0 0
      %3529 = vmatpush.bf16.msra.mxu0 0
      %3530 = vmatpush.bf16.msra.mxu0 0
      %3531 = vmatpush.bf16.msra.mxu0 0
      %3532 = vmatpush.bf16.msra.mxu0 0
      %3533 = vmatpush.bf16.msra.mxu0 %v3392
      %3534 = vmatmul.bf16.gmra.mxu0 %v3524
      %v3535 = vpop.f32.mrf.mxu0
      %v3536 = vadd.f32 0.0, %v3535
      %v3537 = vpop.f32.mrf.mxu0
      %v3538 = vadd.f32 0.0, %v3537
      %3539 = vdwg.mxu0
      %v3542 = vunpack.c.l.b16 %v3322
      %v3543 = vunpack.c.l.b16 %v3323
      %v3544 = vpack.c.b16 %v3543, %v3542
      %v3546 = vsel %vm338, %v3544, 0
      %3548 = vmatpush.bf16.msra.mxu0 0
      %3549 = vmatpush.bf16.msra.mxu0 0
      %3550 = vmatpush.bf16.msra.mxu0 0
      %3551 = vmatpush.bf16.msra.mxu0 0
      %3552 = vmatpush.bf16.msra.mxu0 0
      %3553 = vmatpush.bf16.msra.mxu0 0
      %3554 = vmatpush.bf16.msra.mxu0 0
      %3555 = vmatpush.bf16.msra.mxu0 %v3392
      %3556 = vmatmul.bf16.gmra.mxu0 %v3546
      %v3557 = vpop.f32.mrf.mxu0
      %v3558 = vadd.f32 0.0, %v3557
      %v3559 = vpop.f32.mrf.mxu0
      %v3560 = vadd.f32 0.0, %v3559
      %3561 = vdwg.mxu0
      %v3564 = vunpack.c.l.b16 %v3325
      %v3565 = vunpack.c.l.b16 %v3326
      %v3566 = vpack.c.b16 %v3565, %v3564
      %v3568 = vsel %vm338, %v3566, 0
      %3570 = vmatpush.bf16.msra.mxu0 0
      %3571 = vmatpush.bf16.msra.mxu0 0
      %3572 = vmatpush.bf16.msra.mxu0 0
      %3573 = vmatpush.bf16.msra.mxu0 0
      %3574 = vmatpush.bf16.msra.mxu0 0
      %3575 = vmatpush.bf16.msra.mxu0 0
      %3576 = vmatpush.bf16.msra.mxu0 0
      %3577 = vmatpush.bf16.msra.mxu0 %v3392
      %3578 = vmatmul.bf16.gmra.mxu0 %v3568
      %v3579 = vpop.f32.mrf.mxu0
      %v3580 = vadd.f32 0.0, %v3579
      %v3581 = vpop.f32.mrf.mxu0
      %v3582 = vadd.f32 0.0, %v3581
      %3583 = vdwg.mxu0
      %v3586 = vunpack.c.l.b16 %v3328
      %v3587 = vunpack.c.l.b16 %v3329
      %v3588 = vpack.c.b16 %v3587, %v3586
      %v3590 = vsel %vm338, %v3588, 0
      %3592 = vmatpush.bf16.msra.mxu0 0
      %3593 = vmatpush.bf16.msra.mxu0 0
      %3594 = vmatpush.bf16.msra.mxu0 0
      %3595 = vmatpush.bf16.msra.mxu0 0
      %3596 = vmatpush.bf16.msra.mxu0 0
      %3597 = vmatpush.bf16.msra.mxu0 0
      %3598 = vmatpush.bf16.msra.mxu0 0
      %3599 = vmatpush.bf16.msra.mxu0 %v3392
      %3600 = vmatmul.bf16.gmra.mxu0 %v3590
      %v3601 = vpop.f32.mrf.mxu0
      %v3602 = vadd.f32 0.0, %v3601
      %v3603 = vpop.f32.mrf.mxu0
      %v3604 = vadd.f32 0.0, %v3603
      %3605 = vdwg.mxu0
      %v3608 = vunpack.c.l.b16 %v3331
      %v3609 = vunpack.c.l.b16 %v3332
      %v3610 = vpack.c.b16 %v3609, %v3608
      %v3612 = vsel %vm338, %v3610, 0
      %3614 = vmatpush.bf16.msra.mxu0 0
      %3615 = vmatpush.bf16.msra.mxu0 0
      %3616 = vmatpush.bf16.msra.mxu0 0
      %3617 = vmatpush.bf16.msra.mxu0 0
      %3618 = vmatpush.bf16.msra.mxu0 0
      %3619 = vmatpush.bf16.msra.mxu0 0
      %3620 = vmatpush.bf16.msra.mxu0 0
      %3621 = vmatpush.bf16.msra.mxu0 %v3392
      %3622 = vmatmul.bf16.gmra.mxu0 %v3612
      %v3623 = vpop.f32.mrf.mxu0
      %v3624 = vadd.f32 0.0, %v3623
      %v3625 = vpop.f32.mrf.mxu0
      %v3626 = vadd.f32 0.0, %v3625
      %3627 = vdwg.mxu0
      %v3630 = vunpack.c.l.b16 %v3334
      %v3631 = vunpack.c.l.b16 %v3335
      %v3632 = vpack.c.b16 %v3631, %v3630
      %v3634 = vsel %vm338, %v3632, 0
      %3636 = vmatpush.bf16.msra.mxu0 0
      %3637 = vmatpush.bf16.msra.mxu0 0
      %3638 = vmatpush.bf16.msra.mxu0 0
      %3639 = vmatpush.bf16.msra.mxu0 0
      %3640 = vmatpush.bf16.msra.mxu0 0
      %3641 = vmatpush.bf16.msra.mxu0 0
      %3642 = vmatpush.bf16.msra.mxu0 0
      %3643 = vmatpush.bf16.msra.mxu0 %v3392
      %3644 = vmatmul.bf16.gmra.mxu0 %v3634
      %v3645 = vpop.f32.mrf.mxu0
      %v3646 = vadd.f32 0.0, %v3645
      %v3647 = vpop.f32.mrf.mxu0
      %v3648 = vadd.f32 0.0, %v3647
      %3649 = vdwg.mxu0
      %v3652 = vunpack.c.l.b16 %v3337
      %v3653 = vunpack.c.l.b16 %v3338
      %v3654 = vpack.c.b16 %v3653, %v3652
      %v3656 = vsel %vm338, %v3654, 0
      %3658 = vmatpush.bf16.msra.mxu0 0
      %3659 = vmatpush.bf16.msra.mxu0 0
      %3660 = vmatpush.bf16.msra.mxu0 0
      %3661 = vmatpush.bf16.msra.mxu0 0
      %3662 = vmatpush.bf16.msra.mxu0 0
      %3663 = vmatpush.bf16.msra.mxu0 0
      %3664 = vmatpush.bf16.msra.mxu0 0
      %3665 = vmatpush.bf16.msra.mxu0 %v3392
      %3666 = vmatmul.bf16.gmra.mxu0 %v3656
      %v3667 = vpop.f32.mrf.mxu0
      %v3668 = vadd.f32 0.0, %v3667
      %v3669 = vpop.f32.mrf.mxu0
      %v3670 = vadd.f32 0.0, %v3669
      %3671 = vdwg.mxu0
      %v3674 = vunpack.c.l.b16 %v3340
      %v3675 = vunpack.c.l.b16 %v3341
      %v3676 = vpack.c.b16 %v3675, %v3674
      %v3678 = vsel %vm338, %v3676, 0
      %3680 = vmatpush.bf16.msra.mxu0 0
      %3681 = vmatpush.bf16.msra.mxu0 0
      %3682 = vmatpush.bf16.msra.mxu0 0
      %3683 = vmatpush.bf16.msra.mxu0 0
      %3684 = vmatpush.bf16.msra.mxu0 0
      %3685 = vmatpush.bf16.msra.mxu0 0
      %3686 = vmatpush.bf16.msra.mxu0 0
      %3687 = vmatpush.bf16.msra.mxu0 %v3392
      %3688 = vmatmul.bf16.gmra.mxu0 %v3678
      %v3689 = vpop.f32.mrf.mxu0
      %v3690 = vadd.f32 0.0, %v3689
      %v3691 = vpop.f32.mrf.mxu0
      %v3692 = vadd.f32 0.0, %v3691
      %3693 = vdwg.mxu0
      %v3696 = vunpack.c.l.b16 %v3343
      %v3697 = vunpack.c.l.b16 %v3344
      %v3698 = vpack.c.b16 %v3697, %v3696
      %v3700 = vsel %vm338, %v3698, 0
      %3702 = vmatpush.bf16.msra.mxu0 0
      %3703 = vmatpush.bf16.msra.mxu0 0
      %3704 = vmatpush.bf16.msra.mxu0 0
      %3705 = vmatpush.bf16.msra.mxu0 0
      %3706 = vmatpush.bf16.msra.mxu0 0
      %3707 = vmatpush.bf16.msra.mxu0 0
      %3708 = vmatpush.bf16.msra.mxu0 0
      %3709 = vmatpush.bf16.msra.mxu0 %v3392
      %3710 = vmatmul.bf16.gmra.mxu0 %v3700
      %v3711 = vpop.f32.mrf.mxu0
      %v3712 = vadd.f32 0.0, %v3711
      %v3713 = vpop.f32.mrf.mxu0
      %v3714 = vadd.f32 0.0, %v3713
      %3715 = vdwg.mxu0
      %v3718 = vunpack.c.l.b16 %v3346
      %v3719 = vunpack.c.l.b16 %v3347
      %v3720 = vpack.c.b16 %v3719, %v3718
      %v3722 = vsel %vm338, %v3720, 0
      %3724 = vmatpush.bf16.msra.mxu0 0
      %3725 = vmatpush.bf16.msra.mxu0 0
      %3726 = vmatpush.bf16.msra.mxu0 0
      %3727 = vmatpush.bf16.msra.mxu0 0
      %3728 = vmatpush.bf16.msra.mxu0 0
      %3729 = vmatpush.bf16.msra.mxu0 0
      %3730 = vmatpush.bf16.msra.mxu0 0
      %3731 = vmatpush.bf16.msra.mxu0 %v3392
      %3732 = vmatmul.bf16.gmra.mxu0 %v3722
      %v3733 = vpop.f32.mrf.mxu0
      %v3734 = vadd.f32 0.0, %v3733
      %v3735 = vpop.f32.mrf.mxu0
      %v3736 = vadd.f32 0.0, %v3735
      %3737 = vdwg.mxu0
      %v3738 = vadd.f32 %v3351, %v3404
      %v3739 = vadd.f32 %v3352, %v3406
      %v3740 = vadd.f32 %v3353, %v3426
      %v3741 = vadd.f32 %v3354, %v3428
      %v3742 = vadd.f32 %v3355, %v3448
      %v3743 = vadd.f32 %v3356, %v3450
      %v3744 = vadd.f32 %v3357, %v3470
      %v3745 = vadd.f32 %v3358, %v3472
      %v3746 = vadd.f32 %v3359, %v3492
      %v3747 = vadd.f32 %v3360, %v3494
      %v3748 = vadd.f32 %v3361, %v3514
      %v3749 = vadd.f32 %v3362, %v3516
      %v3750 = vadd.f32 %v3363, %v3536
      %v3751 = vadd.f32 %v3364, %v3538
      %v3752 = vadd.f32 %v3365, %v3558
      %v3753 = vadd.f32 %v3366, %v3560
      %v3754 = vadd.f32 %v3367, %v3580
      %v3755 = vadd.f32 %v3368, %v3582
      %v3756 = vadd.f32 %v3369, %v3602
      %v3757 = vadd.f32 %v3370, %v3604
      %v3758 = vadd.f32 %v3371, %v3624
      %v3759 = vadd.f32 %v3372, %v3626
      %v3760 = vadd.f32 %v3373, %v3646
      %v3761 = vadd.f32 %v3374, %v3648
      %v3762 = vadd.f32 %v3375, %v3668
      %v3763 = vadd.f32 %v3376, %v3670
      %v3764 = vadd.f32 %v3377, %v3690
      %v3765 = vadd.f32 %v3378, %v3692
      %v3766 = vadd.f32 %v3379, %v3712
      %v3767 = vadd.f32 %v3380, %v3714
      %v3768 = vadd.f32 %v3381, %v3734
      %v3769 = vadd.f32 %v3382, %v3736
      %3770 = vst [vmem:[%s206] sm:$0xff] %v3738
      %3771 = vst [vmem:[%s206 + $0x8] sm:$0xff] %v3739
      %3772 = vst [vmem:[%s206 + $0x10] sm:$0xff] %v3740
      %3773 = vst [vmem:[%s206 + $0x18] sm:$0xff] %v3741
      %3774 = vst [vmem:[%s206 + $0x20] sm:$0xff] %v3742
      %3775 = vst [vmem:[%s206 + $0x28] sm:$0xff] %v3743
      %3776 = vst [vmem:[%s206 + $0x30] sm:$0xff] %v3744
      %3777 = vst [vmem:[%s206 + $0x38] sm:$0xff] %v3745
      %3778 = vst [vmem:[%s206 + $0x40] sm:$0xff] %v3746
      %3779 = vst [vmem:[%s206 + $0x48] sm:$0xff] %v3747
      %3780 = vst [vmem:[%s206 + $0x50] sm:$0xff] %v3748
      %3781 = vst [vmem:[%s206 + $0x58] sm:$0xff] %v3749
      %3782 = vst [vmem:[%s206 + $0x60] sm:$0xff] %v3750
      %3783 = vst [vmem:[%s206 + $0x68] sm:$0xff] %v3751
      %3784 = vst [vmem:[%s206 + $0x70] sm:$0xff] %v3752
      %3785 = vst [vmem:[%s206 + $0x78] sm:$0xff] %v3753
      %3786 = vst [vmem:[%s206 + $0x80] sm:$0xff] %v3754
      %3787 = vst [vmem:[%s206 + $0x88] sm:$0xff] %v3755
      %3788 = vst [vmem:[%s206 + $0x90] sm:$0xff] %v3756
      %3789 = vst [vmem:[%s206 + $0x98] sm:$0xff] %v3757
      %3790 = vst [vmem:[%s206 + $0xa0] sm:$0xff] %v3758
      %3791 = vst [vmem:[%s206 + $0xa8] sm:$0xff] %v3759
      %3792 = vst [vmem:[%s206 + $0xb0] sm:$0xff] %v3760
      %3793 = vst [vmem:[%s206 + $0xb8] sm:$0xff] %v3761
      %3794 = vst [vmem:[%s206 + $0xc0] sm:$0xff] %v3762
      %3795 = vst [vmem:[%s206 + $0xc8] sm:$0xff] %v3763
      %3796 = vst [vmem:[%s206 + $0xd0] sm:$0xff] %v3764
      %3797 = vst [vmem:[%s206 + $0xd8] sm:$0xff] %v3765
      %3798 = vst [vmem:[%s206 + $0xe0] sm:$0xff] %v3766
      %3799 = vst [vmem:[%s206 + $0xe8] sm:$0xff] %v3767
      %3800 = vst [vmem:[%s206 + $0xf0] sm:$0xff] %v3768
      %3801 = vst [vmem:[%s206 + $0xf8] sm:$0xff] %v3769
      %s3802 = scalar_lea.vmem %s1, 14
      %v3803 = vld [vmem:[%s3802] sm:$0x3]
      %v3804 = vld [vmem:[%s206] sm:$0xff]
      %v3805 = vld [vmem:[%s206 + $0x8] sm:$0xff]
      %v3806 = vld [vmem:[%s206 + $0x10] sm:$0xff]
      %v3807 = vld [vmem:[%s206 + $0x18] sm:$0xff]
      %v3808 = vld [vmem:[%s206 + $0x20] sm:$0xff]
      %v3809 = vld [vmem:[%s206 + $0x28] sm:$0xff]
      %v3810 = vld [vmem:[%s206 + $0x30] sm:$0xff]
      %v3811 = vld [vmem:[%s206 + $0x38] sm:$0xff]
      %v3812 = vld [vmem:[%s206 + $0x40] sm:$0xff]
      %v3813 = vld [vmem:[%s206 + $0x48] sm:$0xff]
      %v3814 = vld [vmem:[%s206 + $0x50] sm:$0xff]
      %v3815 = vld [vmem:[%s206 + $0x58] sm:$0xff]
      %v3816 = vld [vmem:[%s206 + $0x60] sm:$0xff]
      %v3817 = vld [vmem:[%s206 + $0x68] sm:$0xff]
      %v3818 = vld [vmem:[%s206 + $0x70] sm:$0xff]
      %v3819 = vld [vmem:[%s206 + $0x78] sm:$0xff]
      %v3820 = vld [vmem:[%s206 + $0x80] sm:$0xff]
      %v3821 = vld [vmem:[%s206 + $0x88] sm:$0xff]
      %v3822 = vld [vmem:[%s206 + $0x90] sm:$0xff]
      %v3823 = vld [vmem:[%s206 + $0x98] sm:$0xff]
      %v3824 = vld [vmem:[%s206 + $0xa0] sm:$0xff]
      %v3825 = vld [vmem:[%s206 + $0xa8] sm:$0xff]
      %v3826 = vld [vmem:[%s206 + $0xb0] sm:$0xff]
      %v3827 = vld [vmem:[%s206 + $0xb8] sm:$0xff]
      %v3828 = vld [vmem:[%s206 + $0xc0] sm:$0xff]
      %v3829 = vld [vmem:[%s206 + $0xc8] sm:$0xff]
      %v3830 = vld [vmem:[%s206 + $0xd0] sm:$0xff]
      %v3831 = vld [vmem:[%s206 + $0xd8] sm:$0xff]
      %v3832 = vld [vmem:[%s206 + $0xe0] sm:$0xff]
      %v3833 = vld [vmem:[%s206 + $0xe8] sm:$0xff]
      %v3834 = vld [vmem:[%s206 + $0xf0] sm:$0xff]
      %v3835 = vld [vmem:[%s206 + $0xf8] sm:$0xff]
      %v3837 = vunpack.c.l.b16 %v3303
      %v3838 = vpack.c.b16 %v3837, %v3837
      %v3839 = vshrl.u32 %v3387, 16
      %v3841 = vshll.u32 %v3387, 16
      %v3843 = vrot.slane %v3841, 1
      %v3844 = vor.u32 %v3839, %v3843
      %v3846 = vshll.u32 %v3838, 16
      %v3848 = vrot.slane %v3846, 1
      %v3849 = vsel %vm791, %v3844, %v3848
      %v3851 = vsel %vm338, %v3849, 0
      %v3854 = vsel %vm342, %v3803, 0
      %3856 = vmatpush.bf16.msra.mxu0 0
      %3857 = vmatpush.bf16.msra.mxu0 0
      %3858 = vmatpush.bf16.msra.mxu0 0
      %3859 = vmatpush.bf16.msra.mxu0 0
      %3860 = vmatpush.bf16.msra.mxu0 0
      %3861 = vmatpush.bf16.msra.mxu0 0
      %3862 = vmatpush.bf16.msra.mxu0 0
      %3863 = vmatpush.bf16.msra.mxu0 %v3854
      %3864 = vmatmul.bf16.gmra.mxu0 %v3851
      %v3865 = vpop.f32.mrf.mxu0
      %v3866 = vadd.f32 0.0, %v3865
      %v3867 = vpop.f32.mrf.mxu0
      %v3868 = vadd.f32 0.0, %v3867
      %3869 = vdwg.mxu0
      %v3871 = vunpack.c.l.b16 %v3306
      %v3872 = vpack.c.b16 %v3871, %v3871
      %v3873 = vshrl.u32 %v3412, 16
      %v3875 = vshll.u32 %v3412, 16
      %v3877 = vrot.slane %v3875, 1
      %v3878 = vor.u32 %v3873, %v3877
      %v3880 = vshll.u32 %v3872, 16
      %v3882 = vrot.slane %v3880, 1
      %v3883 = vsel %vm791, %v3878, %v3882
      %v3885 = vsel %vm338, %v3883, 0
      %3887 = vmatpush.bf16.msra.mxu0 0
      %3888 = vmatpush.bf16.msra.mxu0 0
      %3889 = vmatpush.bf16.msra.mxu0 0
      %3890 = vmatpush.bf16.msra.mxu0 0
      %3891 = vmatpush.bf16.msra.mxu0 0
      %3892 = vmatpush.bf16.msra.mxu0 0
      %3893 = vmatpush.bf16.msra.mxu0 0
      %3894 = vmatpush.bf16.msra.mxu0 %v3854
      %3895 = vmatmul.bf16.gmra.mxu0 %v3885
      %v3896 = vpop.f32.mrf.mxu0
      %v3897 = vadd.f32 0.0, %v3896
      %v3898 = vpop.f32.mrf.mxu0
      %v3899 = vadd.f32 0.0, %v3898
      %3900 = vdwg.mxu0
      %v3902 = vunpack.c.l.b16 %v3309
      %v3903 = vpack.c.b16 %v3902, %v3902
      %v3904 = vshrl.u32 %v3434, 16
      %v3906 = vshll.u32 %v3434, 16
      %v3908 = vrot.slane %v3906, 1
      %v3909 = vor.u32 %v3904, %v3908
      %v3911 = vshll.u32 %v3903, 16
      %v3913 = vrot.slane %v3911, 1
      %v3914 = vsel %vm791, %v3909, %v3913
      %v3916 = vsel %vm338, %v3914, 0
      %3918 = vmatpush.bf16.msra.mxu0 0
      %3919 = vmatpush.bf16.msra.mxu0 0
      %3920 = vmatpush.bf16.msra.mxu0 0
      %3921 = vmatpush.bf16.msra.mxu0 0
      %3922 = vmatpush.bf16.msra.mxu0 0
      %3923 = vmatpush.bf16.msra.mxu0 0
      %3924 = vmatpush.bf16.msra.mxu0 0
      %3925 = vmatpush.bf16.msra.mxu0 %v3854
      %3926 = vmatmul.bf16.gmra.mxu0 %v3916
      %v3927 = vpop.f32.mrf.mxu0
      %v3928 = vadd.f32 0.0, %v3927
      %v3929 = vpop.f32.mrf.mxu0
      %v3930 = vadd.f32 0.0, %v3929
      %3931 = vdwg.mxu0
      %v3933 = vunpack.c.l.b16 %v3312
      %v3934 = vpack.c.b16 %v3933, %v3933
      %v3935 = vshrl.u32 %v3456, 16
      %v3937 = vshll.u32 %v3456, 16
      %v3939 = vrot.slane %v3937, 1
      %v3940 = vor.u32 %v3935, %v3939
      %v3942 = vshll.u32 %v3934, 16
      %v3944 = vrot.slane %v3942, 1
      %v3945 = vsel %vm791, %v3940, %v3944
      %v3947 = vsel %vm338, %v3945, 0
      %3949 = vmatpush.bf16.msra.mxu0 0
      %3950 = vmatpush.bf16.msra.mxu0 0
      %3951 = vmatpush.bf16.msra.mxu0 0
      %3952 = vmatpush.bf16.msra.mxu0 0
      %3953 = vmatpush.bf16.msra.mxu0 0
      %3954 = vmatpush.bf16.msra.mxu0 0
      %3955 = vmatpush.bf16.msra.mxu0 0
      %3956 = vmatpush.bf16.msra.mxu0 %v3854
      %3957 = vmatmul.bf16.gmra.mxu0 %v3947
      %v3958 = vpop.f32.mrf.mxu0
      %v3959 = vadd.f32 0.0, %v3958
      %v3960 = vpop.f32.mrf.mxu0
      %v3961 = vadd.f32 0.0, %v3960
      %3962 = vdwg.mxu0
      %v3964 = vunpack.c.l.b16 %v3315
      %v3965 = vpack.c.b16 %v3964, %v3964
      %v3966 = vshrl.u32 %v3478, 16
      %v3968 = vshll.u32 %v3478, 16
      %v3970 = vrot.slane %v3968, 1
      %v3971 = vor.u32 %v3966, %v3970
      %v3973 = vshll.u32 %v3965, 16
      %v3975 = vrot.slane %v3973, 1
      %v3976 = vsel %vm791, %v3971, %v3975
      %v3978 = vsel %vm338, %v3976, 0
      %3980 = vmatpush.bf16.msra.mxu0 0
      %3981 = vmatpush.bf16.msra.mxu0 0
      %3982 = vmatpush.bf16.msra.mxu0 0
      %3983 = vmatpush.bf16.msra.mxu0 0
      %3984 = vmatpush.bf16.msra.mxu0 0
      %3985 = vmatpush.bf16.msra.mxu0 0
      %3986 = vmatpush.bf16.msra.mxu0 0
      %3987 = vmatpush.bf16.msra.mxu0 %v3854
      %3988 = vmatmul.bf16.gmra.mxu0 %v3978
      %v3989 = vpop.f32.mrf.mxu0
      %v3990 = vadd.f32 0.0, %v3989
      %v3991 = vpop.f32.mrf.mxu0
      %v3992 = vadd.f32 0.0, %v3991
      %3993 = vdwg.mxu0
      %v3995 = vunpack.c.l.b16 %v3318
      %v3996 = vpack.c.b16 %v3995, %v3995
      %v3997 = vshrl.u32 %v3500, 16
      %v3999 = vshll.u32 %v3500, 16
      %v4001 = vrot.slane %v3999, 1
      %v4002 = vor.u32 %v3997, %v4001
      %v4004 = vshll.u32 %v3996, 16
      %v4006 = vrot.slane %v4004, 1
      %v4007 = vsel %vm791, %v4002, %v4006
      %v4009 = vsel %vm338, %v4007, 0
      %4011 = vmatpush.bf16.msra.mxu0 0
      %4012 = vmatpush.bf16.msra.mxu0 0
      %4013 = vmatpush.bf16.msra.mxu0 0
      %4014 = vmatpush.bf16.msra.mxu0 0
      %4015 = vmatpush.bf16.msra.mxu0 0
      %4016 = vmatpush.bf16.msra.mxu0 0
      %4017 = vmatpush.bf16.msra.mxu0 0
      %4018 = vmatpush.bf16.msra.mxu0 %v3854
      %4019 = vmatmul.bf16.gmra.mxu0 %v4009
      %v4020 = vpop.f32.mrf.mxu0
      %v4021 = vadd.f32 0.0, %v4020
      %v4022 = vpop.f32.mrf.mxu0
      %v4023 = vadd.f32 0.0, %v4022
      %4024 = vdwg.mxu0
      %v4026 = vunpack.c.l.b16 %v3321
      %v4027 = vpack.c.b16 %v4026, %v4026
      %v4028 = vshrl.u32 %v3522, 16
      %v4030 = vshll.u32 %v3522, 16
      %v4032 = vrot.slane %v4030, 1
      %v4033 = vor.u32 %v4028, %v4032
      %v4035 = vshll.u32 %v4027, 16
      %v4037 = vrot.slane %v4035, 1
      %v4038 = vsel %vm791, %v4033, %v4037
      %v4040 = vsel %vm338, %v4038, 0
      %4042 = vmatpush.bf16.msra.mxu0 0
      %4043 = vmatpush.bf16.msra.mxu0 0
      %4044 = vmatpush.bf16.msra.mxu0 0
      %4045 = vmatpush.bf16.msra.mxu0 0
      %4046 = vmatpush.bf16.msra.mxu0 0
      %4047 = vmatpush.bf16.msra.mxu0 0
      %4048 = vmatpush.bf16.msra.mxu0 0
      %4049 = vmatpush.bf16.msra.mxu0 %v3854
      %4050 = vmatmul.bf16.gmra.mxu0 %v4040
      %v4051 = vpop.f32.mrf.mxu0
      %v4052 = vadd.f32 0.0, %v4051
      %v4053 = vpop.f32.mrf.mxu0
      %v4054 = vadd.f32 0.0, %v4053
      %4055 = vdwg.mxu0
      %v4057 = vunpack.c.l.b16 %v3324
      %v4058 = vpack.c.b16 %v4057, %v4057
      %v4059 = vshrl.u32 %v3544, 16
      %v4061 = vshll.u32 %v3544, 16
      %v4063 = vrot.slane %v4061, 1
      %v4064 = vor.u32 %v4059, %v4063
      %v4066 = vshll.u32 %v4058, 16
      %v4068 = vrot.slane %v4066, 1
      %v4069 = vsel %vm791, %v4064, %v4068
      %v4071 = vsel %vm338, %v4069, 0
      %4073 = vmatpush.bf16.msra.mxu0 0
      %4074 = vmatpush.bf16.msra.mxu0 0
      %4075 = vmatpush.bf16.msra.mxu0 0
      %4076 = vmatpush.bf16.msra.mxu0 0
      %4077 = vmatpush.bf16.msra.mxu0 0
      %4078 = vmatpush.bf16.msra.mxu0 0
      %4079 = vmatpush.bf16.msra.mxu0 0
      %4080 = vmatpush.bf16.msra.mxu0 %v3854
      %4081 = vmatmul.bf16.gmra.mxu0 %v4071
      %v4082 = vpop.f32.mrf.mxu0
      %v4083 = vadd.f32 0.0, %v4082
      %v4084 = vpop.f32.mrf.mxu0
      %v4085 = vadd.f32 0.0, %v4084
      %4086 = vdwg.mxu0
      %v4088 = vunpack.c.l.b16 %v3327
      %v4089 = vpack.c.b16 %v4088, %v4088
      %v4090 = vshrl.u32 %v3566, 16
      %v4092 = vshll.u32 %v3566, 16
      %v4094 = vrot.slane %v4092, 1
      %v4095 = vor.u32 %v4090, %v4094
      %v4097 = vshll.u32 %v4089, 16
      %v4099 = vrot.slane %v4097, 1
      %v4100 = vsel %vm791, %v4095, %v4099
      %v4102 = vsel %vm338, %v4100, 0
      %4104 = vmatpush.bf16.msra.mxu0 0
      %4105 = vmatpush.bf16.msra.mxu0 0
      %4106 = vmatpush.bf16.msra.mxu0 0
      %4107 = vmatpush.bf16.msra.mxu0 0
      %4108 = vmatpush.bf16.msra.mxu0 0
      %4109 = vmatpush.bf16.msra.mxu0 0
      %4110 = vmatpush.bf16.msra.mxu0 0
      %4111 = vmatpush.bf16.msra.mxu0 %v3854
      %4112 = vmatmul.bf16.gmra.mxu0 %v4102
      %v4113 = vpop.f32.mrf.mxu0
      %v4114 = vadd.f32 0.0, %v4113
      %v4115 = vpop.f32.mrf.mxu0
      %v4116 = vadd.f32 0.0, %v4115
      %4117 = vdwg.mxu0
      %v4119 = vunpack.c.l.b16 %v3330
      %v4120 = vpack.c.b16 %v4119, %v4119
      %v4121 = vshrl.u32 %v3588, 16
      %v4123 = vshll.u32 %v3588, 16
      %v4125 = vrot.slane %v4123, 1
      %v4126 = vor.u32 %v4121, %v4125
      %v4128 = vshll.u32 %v4120, 16
      %v4130 = vrot.slane %v4128, 1
      %v4131 = vsel %vm791, %v4126, %v4130
      %v4133 = vsel %vm338, %v4131, 0
      %4135 = vmatpush.bf16.msra.mxu0 0
      %4136 = vmatpush.bf16.msra.mxu0 0
      %4137 = vmatpush.bf16.msra.mxu0 0
      %4138 = vmatpush.bf16.msra.mxu0 0
      %4139 = vmatpush.bf16.msra.mxu0 0
      %4140 = vmatpush.bf16.msra.mxu0 0
      %4141 = vmatpush.bf16.msra.mxu0 0
      %4142 = vmatpush.bf16.msra.mxu0 %v3854
      %4143 = vmatmul.bf16.gmra.mxu0 %v4133
      %v4144 = vpop.f32.mrf.mxu0
      %v4145 = vadd.f32 0.0, %v4144
      %v4146 = vpop.f32.mrf.mxu0
      %v4147 = vadd.f32 0.0, %v4146
      %4148 = vdwg.mxu0
      %v4150 = vunpack.c.l.b16 %v3333
      %v4151 = vpack.c.b16 %v4150, %v4150
      %v4152 = vshrl.u32 %v3610, 16
      %v4154 = vshll.u32 %v3610, 16
      %v4156 = vrot.slane %v4154, 1
      %v4157 = vor.u32 %v4152, %v4156
      %v4159 = vshll.u32 %v4151, 16
      %v4161 = vrot.slane %v4159, 1
      %v4162 = vsel %vm791, %v4157, %v4161
      %v4164 = vsel %vm338, %v4162, 0
      %4166 = vmatpush.bf16.msra.mxu0 0
      %4167 = vmatpush.bf16.msra.mxu0 0
      %4168 = vmatpush.bf16.msra.mxu0 0
      %4169 = vmatpush.bf16.msra.mxu0 0
      %4170 = vmatpush.bf16.msra.mxu0 0
      %4171 = vmatpush.bf16.msra.mxu0 0
      %4172 = vmatpush.bf16.msra.mxu0 0
      %4173 = vmatpush.bf16.msra.mxu0 %v3854
      %4174 = vmatmul.bf16.gmra.mxu0 %v4164
      %v4175 = vpop.f32.mrf.mxu0
      %v4176 = vadd.f32 0.0, %v4175
      %v4177 = vpop.f32.mrf.mxu0
      %v4178 = vadd.f32 0.0, %v4177
      %4179 = vdwg.mxu0
      %v4181 = vunpack.c.l.b16 %v3336
      %v4182 = vpack.c.b16 %v4181, %v4181
      %v4183 = vshrl.u32 %v3632, 16
      %v4185 = vshll.u32 %v3632, 16
      %v4187 = vrot.slane %v4185, 1
      %v4188 = vor.u32 %v4183, %v4187
      %v4190 = vshll.u32 %v4182, 16
      %v4192 = vrot.slane %v4190, 1
      %v4193 = vsel %vm791, %v4188, %v4192
      %v4195 = vsel %vm338, %v4193, 0
      %4197 = vmatpush.bf16.msra.mxu0 0
      %4198 = vmatpush.bf16.msra.mxu0 0
      %4199 = vmatpush.bf16.msra.mxu0 0
      %4200 = vmatpush.bf16.msra.mxu0 0
      %4201 = vmatpush.bf16.msra.mxu0 0
      %4202 = vmatpush.bf16.msra.mxu0 0
      %4203 = vmatpush.bf16.msra.mxu0 0
      %4204 = vmatpush.bf16.msra.mxu0 %v3854
      %4205 = vmatmul.bf16.gmra.mxu0 %v4195
      %v4206 = vpop.f32.mrf.mxu0
      %v4207 = vadd.f32 0.0, %v4206
      %v4208 = vpop.f32.mrf.mxu0
      %v4209 = vadd.f32 0.0, %v4208
      %4210 = vdwg.mxu0
      %v4212 = vunpack.c.l.b16 %v3339
      %v4213 = vpack.c.b16 %v4212, %v4212
      %v4214 = vshrl.u32 %v3654, 16
      %v4216 = vshll.u32 %v3654, 16
      %v4218 = vrot.slane %v4216, 1
      %v4219 = vor.u32 %v4214, %v4218
      %v4221 = vshll.u32 %v4213, 16
      %v4223 = vrot.slane %v4221, 1
      %v4224 = vsel %vm791, %v4219, %v4223
      %v4226 = vsel %vm338, %v4224, 0
      %4228 = vmatpush.bf16.msra.mxu0 0
      %4229 = vmatpush.bf16.msra.mxu0 0
      %4230 = vmatpush.bf16.msra.mxu0 0
      %4231 = vmatpush.bf16.msra.mxu0 0
      %4232 = vmatpush.bf16.msra.mxu0 0
      %4233 = vmatpush.bf16.msra.mxu0 0
      %4234 = vmatpush.bf16.msra.mxu0 0
      %4235 = vmatpush.bf16.msra.mxu0 %v3854
      %4236 = vmatmul.bf16.gmra.mxu0 %v4226
      %v4237 = vpop.f32.mrf.mxu0
      %v4238 = vadd.f32 0.0, %v4237
      %v4239 = vpop.f32.mrf.mxu0
      %v4240 = vadd.f32 0.0, %v4239
      %4241 = vdwg.mxu0
      %v4243 = vunpack.c.l.b16 %v3342
      %v4244 = vpack.c.b16 %v4243, %v4243
      %v4245 = vshrl.u32 %v3676, 16
      %v4247 = vshll.u32 %v3676, 16
      %v4249 = vrot.slane %v4247, 1
      %v4250 = vor.u32 %v4245, %v4249
      %v4252 = vshll.u32 %v4244, 16
      %v4254 = vrot.slane %v4252, 1
      %v4255 = vsel %vm791, %v4250, %v4254
      %v4257 = vsel %vm338, %v4255, 0
      %4259 = vmatpush.bf16.msra.mxu0 0
      %4260 = vmatpush.bf16.msra.mxu0 0
      %4261 = vmatpush.bf16.msra.mxu0 0
      %4262 = vmatpush.bf16.msra.mxu0 0
      %4263 = vmatpush.bf16.msra.mxu0 0
      %4264 = vmatpush.bf16.msra.mxu0 0
      %4265 = vmatpush.bf16.msra.mxu0 0
      %4266 = vmatpush.bf16.msra.mxu0 %v3854
      %4267 = vmatmul.bf16.gmra.mxu0 %v4257
      %v4268 = vpop.f32.mrf.mxu0
      %v4269 = vadd.f32 0.0, %v4268
      %v4270 = vpop.f32.mrf.mxu0
      %v4271 = vadd.f32 0.0, %v4270
      %4272 = vdwg.mxu0
      %v4274 = vunpack.c.l.b16 %v3345
      %v4275 = vpack.c.b16 %v4274, %v4274
      %v4276 = vshrl.u32 %v3698, 16
      %v4278 = vshll.u32 %v3698, 16
      %v4280 = vrot.slane %v4278, 1
      %v4281 = vor.u32 %v4276, %v4280
      %v4283 = vshll.u32 %v4275, 16
      %v4285 = vrot.slane %v4283, 1
      %v4286 = vsel %vm791, %v4281, %v4285
      %v4288 = vsel %vm338, %v4286, 0
      %4290 = vmatpush.bf16.msra.mxu0 0
      %4291 = vmatpush.bf16.msra.mxu0 0
      %4292 = vmatpush.bf16.msra.mxu0 0
      %4293 = vmatpush.bf16.msra.mxu0 0
      %4294 = vmatpush.bf16.msra.mxu0 0
      %4295 = vmatpush.bf16.msra.mxu0 0
      %4296 = vmatpush.bf16.msra.mxu0 0
      %4297 = vmatpush.bf16.msra.mxu0 %v3854
      %4298 = vmatmul.bf16.gmra.mxu0 %v4288
      %v4299 = vpop.f32.mrf.mxu0
      %v4300 = vadd.f32 0.0, %v4299
      %v4301 = vpop.f32.mrf.mxu0
      %v4302 = vadd.f32 0.0, %v4301
      %4303 = vdwg.mxu0
      %v4305 = vunpack.c.l.b16 %v3348
      %v4306 = vpack.c.b16 %v4305, %v4305
      %v4307 = vshrl.u32 %v3720, 16
      %v4309 = vshll.u32 %v3720, 16
      %v4311 = vrot.slane %v4309, 1
      %v4312 = vor.u32 %v4307, %v4311
      %v4314 = vshll.u32 %v4306, 16
      %v4316 = vrot.slane %v4314, 1
      %v4317 = vsel %vm791, %v4312, %v4316
      %v4319 = vsel %vm338, %v4317, 0
      %4321 = vmatpush.bf16.msra.mxu0 0
      %4322 = vmatpush.bf16.msra.mxu0 0
      %4323 = vmatpush.bf16.msra.mxu0 0
      %4324 = vmatpush.bf16.msra.mxu0 0
      %4325 = vmatpush.bf16.msra.mxu0 0
      %4326 = vmatpush.bf16.msra.mxu0 0
      %4327 = vmatpush.bf16.msra.mxu0 0
      %4328 = vmatpush.bf16.msra.mxu0 %v3854
      %4329 = vmatmul.bf16.gmra.mxu0 %v4319
      %v4330 = vpop.f32.mrf.mxu0
      %v4331 = vadd.f32 0.0, %v4330
      %v4332 = vpop.f32.mrf.mxu0
      %v4333 = vadd.f32 0.0, %v4332
      %4334 = vdwg.mxu0
      %v4335 = vadd.f32 %v3804, %v3866
      %v4336 = vadd.f32 %v3805, %v3868
      %v4337 = vadd.f32 %v3806, %v3897
      %v4338 = vadd.f32 %v3807, %v3899
      %v4339 = vadd.f32 %v3808, %v3928
      %v4340 = vadd.f32 %v3809, %v3930
      %v4341 = vadd.f32 %v3810, %v3959
      %v4342 = vadd.f32 %v3811, %v3961
      %v4343 = vadd.f32 %v3812, %v3990
      %v4344 = vadd.f32 %v3813, %v3992
      %v4345 = vadd.f32 %v3814, %v4021
      %v4346 = vadd.f32 %v3815, %v4023
      %v4347 = vadd.f32 %v3816, %v4052
      %v4348 = vadd.f32 %v3817, %v4054
      %v4349 = vadd.f32 %v3818, %v4083
      %v4350 = vadd.f32 %v3819, %v4085
      %v4351 = vadd.f32 %v3820, %v4114
      %v4352 = vadd.f32 %v3821, %v4116
      %v4353 = vadd.f32 %v3822, %v4145
      %v4354 = vadd.f32 %v3823, %v4147
      %v4355 = vadd.f32 %v3824, %v4176
      %v4356 = vadd.f32 %v3825, %v4178
      %v4357 = vadd.f32 %v3826, %v4207
      %v4358 = vadd.f32 %v3827, %v4209
      %v4359 = vadd.f32 %v3828, %v4238
      %v4360 = vadd.f32 %v3829, %v4240
      %v4361 = vadd.f32 %v3830, %v4269
      %v4362 = vadd.f32 %v3831, %v4271
      %v4363 = vadd.f32 %v3832, %v4300
      %v4364 = vadd.f32 %v3833, %v4302
      %v4365 = vadd.f32 %v3834, %v4331
      %v4366 = vadd.f32 %v3835, %v4333
      %4367 = vst [vmem:[%s206] sm:$0xff] %v4335
      %4368 = vst [vmem:[%s206 + $0x8] sm:$0xff] %v4336
      %4369 = vst [vmem:[%s206 + $0x10] sm:$0xff] %v4337
      %4370 = vst [vmem:[%s206 + $0x18] sm:$0xff] %v4338
      %4371 = vst [vmem:[%s206 + $0x20] sm:$0xff] %v4339
      %4372 = vst [vmem:[%s206 + $0x28] sm:$0xff] %v4340
      %4373 = vst [vmem:[%s206 + $0x30] sm:$0xff] %v4341
      %4374 = vst [vmem:[%s206 + $0x38] sm:$0xff] %v4342
      %4375 = vst [vmem:[%s206 + $0x40] sm:$0xff] %v4343
      %4376 = vst [vmem:[%s206 + $0x48] sm:$0xff] %v4344
      %4377 = vst [vmem:[%s206 + $0x50] sm:$0xff] %v4345
      %4378 = vst [vmem:[%s206 + $0x58] sm:$0xff] %v4346
      %4379 = vst [vmem:[%s206 + $0x60] sm:$0xff] %v4347
      %4380 = vst [vmem:[%s206 + $0x68] sm:$0xff] %v4348
      %4381 = vst [vmem:[%s206 + $0x70] sm:$0xff] %v4349
      %4382 = vst [vmem:[%s206 + $0x78] sm:$0xff] %v4350
      %4383 = vst [vmem:[%s206 + $0x80] sm:$0xff] %v4351
      %4384 = vst [vmem:[%s206 + $0x88] sm:$0xff] %v4352
      %4385 = vst [vmem:[%s206 + $0x90] sm:$0xff] %v4353
      %4386 = vst [vmem:[%s206 + $0x98] sm:$0xff] %v4354
      %4387 = vst [vmem:[%s206 + $0xa0] sm:$0xff] %v4355
      %4388 = vst [vmem:[%s206 + $0xa8] sm:$0xff] %v4356
      %4389 = vst [vmem:[%s206 + $0xb0] sm:$0xff] %v4357
      %4390 = vst [vmem:[%s206 + $0xb8] sm:$0xff] %v4358
      %4391 = vst [vmem:[%s206 + $0xc0] sm:$0xff] %v4359
      %4392 = vst [vmem:[%s206 + $0xc8] sm:$0xff] %v4360
      %4393 = vst [vmem:[%s206 + $0xd0] sm:$0xff] %v4361
      %4394 = vst [vmem:[%s206 + $0xd8] sm:$0xff] %v4362
      %4395 = vst [vmem:[%s206 + $0xe0] sm:$0xff] %v4363
      %4396 = vst [vmem:[%s206 + $0xe8] sm:$0xff] %v4364
      %4397 = vst [vmem:[%s206 + $0xf0] sm:$0xff] %v4365
      %4398 = vst [vmem:[%s206 + $0xf8] sm:$0xff] %v4366
      %s4399 = scalar_lea.vmem %s1, 16
      %v4400 = vld [vmem:[%s4399] sm:$0x3]
      %v4401 = vld [vmem:[%s206] sm:$0xff]
      %v4402 = vld [vmem:[%s206 + $0x8] sm:$0xff]
      %v4403 = vld [vmem:[%s206 + $0x10] sm:$0xff]
      %v4404 = vld [vmem:[%s206 + $0x18] sm:$0xff]
      %v4405 = vld [vmem:[%s206 + $0x20] sm:$0xff]
      %v4406 = vld [vmem:[%s206 + $0x28] sm:$0xff]
      %v4407 = vld [vmem:[%s206 + $0x30] sm:$0xff]
      %v4408 = vld [vmem:[%s206 + $0x38] sm:$0xff]
      %v4409 = vld [vmem:[%s206 + $0x40] sm:$0xff]
      %v4410 = vld [vmem:[%s206 + $0x48] sm:$0xff]
      %v4411 = vld [vmem:[%s206 + $0x50] sm:$0xff]
      %v4412 = vld [vmem:[%s206 + $0x58] sm:$0xff]
      %v4413 = vld [vmem:[%s206 + $0x60] sm:$0xff]
      %v4414 = vld [vmem:[%s206 + $0x68] sm:$0xff]
      %v4415 = vld [vmem:[%s206 + $0x70] sm:$0xff]
      %v4416 = vld [vmem:[%s206 + $0x78] sm:$0xff]
      %v4417 = vld [vmem:[%s206 + $0x80] sm:$0xff]
      %v4418 = vld [vmem:[%s206 + $0x88] sm:$0xff]
      %v4419 = vld [vmem:[%s206 + $0x90] sm:$0xff]
      %v4420 = vld [vmem:[%s206 + $0x98] sm:$0xff]
      %v4421 = vld [vmem:[%s206 + $0xa0] sm:$0xff]
      %v4422 = vld [vmem:[%s206 + $0xa8] sm:$0xff]
      %v4423 = vld [vmem:[%s206 + $0xb0] sm:$0xff]
      %v4424 = vld [vmem:[%s206 + $0xb8] sm:$0xff]
      %v4425 = vld [vmem:[%s206 + $0xc0] sm:$0xff]
      %v4426 = vld [vmem:[%s206 + $0xc8] sm:$0xff]
      %v4427 = vld [vmem:[%s206 + $0xd0] sm:$0xff]
      %v4428 = vld [vmem:[%s206 + $0xd8] sm:$0xff]
      %v4429 = vld [vmem:[%s206 + $0xe0] sm:$0xff]
      %v4430 = vld [vmem:[%s206 + $0xe8] sm:$0xff]
      %v4431 = vld [vmem:[%s206 + $0xf0] sm:$0xff]
      %v4432 = vld [vmem:[%s206 + $0xf8] sm:$0xff]
      %v4433 = vrot.slane %v3387, 1
      %v4434 = vrot.slane %v3838, 1
      %v4435 = vsel %vm1386, %v4433, %v4434
      %v4437 = vsel %vm338, %v4435, 0
      %v4440 = vsel %vm342, %v4400, 0
      %4442 = vmatpush.bf16.msra.mxu0 0
      %4443 = vmatpush.bf16.msra.mxu0 0
      %4444 = vmatpush.bf16.msra.mxu0 0
      %4445 = vmatpush.bf16.msra.mxu0 0
      %4446 = vmatpush.bf16.msra.mxu0 0
      %4447 = vmatpush.bf16.msra.mxu0 0
      %4448 = vmatpush.bf16.msra.mxu0 0
      %4449 = vmatpush.bf16.msra.mxu0 %v4440
      %4450 = vmatmul.bf16.gmra.mxu0 %v4437
      %v4451 = vpop.f32.mrf.mxu0
      %v4452 = vadd.f32 0.0, %v4451
      %v4453 = vpop.f32.mrf.mxu0
      %v4454 = vadd.f32 0.0, %v4453
      %4455 = vdwg.mxu0
      %v4456 = vrot.slane %v3412, 1
      %v4457 = vrot.slane %v3872, 1
      %v4458 = vsel %vm1386, %v4456, %v4457
      %v4460 = vsel %vm338, %v4458, 0
      %4462 = vmatpush.bf16.msra.mxu0 0
      %4463 = vmatpush.bf16.msra.mxu0 0
      %4464 = vmatpush.bf16.msra.mxu0 0
      %4465 = vmatpush.bf16.msra.mxu0 0
      %4466 = vmatpush.bf16.msra.mxu0 0
      %4467 = vmatpush.bf16.msra.mxu0 0
      %4468 = vmatpush.bf16.msra.mxu0 0
      %4469 = vmatpush.bf16.msra.mxu0 %v4440
      %4470 = vmatmul.bf16.gmra.mxu0 %v4460
      %v4471 = vpop.f32.mrf.mxu0
      %v4472 = vadd.f32 0.0, %v4471
      %v4473 = vpop.f32.mrf.mxu0
      %v4474 = vadd.f32 0.0, %v4473
      %4475 = vdwg.mxu0
      %v4476 = vrot.slane %v3434, 1
      %v4477 = vrot.slane %v3903, 1
      %v4478 = vsel %vm1386, %v4476, %v4477
      %v4480 = vsel %vm338, %v4478, 0
      %4482 = vmatpush.bf16.msra.mxu0 0
      %4483 = vmatpush.bf16.msra.mxu0 0
      %4484 = vmatpush.bf16.msra.mxu0 0
      %4485 = vmatpush.bf16.msra.mxu0 0
      %4486 = vmatpush.bf16.msra.mxu0 0
      %4487 = vmatpush.bf16.msra.mxu0 0
      %4488 = vmatpush.bf16.msra.mxu0 0
      %4489 = vmatpush.bf16.msra.mxu0 %v4440
      %4490 = vmatmul.bf16.gmra.mxu0 %v4480
      %v4491 = vpop.f32.mrf.mxu0
      %v4492 = vadd.f32 0.0, %v4491
      %v4493 = vpop.f32.mrf.mxu0
      %v4494 = vadd.f32 0.0, %v4493
      %4495 = vdwg.mxu0
      %v4496 = vrot.slane %v3456, 1
      %v4497 = vrot.slane %v3934, 1
      %v4498 = vsel %vm1386, %v4496, %v4497
      %v4500 = vsel %vm338, %v4498, 0
      %4502 = vmatpush.bf16.msra.mxu0 0
      %4503 = vmatpush.bf16.msra.mxu0 0
      %4504 = vmatpush.bf16.msra.mxu0 0
      %4505 = vmatpush.bf16.msra.mxu0 0
      %4506 = vmatpush.bf16.msra.mxu0 0
      %4507 = vmatpush.bf16.msra.mxu0 0
      %4508 = vmatpush.bf16.msra.mxu0 0
      %4509 = vmatpush.bf16.msra.mxu0 %v4440
      %4510 = vmatmul.bf16.gmra.mxu0 %v4500
      %v4511 = vpop.f32.mrf.mxu0
      %v4512 = vadd.f32 0.0, %v4511
      %v4513 = vpop.f32.mrf.mxu0
      %v4514 = vadd.f32 0.0, %v4513
      %4515 = vdwg.mxu0
      %v4516 = vrot.slane %v3478, 1
      %v4517 = vrot.slane %v3965, 1
      %v4518 = vsel %vm1386, %v4516, %v4517
      %v4520 = vsel %vm338, %v4518, 0
      %4522 = vmatpush.bf16.msra.mxu0 0
      %4523 = vmatpush.bf16.msra.mxu0 0
      %4524 = vmatpush.bf16.msra.mxu0 0
      %4525 = vmatpush.bf16.msra.mxu0 0
      %4526 = vmatpush.bf16.msra.mxu0 0
      %4527 = vmatpush.bf16.msra.mxu0 0
      %4528 = vmatpush.bf16.msra.mxu0 0
      %4529 = vmatpush.bf16.msra.mxu0 %v4440
      %4530 = vmatmul.bf16.gmra.mxu0 %v4520
      %v4531 = vpop.f32.mrf.mxu0
      %v4532 = vadd.f32 0.0, %v4531
      %v4533 = vpop.f32.mrf.mxu0
      %v4534 = vadd.f32 0.0, %v4533
      %4535 = vdwg.mxu0
      %v4536 = vrot.slane %v3500, 1
      %v4537 = vrot.slane %v3996, 1
      %v4538 = vsel %vm1386, %v4536, %v4537
      %v4540 = vsel %vm338, %v4538, 0
      %4542 = vmatpush.bf16.msra.mxu0 0
      %4543 = vmatpush.bf16.msra.mxu0 0
      %4544 = vmatpush.bf16.msra.mxu0 0
      %4545 = vmatpush.bf16.msra.mxu0 0
      %4546 = vmatpush.bf16.msra.mxu0 0
      %4547 = vmatpush.bf16.msra.mxu0 0
      %4548 = vmatpush.bf16.msra.mxu0 0
      %4549 = vmatpush.bf16.msra.mxu0 %v4440
      %4550 = vmatmul.bf16.gmra.mxu0 %v4540
      %v4551 = vpop.f32.mrf.mxu0
      %v4552 = vadd.f32 0.0, %v4551
      %v4553 = vpop.f32.mrf.mxu0
      %v4554 = vadd.f32 0.0, %v4553
      %4555 = vdwg.mxu0
      %v4556 = vrot.slane %v3522, 1
      %v4557 = vrot.slane %v4027, 1
      %v4558 = vsel %vm1386, %v4556, %v4557
      %v4560 = vsel %vm338, %v4558, 0
      %4562 = vmatpush.bf16.msra.mxu0 0
      %4563 = vmatpush.bf16.msra.mxu0 0
      %4564 = vmatpush.bf16.msra.mxu0 0
      %4565 = vmatpush.bf16.msra.mxu0 0
      %4566 = vmatpush.bf16.msra.mxu0 0
      %4567 = vmatpush.bf16.msra.mxu0 0
      %4568 = vmatpush.bf16.msra.mxu0 0
      %4569 = vmatpush.bf16.msra.mxu0 %v4440
      %4570 = vmatmul.bf16.gmra.mxu0 %v4560
      %v4571 = vpop.f32.mrf.mxu0
      %v4572 = vadd.f32 0.0, %v4571
      %v4573 = vpop.f32.mrf.mxu0
      %v4574 = vadd.f32 0.0, %v4573
      %4575 = vdwg.mxu0
      %v4576 = vrot.slane %v3544, 1
      %v4577 = vrot.slane %v4058, 1
      %v4578 = vsel %vm1386, %v4576, %v4577
      %v4580 = vsel %vm338, %v4578, 0
      %4582 = vmatpush.bf16.msra.mxu0 0
      %4583 = vmatpush.bf16.msra.mxu0 0
      %4584 = vmatpush.bf16.msra.mxu0 0
      %4585 = vmatpush.bf16.msra.mxu0 0
      %4586 = vmatpush.bf16.msra.mxu0 0
      %4587 = vmatpush.bf16.msra.mxu0 0
      %4588 = vmatpush.bf16.msra.mxu0 0
      %4589 = vmatpush.bf16.msra.mxu0 %v4440
      %4590 = vmatmul.bf16.gmra.mxu0 %v4580
      %v4591 = vpop.f32.mrf.mxu0
      %v4592 = vadd.f32 0.0, %v4591
      %v4593 = vpop.f32.mrf.mxu0
      %v4594 = vadd.f32 0.0, %v4593
      %4595 = vdwg.mxu0
      %v4596 = vrot.slane %v3566, 1
      %v4597 = vrot.slane %v4089, 1
      %v4598 = vsel %vm1386, %v4596, %v4597
      %v4600 = vsel %vm338, %v4598, 0
      %4602 = vmatpush.bf16.msra.mxu0 0
      %4603 = vmatpush.bf16.msra.mxu0 0
      %4604 = vmatpush.bf16.msra.mxu0 0
      %4605 = vmatpush.bf16.msra.mxu0 0
      %4606 = vmatpush.bf16.msra.mxu0 0
      %4607 = vmatpush.bf16.msra.mxu0 0
      %4608 = vmatpush.bf16.msra.mxu0 0
      %4609 = vmatpush.bf16.msra.mxu0 %v4440
      %4610 = vmatmul.bf16.gmra.mxu0 %v4600
      %v4611 = vpop.f32.mrf.mxu0
      %v4612 = vadd.f32 0.0, %v4611
      %v4613 = vpop.f32.mrf.mxu0
      %v4614 = vadd.f32 0.0, %v4613
      %4615 = vdwg.mxu0
      %v4616 = vrot.slane %v3588, 1
      %v4617 = vrot.slane %v4120, 1
      %v4618 = vsel %vm1386, %v4616, %v4617
      %v4620 = vsel %vm338, %v4618, 0
      %4622 = vmatpush.bf16.msra.mxu0 0
      %4623 = vmatpush.bf16.msra.mxu0 0
      %4624 = vmatpush.bf16.msra.mxu0 0
      %4625 = vmatpush.bf16.msra.mxu0 0
      %4626 = vmatpush.bf16.msra.mxu0 0
      %4627 = vmatpush.bf16.msra.mxu0 0
      %4628 = vmatpush.bf16.msra.mxu0 0
      %4629 = vmatpush.bf16.msra.mxu0 %v4440
      %4630 = vmatmul.bf16.gmra.mxu0 %v4620
      %v4631 = vpop.f32.mrf.mxu0
      %v4632 = vadd.f32 0.0, %v4631
      %v4633 = vpop.f32.mrf.mxu0
      %v4634 = vadd.f32 0.0, %v4633
      %4635 = vdwg.mxu0
      %v4636 = vrot.slane %v3610, 1
      %v4637 = vrot.slane %v4151, 1
      %v4638 = vsel %vm1386, %v4636, %v4637
      %v4640 = vsel %vm338, %v4638, 0
      %4642 = vmatpush.bf16.msra.mxu0 0
      %4643 = vmatpush.bf16.msra.mxu0 0
      %4644 = vmatpush.bf16.msra.mxu0 0
      %4645 = vmatpush.bf16.msra.mxu0 0
      %4646 = vmatpush.bf16.msra.mxu0 0
      %4647 = vmatpush.bf16.msra.mxu0 0
      %4648 = vmatpush.bf16.msra.mxu0 0
      %4649 = vmatpush.bf16.msra.mxu0 %v4440
      %4650 = vmatmul.bf16.gmra.mxu0 %v4640
      %v4651 = vpop.f32.mrf.mxu0
      %v4652 = vadd.f32 0.0, %v4651
      %v4653 = vpop.f32.mrf.mxu0
      %v4654 = vadd.f32 0.0, %v4653
      %4655 = vdwg.mxu0
      %v4656 = vrot.slane %v3632, 1
      %v4657 = vrot.slane %v4182, 1
      %v4658 = vsel %vm1386, %v4656, %v4657
      %v4660 = vsel %vm338, %v4658, 0
      %4662 = vmatpush.bf16.msra.mxu0 0
      %4663 = vmatpush.bf16.msra.mxu0 0
      %4664 = vmatpush.bf16.msra.mxu0 0
      %4665 = vmatpush.bf16.msra.mxu0 0
      %4666 = vmatpush.bf16.msra.mxu0 0
      %4667 = vmatpush.bf16.msra.mxu0 0
      %4668 = vmatpush.bf16.msra.mxu0 0
      %4669 = vmatpush.bf16.msra.mxu0 %v4440
      %4670 = vmatmul.bf16.gmra.mxu0 %v4660
      %v4671 = vpop.f32.mrf.mxu0
      %v4672 = vadd.f32 0.0, %v4671
      %v4673 = vpop.f32.mrf.mxu0
      %v4674 = vadd.f32 0.0, %v4673
      %4675 = vdwg.mxu0
      %v4676 = vrot.slane %v3654, 1
      %v4677 = vrot.slane %v4213, 1
      %v4678 = vsel %vm1386, %v4676, %v4677
      %v4680 = vsel %vm338, %v4678, 0
      %4682 = vmatpush.bf16.msra.mxu0 0
      %4683 = vmatpush.bf16.msra.mxu0 0
      %4684 = vmatpush.bf16.msra.mxu0 0
      %4685 = vmatpush.bf16.msra.mxu0 0
      %4686 = vmatpush.bf16.msra.mxu0 0
      %4687 = vmatpush.bf16.msra.mxu0 0
      %4688 = vmatpush.bf16.msra.mxu0 0
      %4689 = vmatpush.bf16.msra.mxu0 %v4440
      %4690 = vmatmul.bf16.gmra.mxu0 %v4680
      %v4691 = vpop.f32.mrf.mxu0
      %v4692 = vadd.f32 0.0, %v4691
      %v4693 = vpop.f32.mrf.mxu0
      %v4694 = vadd.f32 0.0, %v4693
      %4695 = vdwg.mxu0
      %v4696 = vrot.slane %v3676, 1
      %v4697 = vrot.slane %v4244, 1
      %v4698 = vsel %vm1386, %v4696, %v4697
      %v4700 = vsel %vm338, %v4698, 0
      %4702 = vmatpush.bf16.msra.mxu0 0
      %4703 = vmatpush.bf16.msra.mxu0 0
      %4704 = vmatpush.bf16.msra.mxu0 0
      %4705 = vmatpush.bf16.msra.mxu0 0
      %4706 = vmatpush.bf16.msra.mxu0 0
      %4707 = vmatpush.bf16.msra.mxu0 0
      %4708 = vmatpush.bf16.msra.mxu0 0
      %4709 = vmatpush.bf16.msra.mxu0 %v4440
      %4710 = vmatmul.bf16.gmra.mxu0 %v4700
      %v4711 = vpop.f32.mrf.mxu0
      %v4712 = vadd.f32 0.0, %v4711
      %v4713 = vpop.f32.mrf.mxu0
      %v4714 = vadd.f32 0.0, %v4713
      %4715 = vdwg.mxu0
      %v4716 = vrot.slane %v3698, 1
      %v4717 = vrot.slane %v4275, 1
      %v4718 = vsel %vm1386, %v4716, %v4717
      %v4720 = vsel %vm338, %v4718, 0
      %4722 = vmatpush.bf16.msra.mxu0 0
      %4723 = vmatpush.bf16.msra.mxu0 0
      %4724 = vmatpush.bf16.msra.mxu0 0
      %4725 = vmatpush.bf16.msra.mxu0 0
      %4726 = vmatpush.bf16.msra.mxu0 0
      %4727 = vmatpush.bf16.msra.mxu0 0
      %4728 = vmatpush.bf16.msra.mxu0 0
      %4729 = vmatpush.bf16.msra.mxu0 %v4440
      %4730 = vmatmul.bf16.gmra.mxu0 %v4720
      %v4731 = vpop.f32.mrf.mxu0
      %v4732 = vadd.f32 0.0, %v4731
      %v4733 = vpop.f32.mrf.mxu0
      %v4734 = vadd.f32 0.0, %v4733
      %4735 = vdwg.mxu0
      %v4736 = vrot.slane %v3720, 1
      %v4737 = vrot.slane %v4306, 1
      %v4738 = vsel %vm1386, %v4736, %v4737
      %v4740 = vsel %vm338, %v4738, 0
      %4742 = vmatpush.bf16.msra.mxu0 0
      %4743 = vmatpush.bf16.msra.mxu0 0
      %4744 = vmatpush.bf16.msra.mxu0 0
      %4745 = vmatpush.bf16.msra.mxu0 0
      %4746 = vmatpush.bf16.msra.mxu0 0
      %4747 = vmatpush.bf16.msra.mxu0 0
      %4748 = vmatpush.bf16.msra.mxu0 0
      %4749 = vmatpush.bf16.msra.mxu0 %v4440
      %4750 = vmatmul.bf16.gmra.mxu0 %v4740
      %v4751 = vpop.f32.mrf.mxu0
      %v4752 = vadd.f32 0.0, %v4751
      %v4753 = vpop.f32.mrf.mxu0
      %v4754 = vadd.f32 0.0, %v4753
      %4755 = vdwg.mxu0
      %v4756 = vadd.f32 %v4401, %v4452
      %v4757 = vadd.f32 %v4402, %v4454
      %v4758 = vadd.f32 %v4403, %v4472
      %v4759 = vadd.f32 %v4404, %v4474
      %v4760 = vadd.f32 %v4405, %v4492
      %v4761 = vadd.f32 %v4406, %v4494
      %v4762 = vadd.f32 %v4407, %v4512
      %v4763 = vadd.f32 %v4408, %v4514
      %v4764 = vadd.f32 %v4409, %v4532
      %v4765 = vadd.f32 %v4410, %v4534
      %v4766 = vadd.f32 %v4411, %v4552
      %v4767 = vadd.f32 %v4412, %v4554
      %v4768 = vadd.f32 %v4413, %v4572
      %v4769 = vadd.f32 %v4414, %v4574
      %v4770 = vadd.f32 %v4415, %v4592
      %v4771 = vadd.f32 %v4416, %v4594
      %v4772 = vadd.f32 %v4417, %v4612
      %v4773 = vadd.f32 %v4418, %v4614
      %v4774 = vadd.f32 %v4419, %v4632
      %v4775 = vadd.f32 %v4420, %v4634
      %v4776 = vadd.f32 %v4421, %v4652
      %v4777 = vadd.f32 %v4422, %v4654
      %v4778 = vadd.f32 %v4423, %v4672
      %v4779 = vadd.f32 %v4424, %v4674
      %v4780 = vadd.f32 %v4425, %v4692
      %v4781 = vadd.f32 %v4426, %v4694
      %v4782 = vadd.f32 %v4427, %v4712
      %v4783 = vadd.f32 %v4428, %v4714
      %v4784 = vadd.f32 %v4429, %v4732
      %v4785 = vadd.f32 %v4430, %v4734
      %v4786 = vadd.f32 %v4431, %v4752
      %v4787 = vadd.f32 %v4432, %v4754
      %4788 = vst [vmem:[%s206] sm:$0xff] %v4756
      %4789 = vst [vmem:[%s206 + $0x8] sm:$0xff] %v4757
      %4790 = vst [vmem:[%s206 + $0x10] sm:$0xff] %v4758
      %4791 = vst [vmem:[%s206 + $0x18] sm:$0xff] %v4759
      %4792 = vst [vmem:[%s206 + $0x20] sm:$0xff] %v4760
      %4793 = vst [vmem:[%s206 + $0x28] sm:$0xff] %v4761
      %4794 = vst [vmem:[%s206 + $0x30] sm:$0xff] %v4762
      %4795 = vst [vmem:[%s206 + $0x38] sm:$0xff] %v4763
      %4796 = vst [vmem:[%s206 + $0x40] sm:$0xff] %v4764
      %4797 = vst [vmem:[%s206 + $0x48] sm:$0xff] %v4765
      %4798 = vst [vmem:[%s206 + $0x50] sm:$0xff] %v4766
      %4799 = vst [vmem:[%s206 + $0x58] sm:$0xff] %v4767
      %4800 = vst [vmem:[%s206 + $0x60] sm:$0xff] %v4768
      %4801 = vst [vmem:[%s206 + $0x68] sm:$0xff] %v4769
      %4802 = vst [vmem:[%s206 + $0x70] sm:$0xff] %v4770
      %4803 = vst [vmem:[%s206 + $0x78] sm:$0xff] %v4771
      %4804 = vst [vmem:[%s206 + $0x80] sm:$0xff] %v4772
      %4805 = vst [vmem:[%s206 + $0x88] sm:$0xff] %v4773
      %4806 = vst [vmem:[%s206 + $0x90] sm:$0xff] %v4774
      %4807 = vst [vmem:[%s206 + $0x98] sm:$0xff] %v4775
      %4808 = vst [vmem:[%s206 + $0xa0] sm:$0xff] %v4776
      %4809 = vst [vmem:[%s206 + $0xa8] sm:$0xff] %v4777
      %4810 = vst [vmem:[%s206 + $0xb0] sm:$0xff] %v4778
      %4811 = vst [vmem:[%s206 + $0xb8] sm:$0xff] %v4779
      %4812 = vst [vmem:[%s206 + $0xc0] sm:$0xff] %v4780
      %4813 = vst [vmem:[%s206 + $0xc8] sm:$0xff] %v4781
      %4814 = vst [vmem:[%s206 + $0xd0] sm:$0xff] %v4782
      %4815 = vst [vmem:[%s206 + $0xd8] sm:$0xff] %v4783
      %4816 = vst [vmem:[%s206 + $0xe0] sm:$0xff] %v4784
      %4817 = vst [vmem:[%s206 + $0xe8] sm:$0xff] %v4785
      %4818 = vst [vmem:[%s206 + $0xf0] sm:$0xff] %v4786
      %4819 = vst [vmem:[%s206 + $0xf8] sm:$0xff] %v4787
      %v4820 = vld [vmem:[%s206] sm:$0xff]
      %v4821 = vld [vmem:[%s206 + $0x8] sm:$0xff]
      %v4822 = vld [vmem:[%s206 + $0x10] sm:$0xff]
      %v4823 = vld [vmem:[%s206 + $0x18] sm:$0xff]
      %v4824 = vld [vmem:[%s206 + $0x20] sm:$0xff]
      %v4825 = vld [vmem:[%s206 + $0x28] sm:$0xff]
      %v4826 = vld [vmem:[%s206 + $0x30] sm:$0xff]
      %v4827 = vld [vmem:[%s206 + $0x38] sm:$0xff]
      %v4828 = vld [vmem:[%s206 + $0x40] sm:$0xff]
      %v4829 = vld [vmem:[%s206 + $0x48] sm:$0xff]
      %v4830 = vld [vmem:[%s206 + $0x50] sm:$0xff]
      %v4831 = vld [vmem:[%s206 + $0x58] sm:$0xff]
      %v4832 = vld [vmem:[%s206 + $0x60] sm:$0xff]
      %v4833 = vld [vmem:[%s206 + $0x68] sm:$0xff]
      %v4834 = vld [vmem:[%s206 + $0x70] sm:$0xff]
      %v4835 = vld [vmem:[%s206 + $0x78] sm:$0xff]
      %v4836 = vld [vmem:[%s206 + $0x80] sm:$0xff]
      %v4837 = vld [vmem:[%s206 + $0x88] sm:$0xff]
      %v4838 = vld [vmem:[%s206 + $0x90] sm:$0xff]
      %v4839 = vld [vmem:[%s206 + $0x98] sm:$0xff]
      %v4840 = vld [vmem:[%s206 + $0xa0] sm:$0xff]
      %v4841 = vld [vmem:[%s206 + $0xa8] sm:$0xff]
      %v4842 = vld [vmem:[%s206 + $0xb0] sm:$0xff]
      %v4843 = vld [vmem:[%s206 + $0xb8] sm:$0xff]
      %v4844 = vld [vmem:[%s206 + $0xc0] sm:$0xff]
      %v4845 = vld [vmem:[%s206 + $0xc8] sm:$0xff]
      %v4846 = vld [vmem:[%s206 + $0xd0] sm:$0xff]
      %v4847 = vld [vmem:[%s206 + $0xd8] sm:$0xff]
      %v4848 = vld [vmem:[%s206 + $0xe0] sm:$0xff]
      %v4849 = vld [vmem:[%s206 + $0xe8] sm:$0xff]
      %v4850 = vld [vmem:[%s206 + $0xf0] sm:$0xff]
      %v4851 = vld [vmem:[%s206 + $0xf8] sm:$0xff]
      %v4852 = vadd.f32 %v4820, %v4822
      %v4853 = vadd.f32 %v4852, %v4824
      %v4854 = vadd.f32 %v4853, %v4826
      %v4855 = vadd.f32 %v4854, %v4828
      %v4856 = vadd.f32 %v4855, %v4830
      %v4857 = vadd.f32 %v4856, %v4832
      %v4858 = vadd.f32 %v4857, %v4834
      %v4859 = vadd.f32 %v4858, %v4836
      %v4860 = vadd.f32 %v4859, %v4838
      %v4861 = vadd.f32 %v4860, %v4840
      %v4862 = vadd.f32 %v4861, %v4842
      %v4863 = vadd.f32 %v4862, %v4844
      %v4864 = vadd.f32 %v4863, %v4846
      %v4865 = vadd.f32 %v4864, %v4848
      %v4866 = vadd.f32 %v4865, %v4850
      %v4867 = vadd.f32 %v4821, %v4823
      %v4868 = vadd.f32 %v4867, %v4825
      %v4869 = vadd.f32 %v4868, %v4827
      %v4870 = vadd.f32 %v4869, %v4829
      %v4871 = vadd.f32 %v4870, %v4831
      %v4872 = vadd.f32 %v4871, %v4833
      %v4873 = vadd.f32 %v4872, %v4835
      %v4874 = vadd.f32 %v4873, %v4837
      %v4875 = vadd.f32 %v4874, %v4839
      %v4876 = vadd.f32 %v4875, %v4841
      %v4877 = vadd.f32 %v4876, %v4843
      %v4878 = vadd.f32 %v4877, %v4845
      %v4879 = vadd.f32 %v4878, %v4847
      %v4880 = vadd.f32 %v4879, %v4849
      %v4881 = vadd.f32 %v4880, %v4851
      %v4882 = vadd.f32 %v4866, %v4881
      %v4883 = vrot.slane %v4882, 4
      %v4884 = vadd.f32 %v4882, %v4883
      %v4885 = vrot.slane %v4884, 2
      %v4886 = vadd.f32 %v4884, %v4885
      %v4887 = vrot.slane %v4886, 1
      %v4888 = vadd.f32 %v4886, %v4887
      %v4889 = vmul.f32 %v4820, %v4820
      %v4890 = vmul.f32 %v4821, %v4821
      %v4891 = vmul.f32 %v4822, %v4822
      %v4892 = vmul.f32 %v4823, %v4823
      %v4893 = vmul.f32 %v4824, %v4824
      %v4894 = vmul.f32 %v4825, %v4825
      %v4895 = vmul.f32 %v4826, %v4826
      %v4896 = vmul.f32 %v4827, %v4827
      %v4897 = vmul.f32 %v4828, %v4828
      %v4898 = vmul.f32 %v4829, %v4829
      %v4899 = vmul.f32 %v4830, %v4830
      %v4900 = vmul.f32 %v4831, %v4831
      %v4901 = vmul.f32 %v4832, %v4832
      %v4902 = vmul.f32 %v4833, %v4833
      %v4903 = vmul.f32 %v4834, %v4834
      %v4904 = vmul.f32 %v4835, %v4835
      %v4905 = vmul.f32 %v4836, %v4836
      %v4906 = vmul.f32 %v4837, %v4837
      %v4907 = vmul.f32 %v4838, %v4838
      %v4908 = vmul.f32 %v4839, %v4839
      %v4909 = vmul.f32 %v4840, %v4840
      %v4910 = vmul.f32 %v4841, %v4841
      %v4911 = vmul.f32 %v4842, %v4842
      %v4912 = vmul.f32 %v4843, %v4843
      %v4913 = vmul.f32 %v4844, %v4844
      %v4914 = vmul.f32 %v4845, %v4845
      %v4915 = vmul.f32 %v4846, %v4846
      %v4916 = vmul.f32 %v4847, %v4847
      %v4917 = vmul.f32 %v4848, %v4848
      %v4918 = vmul.f32 %v4849, %v4849
      %v4919 = vmul.f32 %v4850, %v4850
      %v4920 = vmul.f32 %v4851, %v4851
      %v4921 = vadd.f32 %v4889, %v4891
      %v4922 = vadd.f32 %v4921, %v4893
      %v4923 = vadd.f32 %v4922, %v4895
      %v4924 = vadd.f32 %v4923, %v4897
      %v4925 = vadd.f32 %v4924, %v4899
      %v4926 = vadd.f32 %v4925, %v4901
      %v4927 = vadd.f32 %v4926, %v4903
      %v4928 = vadd.f32 %v4927, %v4905
      %v4929 = vadd.f32 %v4928, %v4907
      %v4930 = vadd.f32 %v4929, %v4909
      %v4931 = vadd.f32 %v4930, %v4911
      %v4932 = vadd.f32 %v4931, %v4913
      %v4933 = vadd.f32 %v4932, %v4915
      %v4934 = vadd.f32 %v4933, %v4917
      %v4935 = vadd.f32 %v4934, %v4919
      %v4936 = vadd.f32 %v4890, %v4892
      %v4937 = vadd.f32 %v4936, %v4894
      %v4938 = vadd.f32 %v4937, %v4896
      %v4939 = vadd.f32 %v4938, %v4898
      %v4940 = vadd.f32 %v4939, %v4900
      %v4941 = vadd.f32 %v4940, %v4902
      %v4942 = vadd.f32 %v4941, %v4904
      %v4943 = vadd.f32 %v4942, %v4906
      %v4944 = vadd.f32 %v4943, %v4908
      %v4945 = vadd.f32 %v4944, %v4910
      %v4946 = vadd.f32 %v4945, %v4912
      %v4947 = vadd.f32 %v4946, %v4914
      %v4948 = vadd.f32 %v4947, %v4916
      %v4949 = vadd.f32 %v4948, %v4918
      %v4950 = vadd.f32 %v4949, %v4920
      %v4951 = vadd.f32 %v4935, %v4950
      %v4952 = vrot.slane %v4951, 4
      %v4953 = vadd.f32 %v4951, %v4952
      %v4954 = vrot.slane %v4953, 2
      %v4955 = vadd.f32 %v4953, %v4954
      %v4956 = vrot.slane %v4955, 1
      %v4957 = vadd.f32 %v4955, %v4956
      %vm4958 = vcmask 1040384
      %v4959 = vsel %vm4958, %v4888, %v4957
      %4960 = vst [vmem:[%s214] sm:$0x3] %v4959
      %s4961 = smul.u32 16, %s20
      %p4962 = scmp.lt.s32.totalorder %s19, 1
      %s4963 = scalar_select %p4962, %s19, 1
      %p4964 = scmp.lt.s32.totalorder %s4961, 15
      %s4965 = scalar_select %p4964, %s4961, 15
      %s4966 = smul.addr %s4965, 2
      %s4967 = smul.addr %s4963, 32
      %s4968 = sadd.s32 %s4966, %s4967
      %s4969 = smul.addr %s4968, 8
      %s4970 = scalar_lea.vmem %s2, %s4969
      %p4971 = scmp.lt.s32.totalorder %s19, 1
      %s4972 = scalar_select %p4971, %s19, 1
      %p4973 = scmp.lt.s32.totalorder %s20, 0
      %s4974 = scalar_select %p4973, %s20, 0
      %s4975 = sadd.s32 %s4974, %s4972
      %s4976 = smul.addr %s4975, 2
      %s4977 = scalar_lea.vmem %s3, %s4976
      // Predicated region
      $region29: #{conv_block.2} parent=27 // pred_check
        %p4978 = pneg %p94
      $region30: #{conv_block.2} parent=27 // pred_check_branch
        %4980 = sbr.rel (%p4978) target = $region32
      $region31: #{conv_block.2} parent=27 // pred_region
        %s4981 = smul.u32 16, %s20
      $region32: #{conv_block.2} parent=27 // pred_fallthru
        _
      // Predicated region
      $region33: #{conv_block.2} parent=27 // pred_check
        %p4982 = pneg %p122
      $region34: #{conv_block.2} parent=27 // pred_check_branch
        %4984 = sbr.rel (%p4982) target = $region36
      $region35: #{conv_block.2} parent=27 // pred_region
        _
      $region36: #{conv_block.2} parent=27 // pred_fallthru
        _
    $region28: #{conv_block.2} parent=5 // pred_fallthru
      _
    %p4985 = scmp.le.s32.totalorder 2, %s10
    // Predicated region
    $region37: #{conv_block.2} parent=5 // pred_check
      %p4986 = pneg %p4985
    $region38: #{conv_block.2} parent=5 // pred_check_branch
      %4988 = sbr.rel (%p4986) target = $region40
    $region39: #{conv_block.2} parent=5 // pred_region
      %s4989 = ssub.s32 %s10, 2
      // Predicated region
      $region41: #{conv_block.2} parent=39 // pred_check
        %p4990 = pneg %p100
      $region42: #{conv_block.2} parent=39 // pred_check_branch
        %4992 = sbr.rel (%p4990) target = $region44
      $region43: #{conv_block.2} parent=39 // pred_region
        %s4993 = smul.u32 16, %s22
        %p4994 = scmp.lt.s32.totalorder %s21, 1
        %s4995 = scalar_select %p4994, %s21, 1
        %p4996 = scmp.lt.s32.totalorder %s4993, 15
        %s4997 = scalar_select %p4996, %s4993, 15
        %s4998 = smul.addr %s4997, 2
        %s4999 = smul.addr %s4995, 32
        %s5000 = sadd.s32 %s4998, %s4999
        %s5001 = smul.addr %s5000, 8
        %s5002 = scalar_lea.vmem %s2, %s5001
      $region44: #{conv_block.2} parent=39 // pred_fallthru
        _
      // Predicated region
      $region45: #{conv_block.2} parent=39 // pred_check
        %p5003 = pneg %p128
      $region46: #{conv_block.2} parent=39 // pred_check_branch
        %5005 = sbr.rel (%p5003) target = $region48
      $region47: #{conv_block.2} parent=39 // pred_region
        %p5006 = scmp.lt.s32.totalorder %s21, 1
        %s5007 = scalar_select %p5006, %s21, 1
        %p5008 = scmp.lt.s32.totalorder %s22, 0
        %s5009 = scalar_select %p5008, %s22, 0
        %s5010 = sadd.s32 %s5009, %s5007
        %s5011 = smul.addr %s5010, 2
        %s5012 = scalar_lea.vmem %s3, %s5011
      $region48: #{conv_block.2} parent=39 // pred_fallthru
        _
    $region40: #{conv_block.2} parent=5 // pred_fallthru
      _
  $region6: #{conv_block.2} parent=0 // loop_footer
    %s14 = sadd.s32 1, %s10
  $region7: #{conv_block.2} parent=0 // loop_footer_branch
    %9 = sbr.rel target = $region3
  $region8: #{conv_block.2} parent=0 // loop_exit
    _

</llo_original>
